<compile_context>
chip_gen: v7x
topology: tpu7x:2x2x1
jax: 0.10.0
libtpu: 0.0.40
codegen_flags: <defaults>
</compile_context>

<pallas_src>
import jax
import jax.numpy as jnp
from jax import lax
from jax.experimental import pallas as pl
from jax.experimental.pallas import tpu as pltpu

_VMEM = pltpu.MemorySpace.VMEM

_T = 8          # LSTM sequence length (i_size)
_I = 8          # LSTM input size (i_size)
_H = 16         # LSTM hidden size
_NUM_CLASS = 10


# ------------------------------ fused kernel -------------------------------

def _fused_forward_kernel(patches_ref,      # (4B, 36)  im2col slab
                          w1_ref,           # (36, 64)  conv1 block-diagonal
                          w2_ref,           # (64, 256) conv2 position blocks
                          wf_ref, bf_ref,   # (64, 512), (1, 512) fc (x) wih0 fold
                          wr_ref,           # (48, 64)  [whh0; wih1; whh1]
                          wc_ref,           # (16, 128) classifier (lane-padded)
                          bm_ref,           # (4, 128)  [b1_tiled; b2; bl1; bcls]
                          out_ref):         # (B, 128)
    f32 = jnp.float32
    B = out_ref.shape[0]
    H = _H

    def dot(a, b):
        return jnp.dot(a, b, preferred_element_type=f32)

    bm = bm_ref[...]
    b1 = bm[0:1, 0:64]        # conv1 bias tiled over the 4 pooled positions
    b2 = bm[1:2, 0:64]        # conv2 bias
    bl1 = bm[2:3, 0:64]       # layer-1 combined LSTM bias (i|f|g|o)
    bcls = bm[3:4, :]         # classifier bias (lane-padded to 128)

    # --- conv1 (3x3, pad 1) + ReLU + 2x2 max-pool: ONE matmul ---------------
    # z1 rows = window-offset w * B + b; lanes = pooled-position q * 16 + ch.
    # maxpool(relu(z+b)) == relu(max_w(z)+b): bias is position-invariant and
    # relu / fp-add are monotone, so this is exact.
    z1 = dot(patches_ref[...], w1_ref[...])                       # (4B, 64)
    m1 = jnp.maximum(jnp.maximum(z1[0 * B:1 * B], z1[1 * B:2 * B]),
                     jnp.maximum(z1[2 * B:3 * B], z1[3 * B:4 * B]))
    pooled1 = jnp.maximum(m1 + b1, 0.0)                           # (B, 64)

    # --- conv2 (3x3, pad 1, on the 2x2 map) + ReLU + 2x2 max-pool: ONE matmul
    # z2 lanes = output-position r * 64 + ch; the 2x2 pool is a max over r.
    z2 = dot(pooled1, w2_ref[...])                                # (B, 256)
    m2 = jnp.maximum(jnp.maximum(z2[:, 0:64], z2[:, 64:128]),
                     jnp.maximum(z2[:, 128:192], z2[:, 192:256]))
    h2 = jnp.maximum(m2 + b2, 0.0)                                # (B, 64)

    # --- fc (Dropout -> identity) folded into the layer-0 input projection --
    # gx0[:, t*64:(t+1)*64] = x_t @ Wih0^T + bfc_t @ Wih0^T + b_ih0 + b_hh0,
    # gate order i|f|g|o.  ONE (B,64)x(64,512) matmul for all T steps/gates.
    gx0 = dot(h2, wf_ref[...]) + bf_ref[...]                      # (B, 512)

    wr = wr_ref[...]
    whh0 = wr[0:16]                                               # (16, 64)
    wih1 = wr[16:32]                                              # (16, 64)
    whh1 = wr[32:48]                                              # (16, 64)

    def cell(a, c):
        # a: (B, 64) pre-activations [i|f|g|o]; 3 EUP pushes per cell.
        sig = jax.nn.sigmoid(a)
        i_g = sig[:, 0:H]
        f_g = sig[:, H:2 * H]
        o_g = sig[:, 3 * H:4 * H]
        g_g = jnp.tanh(a[:, 2 * H:3 * H])
        c_new = f_g * c + i_g * g_g
        h_new = o_g * jnp.tanh(c_new)
        return h_new, c_new

    # --- 2-layer LSTM, fully unrolled, layers interleaved -------------------
    h0 = jnp.zeros((B, H), f32)
    c0 = jnp.zeros((B, H), f32)
    h1 = jnp.zeros((B, H), f32)
    c1 = jnp.zeros((B, H), f32)
    for t in range(_T):
        a0 = gx0[:, t * 64:(t + 1) * 64] + dot(h0, whh0)          # 1 MXU push
        h0, c0 = cell(a0, c0)
        # Inter-layer dropout -> identity in eval mode.
        a1 = dot(h0, wih1) + dot(h1, whh1) + bl1                  # 2 MXU pushes
        h1, c1 = cell(a1, c1)

    # --- classifier: the only HBM store, unmasked (128 lanes) ---------------
    out_ref[...] = (dot(h1, wc_ref[...]) + bcls).astype(out_ref.dtype)


# ------------------------------- wrappers -----------------------------------

def _conv1_patches(x):
    """x: (B,1,4,4) -> (4B, 36) im2col slab; rows = w*B + b, lanes = q*9 + j."""
    B = x.shape[0]
    xp = jnp.pad(x[:, 0], ((0, 0), (1, 1), (1, 1)))               # (B, 6, 6)
    per_q = []
    for py in range(2):
        for px in range(2):
            per_w = []
            for dy in range(2):
                for dx in range(2):
                    y, xx = 2 * py + dy, 2 * px + dx
                    per_w.append(xp[:, y:y + 3, xx:xx + 3].reshape(B, 9))
            per_q.append(jnp.stack(per_w, 0))                     # (4, B, 9)
    return jnp.concatenate(per_q, axis=-1).reshape(4 * B, 36)


def pack_params(p):
    """Pre-pack PyTorch-shaped params once into 7 lane-dense slabs."""
    H = _H
    f32 = jnp.float32

    # conv1: block-diagonal (36, 64); block q maps its 9 patch lanes to its
    # 16 output-channel lanes (same 3x3 filter replicated per pooled position).
    w1s = p["conv1_w"].reshape(16, 9).T                           # (9, 16)
    w1 = jnp.zeros((36, 64), f32)
    for q in range(4):
        w1 = w1.at[q * 9:(q + 1) * 9, q * 16:(q + 1) * 16].set(w1s)

    # conv2 as dense position blocks, lane-concatenated:
    # rows = input-position q * 16 + c_in, cols = output-position r * 64 + c_out.
    w2t = p["conv2_w"]                                            # (64, 16, 3, 3)
    blocks = []
    for qy in range(2):
        for qx in range(2):
            for ry in range(2):
                for rx in range(2):
                    blocks.append(w2t[:, :, qy - ry + 1, qx - rx + 1].T)  # (16,64)
    w2 = (jnp.stack(blocks, 0).reshape(4, 4, 16, 64)
          .transpose(0, 2, 1, 3).reshape(64, 256))

    # fc folded into the layer-0 input projection (gate order i|f|g|o).
    wih0t = p["w_ih_l0"].T                                        # (8, 64)
    b0 = p["b_ih_l0"] + p["b_hh_l0"]                              # (64,)
    wf_blocks, bf_blocks = [], []
    for t in range(_T):
        wfc_t = p["fc_w"][t * _I:(t + 1) * _I, :].T               # (64, 8)
        bfc_t = p["fc_b"][t * _I:(t + 1) * _I]                    # (8,)
        wf_blocks.append(wfc_t @ wih0t)                           # (64, 64)
        bf_blocks.append(bfc_t @ wih0t + b0)                      # (64,)
    wf = jnp.concatenate(wf_blocks, axis=1)                       # (64, 512)
    bf = jnp.concatenate(bf_blocks, axis=0).reshape(1, _T * 64)   # (1, 512)

    # Recurrent / layer-1 input weights, concatenated-gate form (16, 64) each.
    wr = jnp.concatenate([p["w_hh_l0"].T, p["w_ih_l1"].T, p["w_hh_l1"].T], 0)

    # Classifier weight lane-padded to 128 (unmasked final store).
    wc = jnp.zeros((H, 128), f32).at[:, :_NUM_CLASS].set(p["cls_w"].T)

    # Misc biases packed into one (4, 128) slab.
    bm = jnp.zeros((4, 128), f32)
    bm = bm.at[0, :64].set(jnp.tile(p["conv1_b"], 4))
    bm = bm.at[1, :64].set(p["conv2_b"])
    bm = bm.at[2, :64].set(p["b_ih_l1"] + p["b_hh_l1"])
    bm = bm.at[3, :_NUM_CLASS].set(p["cls_b"])

    return {"w1": w1, "w2": w2, "wf": wf, "bf": bf,
            "wr": wr, "wc": wc, "bm": bm}


def cnn_lstm_forward(packed, x):
    """x: (B, 1, 4, 4) NCHW -> logits (B, 10). One fused pallas_call."""
    B = x.shape[0]
    patches = _conv1_patches(x)
    args = (patches, packed["w1"], packed["w2"], packed["wf"], packed["bf"],
            packed["wr"], packed["wc"], packed["bm"])
    out = pl.pallas_call(
        _fused_forward_kernel,
        out_shape=jax.ShapeDtypeStruct((B, 128), jnp.float32),
        in_specs=[pl.BlockSpec(memory_space=_VMEM)] * len(args),
        out_specs=pl.BlockSpec(memory_space=_VMEM),
    )(*args)
    return out[:, :_NUM_CLASS]


# -------------------------- parameter initialization ------------------------

def init_params(key):
    def uni(k, shape, bound):
        return jax.random.uniform(k, shape, jnp.float32, -bound, bound)

    ks = jax.random.split(key, 16)
    H = _H
    hb = 1.0 / H ** 0.5
    return {
        "conv1_w": uni(ks[0], (16, 1, 3, 3), 1.0 / 9 ** 0.5),
        "conv1_b": uni(ks[1], (16,), 1.0 / 9 ** 0.5),
        "conv2_w": uni(ks[2], (64, 16, 3, 3), 1.0 / 144 ** 0.5),
        "conv2_b": uni(ks[3], (64,), 1.0 / 144 ** 0.5),
        "fc_w": uni(ks[4], (64, 64), 1.0 / 8.0),
        "fc_b": uni(ks[5], (64,), 1.0 / 8.0),
        "w_ih_l0": uni(ks[6], (4 * H, _I), hb),
        "w_hh_l0": uni(ks[7], (4 * H, H), hb),
        "b_ih_l0": uni(ks[8], (4 * H,), hb),
        "b_hh_l0": uni(ks[9], (4 * H,), hb),
        "w_ih_l1": uni(ks[10], (4 * H, H), hb),
        "w_hh_l1": uni(ks[11], (4 * H, H), hb),
        "b_ih_l1": uni(ks[12], (4 * H,), hb),
        "b_hh_l1": uni(ks[13], (4 * H,), hb),
        "cls_w": uni(ks[14], (_NUM_CLASS, 16), 1.0 / 4.0),
        "cls_b": uni(ks[15], (_NUM_CLASS,), 1.0 / 4.0),
    }


# ------------------------ pure-JAX reference check ---------------------------

def reference_forward(params, x):
    def conv(x, w, b):
        y = lax.conv_general_dilated(x, w, (1, 1), ((1, 1), (1, 1)),
                                     dimension_numbers=("NCHW", "OIHW", "NCHW"))
        return jax.nn.relu(y + b.reshape(1, -1, 1, 1))

    def pool(x):
        return lax.reduce_window(x, -jnp.inf, lax.max,
                                 (1, 1, 2, 2), (1, 1, 2, 2), "VALID")

    B = x.shape[0]
    h = pool(conv(x, params["conv1_w"], params["conv1_b"]))
    h = pool(conv(h, params["conv2_w"], params["conv2_b"]))
    h = h.reshape(B, -1)
    h = h @ params["fc_w"].T + params["fc_b"]
    seq = h.reshape(B, _T, _I)

    def lstm_layer(xs_bti, w_ih, w_hh, b_ih, b_hh):
        Hh = w_hh.shape[1]

        def step(carry, x_t):
            hh, cc = carry
            g = x_t @ w_ih.T + hh @ w_hh.T + b_ih + b_hh
            i = jax.nn.sigmoid(g[:, :Hh])
            f = jax.nn.sigmoid(g[:, Hh:2 * Hh])
            gg = jnp.tanh(g[:, 2 * Hh:3 * Hh])
            o = jax.nn.sigmoid(g[:, 3 * Hh:])
            cc = f * cc + i * gg
            hh = o * jnp.tanh(cc)
            return (hh, cc), hh

        init = (jnp.zeros((B, Hh)), jnp.zeros((B, Hh)))
        _, ys = lax.scan(step, init, xs_bti.transpose(1, 0, 2))
        return ys.transpose(1, 0, 2)

    o = lstm_layer(seq, params["w_ih_l0"], params["w_hh_l0"],
                   params["b_ih_l0"], params["b_hh_l0"])
    o = lstm_layer(o, params["w_ih_l1"], params["w_hh_l1"],
                   params["b_ih_l1"], params["b_hh_l1"])
    last = o[:, -1, :]
    return last @ params["cls_w"].T + params["cls_b"]


if __name__ == "__main__":
    key = jax.random.PRNGKey(0)
    pkey, xkey = jax.random.split(key)
    params = init_params(pkey)
    packed = pack_params(params)          # one-time weight pre-packing / folding
    x = jax.random.normal(xkey, (2, 1, 4, 4), jnp.float32)

    fwd = jax.jit(cnn_lstm_forward)
    out = jax.block_until_ready(fwd(packed, x))
    ref = jax.block_until_ready(reference_forward(params, x))

    assert out.shape == (2, _NUM_CLASS), out.shape
    assert bool(jnp.all(jnp.isfinite(out)))
    # Tolerance tightened from 2e-2 to 1e-2 (review): the fc-into-wih0 fold and
    # MXU vs XLA f32 matmul paths differ at ~1e-3; layout/gate-order bugs would
    # show up as O(1) errors, so this still catches real packing mistakes.
    assert bool(jnp.allclose(out, ref, atol=1e-2, rtol=1e-2)), (out, ref)
    print("KERNEL_OK")
</pallas_src>

<mosaic_0001>
module attributes {stable_mosaic.version = 11 : i64} {
  func.func @_fused_forward_kernel(%arg0: memref<8x36xf32, #tpu.memory_space<vmem>>, %arg1: memref<36x64xf32, #tpu.memory_space<vmem>>, %arg2: memref<64x256xf32, #tpu.memory_space<vmem>>, %arg3: memref<64x512xf32, #tpu.memory_space<vmem>>, %arg4: memref<1x512xf32, #tpu.memory_space<vmem>>, %arg5: memref<48x64xf32, #tpu.memory_space<vmem>>, %arg6: memref<16x128xf32, #tpu.memory_space<vmem>>, %arg7: memref<4x128xf32, #tpu.memory_space<vmem>>, %arg8: memref<2x128xf32, #tpu.memory_space<vmem>>) attributes {dimension_semantics = [], scalar_prefetch = 0 : i64, scratch_operands = 0 : i64, tpu.core_type = #tpu.core_type<tc>} {
    %c0 = arith.constant 0 : index
    %c0_0 = arith.constant 0 : index
    %0 = vector.load %arg7[%c0, %c0_0] : memref<4x128xf32, #tpu.memory_space<vmem>>, vector<4x128xf32>
    %1 = vector.extract_strided_slice %0 {offsets = [0, 0], sizes = [1, 64], strides = [1, 1]} : vector<4x128xf32> to vector<1x64xf32>
    %2 = vector.extract_strided_slice %0 {offsets = [1, 0], sizes = [1, 64], strides = [1, 1]} : vector<4x128xf32> to vector<1x64xf32>
    %3 = vector.extract_strided_slice %0 {offsets = [2, 0], sizes = [1, 64], strides = [1, 1]} : vector<4x128xf32> to vector<1x64xf32>
    %4 = vector.extract_strided_slice %0 {offsets = [3, 0], sizes = [1, 128], strides = [1, 1]} : vector<4x128xf32> to vector<1x128xf32>
    %c0_1 = arith.constant 0 : index
    %c0_2 = arith.constant 0 : index
    %5 = vector.load %arg0[%c0_1, %c0_2] : memref<8x36xf32, #tpu.memory_space<vmem>>, vector<8x36xf32>
    %c0_3 = arith.constant 0 : index
    %c0_4 = arith.constant 0 : index
    %6 = vector.load %arg1[%c0_3, %c0_4] : memref<36x64xf32, #tpu.memory_space<vmem>>, vector<36x64xf32>
    %cst = arith.constant dense<0.000000e+00> : vector<8x64xf32>
    %7 = tpu.matmul %5, %6, %cst {dimension_numbers = #tpu.dot_dimension_numbers<[1], [0], [0], [1], [0, 0, 1, 1], [], []>} : vector<8x36xf32>, vector<36x64xf32>, vector<8x64xf32> -> vector<8x64xf32>
    %8 = vector.extract_strided_slice %7 {offsets = [0, 0], sizes = [2, 64], strides = [1, 1]} : vector<8x64xf32> to vector<2x64xf32>
    %9 = vector.extract_strided_slice %7 {offsets = [2, 0], sizes = [2, 64], strides = [1, 1]} : vector<8x64xf32> to vector<2x64xf32>
    %10 = arith.maximumf %8, %9 : vector<2x64xf32>
    %11 = vector.extract_strided_slice %7 {offsets = [4, 0], sizes = [2, 64], strides = [1, 1]} : vector<8x64xf32> to vector<2x64xf32>
    %12 = vector.extract_strided_slice %7 {offsets = [6, 0], sizes = [2, 64], strides = [1, 1]} : vector<8x64xf32> to vector<2x64xf32>
    %13 = arith.maximumf %11, %12 : vector<2x64xf32>
    %14 = arith.maximumf %10, %13 : vector<2x64xf32>
    %15 = vector.broadcast %1 : vector<1x64xf32> to vector<2x64xf32>
    %16 = arith.addf %14, %15 : vector<2x64xf32>
    %cst_5 = arith.constant 0.000000e+00 : f32
    %17 = vector.broadcast %cst_5 : f32 to vector<2x64xf32>
    %18 = arith.maximumf %16, %17 : vector<2x64xf32>
    %c0_6 = arith.constant 0 : index
    %c0_7 = arith.constant 0 : index
    %19 = vector.load %arg2[%c0_6, %c0_7] : memref<64x256xf32, #tpu.memory_space<vmem>>, vector<64x256xf32>
    %cst_8 = arith.constant dense<0.000000e+00> : vector<2x256xf32>
    %20 = tpu.matmul %18, %19, %cst_8 {dimension_numbers = #tpu.dot_dimension_numbers<[1], [0], [0], [1], [0, 0, 1, 1], [], []>} : vector<2x64xf32>, vector<64x256xf32>, vector<2x256xf32> -> vector<2x256xf32>
    %21 = vector.extract_strided_slice %20 {offsets = [0, 0], sizes = [2, 64], strides = [1, 1]} : vector<2x256xf32> to vector<2x64xf32>
    %22 = vector.extract_strided_slice %20 {offsets = [0, 64], sizes = [2, 64], strides = [1, 1]} : vector<2x256xf32> to vector<2x64xf32>
    %23 = arith.maximumf %21, %22 : vector<2x64xf32>
    %24 = vector.extract_strided_slice %20 {offsets = [0, 128], sizes = [2, 64], strides = [1, 1]} : vector<2x256xf32> to vector<2x64xf32>
    %25 = vector.extract_strided_slice %20 {offsets = [0, 192], sizes = [2, 64], strides = [1, 1]} : vector<2x256xf32> to vector<2x64xf32>
    %26 = arith.maximumf %24, %25 : vector<2x64xf32>
    %27 = arith.maximumf %23, %26 : vector<2x64xf32>
    %28 = vector.broadcast %2 : vector<1x64xf32> to vector<2x64xf32>
    %29 = arith.addf %27, %28 : vector<2x64xf32>
    %cst_9 = arith.constant 0.000000e+00 : f32
    %30 = vector.broadcast %cst_9 : f32 to vector<2x64xf32>
    %31 = arith.maximumf %29, %30 : vector<2x64xf32>
    %c0_10 = arith.constant 0 : index
    %c0_11 = arith.constant 0 : index
    %32 = vector.load %arg3[%c0_10, %c0_11] : memref<64x512xf32, #tpu.memory_space<vmem>>, vector<64x512xf32>
    %cst_12 = arith.constant dense<0.000000e+00> : vector<2x512xf32>
    %33 = tpu.matmul %31, %32, %cst_12 {dimension_numbers = #tpu.dot_dimension_numbers<[1], [0], [0], [1], [0, 0, 1, 1], [], []>} : vector<2x64xf32>, vector<64x512xf32>, vector<2x512xf32> -> vector<2x512xf32>
    %c0_13 = arith.constant 0 : index
    %c0_14 = arith.constant 0 : index
    %34 = vector.load %arg4[%c0_13, %c0_14] : memref<1x512xf32, #tpu.memory_space<vmem>>, vector<1x512xf32>
    %35 = vector.broadcast %34 : vector<1x512xf32> to vector<2x512xf32>
    %36 = arith.addf %33, %35 : vector<2x512xf32>
    %c0_15 = arith.constant 0 : index
    %c0_16 = arith.constant 0 : index
    %37 = vector.load %arg5[%c0_15, %c0_16] : memref<48x64xf32, #tpu.memory_space<vmem>>, vector<48x64xf32>
    %38 = vector.extract_strided_slice %37 {offsets = [0, 0], sizes = [16, 64], strides = [1, 1]} : vector<48x64xf32> to vector<16x64xf32>
    %39 = vector.extract_strided_slice %37 {offsets = [16, 0], sizes = [16, 64], strides = [1, 1]} : vector<48x64xf32> to vector<16x64xf32>
    %40 = vector.extract_strided_slice %37 {offsets = [32, 0], sizes = [16, 64], strides = [1, 1]} : vector<48x64xf32> to vector<16x64xf32>
    %cst_17 = arith.constant 0.000000e+00 : f32
    %41 = vector.broadcast %cst_17 : f32 to vector<2x16xf32>
    %cst_18 = arith.constant 0.000000e+00 : f32
    %42 = vector.broadcast %cst_18 : f32 to vector<2x16xf32>
    %cst_19 = arith.constant 0.000000e+00 : f32
    %43 = vector.broadcast %cst_19 : f32 to vector<2x16xf32>
    %cst_20 = arith.constant 0.000000e+00 : f32
    %44 = vector.broadcast %cst_20 : f32 to vector<2x16xf32>
    %45 = vector.extract_strided_slice %36 {offsets = [0, 0], sizes = [2, 64], strides = [1, 1]} : vector<2x512xf32> to vector<2x64xf32>
    %cst_21 = arith.constant dense<0.000000e+00> : vector<2x64xf32>
    %46 = tpu.matmul %41, %38, %cst_21 {dimension_numbers = #tpu.dot_dimension_numbers<[1], [0], [0], [1], [0, 0, 1, 1], [], []>} : vector<2x16xf32>, vector<16x64xf32>, vector<2x64xf32> -> vector<2x64xf32>
    %47 = arith.addf %45, %46 : vector<2x64xf32>
    %48 = arith.negf %47 : vector<2x64xf32>
    %49 = math.exp %48 : vector<2x64xf32>
    %cst_22 = arith.constant 1.000000e+00 : f32
    %50 = vector.broadcast %cst_22 : f32 to vector<2x64xf32>
    %51 = arith.addf %50, %49 : vector<2x64xf32>
    %52 = arith.divf %50, %51 : vector<2x64xf32>
    %53 = vector.extract_strided_slice %52 {offsets = [0, 0], sizes = [2, 16], strides = [1, 1]} : vector<2x64xf32> to vector<2x16xf32>
    %54 = vector.extract_strided_slice %52 {offsets = [0, 16], sizes = [2, 16], strides = [1, 1]} : vector<2x64xf32> to vector<2x16xf32>
    %55 = vector.extract_strided_slice %52 {offsets = [0, 48], sizes = [2, 16], strides = [1, 1]} : vector<2x64xf32> to vector<2x16xf32>
    %56 = vector.extract_strided_slice %47 {offsets = [0, 32], sizes = [2, 16], strides = [1, 1]} : vector<2x64xf32> to vector<2x16xf32>
    %57 = math.tanh %56 : vector<2x16xf32>
    %58 = arith.mulf %54, %42 : vector<2x16xf32>
    %59 = arith.mulf %53, %57 : vector<2x16xf32>
    %60 = arith.addf %58, %59 : vector<2x16xf32>
    %61 = math.tanh %60 : vector<2x16xf32>
    %62 = arith.mulf %55, %61 : vector<2x16xf32>
    %cst_23 = arith.constant dense<0.000000e+00> : vector<2x64xf32>
    %63 = tpu.matmul %62, %39, %cst_23 {dimension_numbers = #tpu.dot_dimension_numbers<[1], [0], [0], [1], [0, 0, 1, 1], [], []>} : vector<2x16xf32>, vector<16x64xf32>, vector<2x64xf32> -> vector<2x64xf32>
    %cst_24 = arith.constant dense<0.000000e+00> : vector<2x64xf32>
    %64 = tpu.matmul %43, %40, %cst_24 {dimension_numbers = #tpu.dot_dimension_numbers<[1], [0], [0], [1], [0, 0, 1, 1], [], []>} : vector<2x16xf32>, vector<16x64xf32>, vector<2x64xf32> -> vector<2x64xf32>
    %65 = arith.addf %63, %64 : vector<2x64xf32>
    %66 = vector.broadcast %3 : vector<1x64xf32> to vector<2x64xf32>
    %67 = arith.addf %65, %66 : vector<2x64xf32>
    %68 = arith.negf %67 : vector<2x64xf32>
    %69 = math.exp %68 : vector<2x64xf32>
    %cst_25 = arith.constant 1.000000e+00 : f32
    %70 = vector.broadcast %cst_25 : f32 to vector<2x64xf32>
    %71 = arith.addf %70, %69 : vector<2x64xf32>
    %72 = arith.divf %70, %71 : vector<2x64xf32>
    %73 = vector.extract_strided_slice %72 {offsets = [0, 0], sizes = [2, 16], strides = [1, 1]} : vector<2x64xf32> to vector<2x16xf32>
    %74 = vector.extract_strided_slice %72 {offsets = [0, 16], sizes = [2, 16], strides = [1, 1]} : vector<2x64xf32> to vector<2x16xf32>
    %75 = vector.extract_strided_slice %72 {offsets = [0, 48], sizes = [2, 16], strides = [1, 1]} : vector<2x64xf32> to vector<2x16xf32>
    %76 = vector.extract_strided_slice %67 {offsets = [0, 32], sizes = [2, 16], strides = [1, 1]} : vector<2x64xf32> to vector<2x16xf32>
    %77 = math.tanh %76 : vector<2x16xf32>
    %78 = arith.mulf %74, %44 : vector<2x16xf32>
    %79 = arith.mulf %73, %77 : vector<2x16xf32>
    %80 = arith.addf %78, %79 : vector<2x16xf32>
    %81 = math.tanh %80 : vector<2x16xf32>
    %82 = arith.mulf %75, %81 : vector<2x16xf32>
    %83 = vector.extract_strided_slice %36 {offsets = [0, 64], sizes = [2, 64], strides = [1, 1]} : vector<2x512xf32> to vector<2x64xf32>
    %cst_26 = arith.constant dense<0.000000e+00> : vector<2x64xf32>
    %84 = tpu.matmul %62, %38, %cst_26 {dimension_numbers = #tpu.dot_dimension_numbers<[1], [0], [0], [1], [0, 0, 1, 1], [], []>} : vector<2x16xf32>, vector<16x64xf32>, vector<2x64xf32> -> vector<2x64xf32>
    %85 = arith.addf %83, %84 : vector<2x64xf32>
    %86 = arith.negf %85 : vector<2x64xf32>
    %87 = math.exp %86 : vector<2x64xf32>
    %cst_27 = arith.constant 1.000000e+00 : f32
    %88 = vector.broadcast %cst_27 : f32 to vector<2x64xf32>
    %89 = arith.addf %88, %87 : vector<2x64xf32>
    %90 = arith.divf %88, %89 : vector<2x64xf32>
    %91 = vector.extract_strided_slice %90 {offsets = [0, 0], sizes = [2, 16], strides = [1, 1]} : vector<2x64xf32> to vector<2x16xf32>
    %92 = vector.extract_strided_slice %90 {offsets = [0, 16], sizes = [2, 16], strides = [1, 1]} : vector<2x64xf32> to vector<2x16xf32>
    %93 = vector.extract_strided_slice %90 {offsets = [0, 48], sizes = [2, 16], strides = [1, 1]} : vector<2x64xf32> to vector<2x16xf32>
    %94 = vector.extract_strided_slice %85 {offsets = [0, 32], sizes = [2, 16], strides = [1, 1]} : vector<2x64xf32> to vector<2x16xf32>
    %95 = math.tanh %94 : vector<2x16xf32>
    %96 = arith.mulf %92, %60 : vector<2x16xf32>
    %97 = arith.mulf %91, %95 : vector<2x16xf32>
    %98 = arith.addf %96, %97 : vector<2x16xf32>
    %99 = math.tanh %98 : vector<2x16xf32>
    %100 = arith.mulf %93, %99 : vector<2x16xf32>
    %cst_28 = arith.constant dense<0.000000e+00> : vector<2x64xf32>
    %101 = tpu.matmul %100, %39, %cst_28 {dimension_numbers = #tpu.dot_dimension_numbers<[1], [0], [0], [1], [0, 0, 1, 1], [], []>} : vector<2x16xf32>, vector<16x64xf32>, vector<2x64xf32> -> vector<2x64xf32>
    %cst_29 = arith.constant dense<0.000000e+00> : vector<2x64xf32>
    %102 = tpu.matmul %82, %40, %cst_29 {dimension_numbers = #tpu.dot_dimension_numbers<[1], [0], [0], [1], [0, 0, 1, 1], [], []>} : vector<2x16xf32>, vector<16x64xf32>, vector<2x64xf32> -> vector<2x64xf32>
    %103 = arith.addf %101, %102 : vector<2x64xf32>
    %104 = vector.broadcast %3 : vector<1x64xf32> to vector<2x64xf32>
    %105 = arith.addf %103, %104 : vector<2x64xf32>
    %106 = arith.negf %105 : vector<2x64xf32>
    %107 = math.exp %106 : vector<2x64xf32>
    %cst_30 = arith.constant 1.000000e+00 : f32
    %108 = vector.broadcast %cst_30 : f32 to vector<2x64xf32>
    %109 = arith.addf %108, %107 : vector<2x64xf32>
    %110 = arith.divf %108, %109 : vector<2x64xf32>
    %111 = vector.extract_strided_slice %110 {offsets = [0, 0], sizes = [2, 16], strides = [1, 1]} : vector<2x64xf32> to vector<2x16xf32>
    %112 = vector.extract_strided_slice %110 {offsets = [0, 16], sizes = [2, 16], strides = [1, 1]} : vector<2x64xf32> to vector<2x16xf32>
    %113 = vector.extract_strided_slice %110 {offsets = [0, 48], sizes = [2, 16], strides = [1, 1]} : vector<2x64xf32> to vector<2x16xf32>
    %114 = vector.extract_strided_slice %105 {offsets = [0, 32], sizes = [2, 16], strides = [1, 1]} : vector<2x64xf32> to vector<2x16xf32>
    %115 = math.tanh %114 : vector<2x16xf32>
    %116 = arith.mulf %112, %80 : vector<2x16xf32>
    %117 = arith.mulf %111, %115 : vector<2x16xf32>
    %118 = arith.addf %116, %117 : vector<2x16xf32>
    %119 = math.tanh %118 : vector<2x16xf32>
    %120 = arith.mulf %113, %119 : vector<2x16xf32>
    %121 = vector.extract_strided_slice %36 {offsets = [0, 128], sizes = [2, 64], strides = [1, 1]} : vector<2x512xf32> to vector<2x64xf32>
    %cst_31 = arith.constant dense<0.000000e+00> : vector<2x64xf32>
    %122 = tpu.matmul %100, %38, %cst_31 {dimension_numbers = #tpu.dot_dimension_numbers<[1], [0], [0], [1], [0, 0, 1, 1], [], []>} : vector<2x16xf32>, vector<16x64xf32>, vector<2x64xf32> -> vector<2x64xf32>
    %123 = arith.addf %121, %122 : vector<2x64xf32>
    %124 = arith.negf %123 : vector<2x64xf32>
    %125 = math.exp %124 : vector<2x64xf32>
    %cst_32 = arith.constant 1.000000e+00 : f32
    %126 = vector.broadcast %cst_32 : f32 to vector<2x64xf32>
    %127 = arith.addf %126, %125 : vector<2x64xf32>
    %128 = arith.divf %126, %127 : vector<2x64xf32>
    %129 = vector.extract_strided_slice %128 {offsets = [0, 0], sizes = [2, 16], strides = [1, 1]} : vector<2x64xf32> to vector<2x16xf32>
    %130 = vector.extract_strided_slice %128 {offsets = [0, 16], sizes = [2, 16], strides = [1, 1]} : vector<2x64xf32> to vector<2x16xf32>
    %131 = vector.extract_strided_slice %128 {offsets = [0, 48], sizes = [2, 16], strides = [1, 1]} : vector<2x64xf32> to vector<2x16xf32>
    %132 = vector.extract_strided_slice %123 {offsets = [0, 32], sizes = [2, 16], strides = [1, 1]} : vector<2x64xf32> to vector<2x16xf32>
    %133 = math.tanh %132 : vector<2x16xf32>
    %134 = arith.mulf %130, %98 : vector<2x16xf32>
    %135 = arith.mulf %129, %133 : vector<2x16xf32>
    %136 = arith.addf %134, %135 : vector<2x16xf32>
    %137 = math.tanh %136 : vector<2x16xf32>
    %138 = arith.mulf %131, %137 : vector<2x16xf32>
    %cst_33 = arith.constant dense<0.000000e+00> : vector<2x64xf32>
    %139 = tpu.matmul %138, %39, %cst_33 {dimension_numbers = #tpu.dot_dimension_numbers<[1], [0], [0], [1], [0, 0, 1, 1], [], []>} : vector<2x16xf32>, vector<16x64xf32>, vector<2x64xf32> -> vector<2x64xf32>
    %cst_34 = arith.constant dense<0.000000e+00> : vector<2x64xf32>
    %140 = tpu.matmul %120, %40, %cst_34 {dimension_numbers = #tpu.dot_dimension_numbers<[1], [0], [0], [1], [0, 0, 1, 1], [], []>} : vector<2x16xf32>, vector<16x64xf32>, vector<2x64xf32> -> vector<2x64xf32>
    %141 = arith.addf %139, %140 : vector<2x64xf32>
    %142 = vector.broadcast %3 : vector<1x64xf32> to vector<2x64xf32>
    %143 = arith.addf %141, %142 : vector<2x64xf32>
    %144 = arith.negf %143 : vector<2x64xf32>
    %145 = math.exp %144 : vector<2x64xf32>
    %cst_35 = arith.constant 1.000000e+00 : f32
    %146 = vector.broadcast %cst_35 : f32 to vector<2x64xf32>
    %147 = arith.addf %146, %145 : vector<2x64xf32>
    %148 = arith.divf %146, %147 : vector<2x64xf32>
    %149 = vector.extract_strided_slice %148 {offsets = [0, 0], sizes = [2, 16], strides = [1, 1]} : vector<2x64xf32> to vector<2x16xf32>
    %150 = vector.extract_strided_slice %148 {offsets = [0, 16], sizes = [2, 16], strides = [1, 1]} : vector<2x64xf32> to vector<2x16xf32>
    %151 = vector.extract_strided_slice %148 {offsets = [0, 48], sizes = [2, 16], strides = [1, 1]} : vector<2x64xf32> to vector<2x16xf32>
    %152 = vector.extract_strided_slice %143 {offsets = [0, 32], sizes = [2, 16], strides = [1, 1]} : vector<2x64xf32> to vector<2x16xf32>
    %153 = math.tanh %152 : vector<2x16xf32>
    %154 = arith.mulf %150, %118 : vector<2x16xf32>
    %155 = arith.mulf %149, %153 : vector<2x16xf32>
    %156 = arith.addf %154, %155 : vector<2x16xf32>
    %157 = math.tanh %156 : vector<2x16xf32>
    %158 = arith.mulf %151, %157 : vector<2x16xf32>
    %159 = vector.extract_strided_slice %36 {offsets = [0, 192], sizes = [2, 64], strides = [1, 1]} : vector<2x512xf32> to vector<2x64xf32>
    %cst_36 = arith.constant dense<0.000000e+00> : vector<2x64xf32>
    %160 = tpu.matmul %138, %38, %cst_36 {dimension_numbers = #tpu.dot_dimension_numbers<[1], [0], [0], [1], [0, 0, 1, 1], [], []>} : vector<2x16xf32>, vector<16x64xf32>, vector<2x64xf32> -> vector<2x64xf32>
    %161 = arith.addf %159, %160 : vector<2x64xf32>
    %162 = arith.negf %161 : vector<2x64xf32>
    %163 = math.exp %162 : vector<2x64xf32>
    %cst_37 = arith.constant 1.000000e+00 : f32
    %164 = vector.broadcast %cst_37 : f32 to vector<2x64xf32>
    %165 = arith.addf %164, %163 : vector<2x64xf32>
    %166 = arith.divf %164, %165 : vector<2x64xf32>
    %167 = vector.extract_strided_slice %166 {offsets = [0, 0], sizes = [2, 16], strides = [1, 1]} : vector<2x64xf32> to vector<2x16xf32>
    %168 = vector.extract_strided_slice %166 {offsets = [0, 16], sizes = [2, 16], strides = [1, 1]} : vector<2x64xf32> to vector<2x16xf32>
    %169 = vector.extract_strided_slice %166 {offsets = [0, 48], sizes = [2, 16], strides = [1, 1]} : vector<2x64xf32> to vector<2x16xf32>
    %170 = vector.extract_strided_slice %161 {offsets = [0, 32], sizes = [2, 16], strides = [1, 1]} : vector<2x64xf32> to vector<2x16xf32>
    %171 = math.tanh %170 : vector<2x16xf32>
    %172 = arith.mulf %168, %136 : vector<2x16xf32>
    %173 = arith.mulf %167, %171 : vector<2x16xf32>
    %174 = arith.addf %172, %173 : vector<2x16xf32>
    %175 = math.tanh %174 : vector<2x16xf32>
    %176 = arith.mulf %169, %175 : vector<2x16xf32>
    %cst_38 = arith.constant dense<0.000000e+00> : vector<2x64xf32>
    %177 = tpu.matmul %176, %39, %cst_38 {dimension_numbers = #tpu.dot_dimension_numbers<[1], [0], [0], [1], [0, 0, 1, 1], [], []>} : vector<2x16xf32>, vector<16x64xf32>, vector<2x64xf32> -> vector<2x64xf32>
    %cst_39 = arith.constant dense<0.000000e+00> : vector<2x64xf32>
    %178 = tpu.matmul %158, %40, %cst_39 {dimension_numbers = #tpu.dot_dimension_numbers<[1], [0], [0], [1], [0, 0, 1, 1], [], []>} : vector<2x16xf32>, vector<16x64xf32>, vector<2x64xf32> -> vector<2x64xf32>
    %179 = arith.addf %177, %178 : vector<2x64xf32>
    %180 = vector.broadcast %3 : vector<1x64xf32> to vector<2x64xf32>
    %181 = arith.addf %179, %180 : vector<2x64xf32>
    %182 = arith.negf %181 : vector<2x64xf32>
    %183 = math.exp %182 : vector<2x64xf32>
    %cst_40 = arith.constant 1.000000e+00 : f32
    %184 = vector.broadcast %cst_40 : f32 to vector<2x64xf32>
    %185 = arith.addf %184, %183 : vector<2x64xf32>
    %186 = arith.divf %184, %185 : vector<2x64xf32>
    %187 = vector.extract_strided_slice %186 {offsets = [0, 0], sizes = [2, 16], strides = [1, 1]} : vector<2x64xf32> to vector<2x16xf32>
    %188 = vector.extract_strided_slice %186 {offsets = [0, 16], sizes = [2, 16], strides = [1, 1]} : vector<2x64xf32> to vector<2x16xf32>
    %189 = vector.extract_strided_slice %186 {offsets = [0, 48], sizes = [2, 16], strides = [1, 1]} : vector<2x64xf32> to vector<2x16xf32>
    %190 = vector.extract_strided_slice %181 {offsets = [0, 32], sizes = [2, 16], strides = [1, 1]} : vector<2x64xf32> to vector<2x16xf32>
    %191 = math.tanh %190 : vector<2x16xf32>
    %192 = arith.mulf %188, %156 : vector<2x16xf32>
    %193 = arith.mulf %187, %191 : vector<2x16xf32>
    %194 = arith.addf %192, %193 : vector<2x16xf32>
    %195 = math.tanh %194 : vector<2x16xf32>
    %196 = arith.mulf %189, %195 : vector<2x16xf32>
    %197 = vector.extract_strided_slice %36 {offsets = [0, 256], sizes = [2, 64], strides = [1, 1]} : vector<2x512xf32> to vector<2x64xf32>
    %cst_41 = arith.constant dense<0.000000e+00> : vector<2x64xf32>
    %198 = tpu.matmul %176, %38, %cst_41 {dimension_numbers = #tpu.dot_dimension_numbers<[1], [0], [0], [1], [0, 0, 1, 1], [], []>} : vector<2x16xf32>, vector<16x64xf32>, vector<2x64xf32> -> vector<2x64xf32>
    %199 = arith.addf %197, %198 : vector<2x64xf32>
    %200 = arith.negf %199 : vector<2x64xf32>
    %201 = math.exp %200 : vector<2x64xf32>
    %cst_42 = arith.constant 1.000000e+00 : f32
    %202 = vector.broadcast %cst_42 : f32 to vector<2x64xf32>
    %203 = arith.addf %202, %201 : vector<2x64xf32>
    %204 = arith.divf %202, %203 : vector<2x64xf32>
    %205 = vector.extract_strided_slice %204 {offsets = [0, 0], sizes = [2, 16], strides = [1, 1]} : vector<2x64xf32> to vector<2x16xf32>
    %206 = vector.extract_strided_slice %204 {offsets = [0, 16], sizes = [2, 16], strides = [1, 1]} : vector<2x64xf32> to vector<2x16xf32>
    %207 = vector.extract_strided_slice %204 {offsets = [0, 48], sizes = [2, 16], strides = [1, 1]} : vector<2x64xf32> to vector<2x16xf32>
    %208 = vector.extract_strided_slice %199 {offsets = [0, 32], sizes = [2, 16], strides = [1, 1]} : vector<2x64xf32> to vector<2x16xf32>
    %209 = math.tanh %208 : vector<2x16xf32>
    %210 = arith.mulf %206, %174 : vector<2x16xf32>
    %211 = arith.mulf %205, %209 : vector<2x16xf32>
    %212 = arith.addf %210, %211 : vector<2x16xf32>
    %213 = math.tanh %212 : vector<2x16xf32>
    %214 = arith.mulf %207, %213 : vector<2x16xf32>
    %cst_43 = arith.constant dense<0.000000e+00> : vector<2x64xf32>
    %215 = tpu.matmul %214, %39, %cst_43 {dimension_numbers = #tpu.dot_dimension_numbers<[1], [0], [0], [1], [0, 0, 1, 1], [], []>} : vector<2x16xf32>, vector<16x64xf32>, vector<2x64xf32> -> vector<2x64xf32>
    %cst_44 = arith.constant dense<0.000000e+00> : vector<2x64xf32>
    %216 = tpu.matmul %196, %40, %cst_44 {dimension_numbers = #tpu.dot_dimension_numbers<[1], [0], [0], [1], [0, 0, 1, 1], [], []>} : vector<2x16xf32>, vector<16x64xf32>, vector<2x64xf32> -> vector<2x64xf32>
    %217 = arith.addf %215, %216 : vector<2x64xf32>
    %218 = vector.broadcast %3 : vector<1x64xf32> to vector<2x64xf32>
    %219 = arith.addf %217, %218 : vector<2x64xf32>
    %220 = arith.negf %219 : vector<2x64xf32>
    %221 = math.exp %220 : vector<2x64xf32>
    %cst_45 = arith.constant 1.000000e+00 : f32
    %222 = vector.broadcast %cst_45 : f32 to vector<2x64xf32>
    %223 = arith.addf %222, %221 : vector<2x64xf32>
    %224 = arith.divf %222, %223 : vector<2x64xf32>
    %225 = vector.extract_strided_slice %224 {offsets = [0, 0], sizes = [2, 16], strides = [1, 1]} : vector<2x64xf32> to vector<2x16xf32>
    %226 = vector.extract_strided_slice %224 {offsets = [0, 16], sizes = [2, 16], strides = [1, 1]} : vector<2x64xf32> to vector<2x16xf32>
    %227 = vector.extract_strided_slice %224 {offsets = [0, 48], sizes = [2, 16], strides = [1, 1]} : vector<2x64xf32> to vector<2x16xf32>
    %228 = vector.extract_strided_slice %219 {offsets = [0, 32], sizes = [2, 16], strides = [1, 1]} : vector<2x64xf32> to vector<2x16xf32>
    %229 = math.tanh %228 : vector<2x16xf32>
    %230 = arith.mulf %226, %194 : vector<2x16xf32>
    %231 = arith.mulf %225, %229 : vector<2x16xf32>
    %232 = arith.addf %230, %231 : vector<2x16xf32>
    %233 = math.tanh %232 : vector<2x16xf32>
    %234 = arith.mulf %227, %233 : vector<2x16xf32>
    %235 = vector.extract_strided_slice %36 {offsets = [0, 320], sizes = [2, 64], strides = [1, 1]} : vector<2x512xf32> to vector<2x64xf32>
    %cst_46 = arith.constant dense<0.000000e+00> : vector<2x64xf32>
    %236 = tpu.matmul %214, %38, %cst_46 {dimension_numbers = #tpu.dot_dimension_numbers<[1], [0], [0], [1], [0, 0, 1, 1], [], []>} : vector<2x16xf32>, vector<16x64xf32>, vector<2x64xf32> -> vector<2x64xf32>
    %237 = arith.addf %235, %236 : vector<2x64xf32>
    %238 = arith.negf %237 : vector<2x64xf32>
    %239 = math.exp %238 : vector<2x64xf32>
    %cst_47 = arith.constant 1.000000e+00 : f32
    %240 = vector.broadcast %cst_47 : f32 to vector<2x64xf32>
    %241 = arith.addf %240, %239 : vector<2x64xf32>
    %242 = arith.divf %240, %241 : vector<2x64xf32>
    %243 = vector.extract_strided_slice %242 {offsets = [0, 0], sizes = [2, 16], strides = [1, 1]} : vector<2x64xf32> to vector<2x16xf32>
    %244 = vector.extract_strided_slice %242 {offsets = [0, 16], sizes = [2, 16], strides = [1, 1]} : vector<2x64xf32> to vector<2x16xf32>
    %245 = vector.extract_strided_slice %242 {offsets = [0, 48], sizes = [2, 16], strides = [1, 1]} : vector<2x64xf32> to vector<2x16xf32>
    %246 = vector.extract_strided_slice %237 {offsets = [0, 32], sizes = [2, 16], strides = [1, 1]} : vector<2x64xf32> to vector<2x16xf32>
    %247 = math.tanh %246 : vector<2x16xf32>
    %248 = arith.mulf %244, %212 : vector<2x16xf32>
    %249 = arith.mulf %243, %247 : vector<2x16xf32>
    %250 = arith.addf %248, %249 : vector<2x16xf32>
    %251 = math.tanh %250 : vector<2x16xf32>
    %252 = arith.mulf %245, %251 : vector<2x16xf32>
    %cst_48 = arith.constant dense<0.000000e+00> : vector<2x64xf32>
    %253 = tpu.matmul %252, %39, %cst_48 {dimension_numbers = #tpu.dot_dimension_numbers<[1], [0], [0], [1], [0, 0, 1, 1], [], []>} : vector<2x16xf32>, vector<16x64xf32>, vector<2x64xf32> -> vector<2x64xf32>
    %cst_49 = arith.constant dense<0.000000e+00> : vector<2x64xf32>
    %254 = tpu.matmul %234, %40, %cst_49 {dimension_numbers = #tpu.dot_dimension_numbers<[1], [0], [0], [1], [0, 0, 1, 1], [], []>} : vector<2x16xf32>, vector<16x64xf32>, vector<2x64xf32> -> vector<2x64xf32>
    %255 = arith.addf %253, %254 : vector<2x64xf32>
    %256 = vector.broadcast %3 : vector<1x64xf32> to vector<2x64xf32>
    %257 = arith.addf %255, %256 : vector<2x64xf32>
    %258 = arith.negf %257 : vector<2x64xf32>
    %259 = math.exp %258 : vector<2x64xf32>
    %cst_50 = arith.constant 1.000000e+00 : f32
    %260 = vector.broadcast %cst_50 : f32 to vector<2x64xf32>
    %261 = arith.addf %260, %259 : vector<2x64xf32>
    %262 = arith.divf %260, %261 : vector<2x64xf32>
    %263 = vector.extract_strided_slice %262 {offsets = [0, 0], sizes = [2, 16], strides = [1, 1]} : vector<2x64xf32> to vector<2x16xf32>
    %264 = vector.extract_strided_slice %262 {offsets = [0, 16], sizes = [2, 16], strides = [1, 1]} : vector<2x64xf32> to vector<2x16xf32>
    %265 = vector.extract_strided_slice %262 {offsets = [0, 48], sizes = [2, 16], strides = [1, 1]} : vector<2x64xf32> to vector<2x16xf32>
    %266 = vector.extract_strided_slice %257 {offsets = [0, 32], sizes = [2, 16], strides = [1, 1]} : vector<2x64xf32> to vector<2x16xf32>
    %267 = math.tanh %266 : vector<2x16xf32>
    %268 = arith.mulf %264, %232 : vector<2x16xf32>
    %269 = arith.mulf %263, %267 : vector<2x16xf32>
    %270 = arith.addf %268, %269 : vector<2x16xf32>
    %271 = math.tanh %270 : vector<2x16xf32>
    %272 = arith.mulf %265, %271 : vector<2x16xf32>
    %273 = vector.extract_strided_slice %36 {offsets = [0, 384], sizes = [2, 64], strides = [1, 1]} : vector<2x512xf32> to vector<2x64xf32>
    %cst_51 = arith.constant dense<0.000000e+00> : vector<2x64xf32>
    %274 = tpu.matmul %252, %38, %cst_51 {dimension_numbers = #tpu.dot_dimension_numbers<[1], [0], [0], [1], [0, 0, 1, 1], [], []>} : vector<2x16xf32>, vector<16x64xf32>, vector<2x64xf32> -> vector<2x64xf32>
    %275 = arith.addf %273, %274 : vector<2x64xf32>
    %276 = arith.negf %275 : vector<2x64xf32>
    %277 = math.exp %276 : vector<2x64xf32>
    %cst_52 = arith.constant 1.000000e+00 : f32
    %278 = vector.broadcast %cst_52 : f32 to vector<2x64xf32>
    %279 = arith.addf %278, %277 : vector<2x64xf32>
    %280 = arith.divf %278, %279 : vector<2x64xf32>
    %281 = vector.extract_strided_slice %280 {offsets = [0, 0], sizes = [2, 16], strides = [1, 1]} : vector<2x64xf32> to vector<2x16xf32>
    %282 = vector.extract_strided_slice %280 {offsets = [0, 16], sizes = [2, 16], strides = [1, 1]} : vector<2x64xf32> to vector<2x16xf32>
    %283 = vector.extract_strided_slice %280 {offsets = [0, 48], sizes = [2, 16], strides = [1, 1]} : vector<2x64xf32> to vector<2x16xf32>
    %284 = vector.extract_strided_slice %275 {offsets = [0, 32], sizes = [2, 16], strides = [1, 1]} : vector<2x64xf32> to vector<2x16xf32>
    %285 = math.tanh %284 : vector<2x16xf32>
    %286 = arith.mulf %282, %250 : vector<2x16xf32>
    %287 = arith.mulf %281, %285 : vector<2x16xf32>
    %288 = arith.addf %286, %287 : vector<2x16xf32>
    %289 = math.tanh %288 : vector<2x16xf32>
    %290 = arith.mulf %283, %289 : vector<2x16xf32>
    %cst_53 = arith.constant dense<0.000000e+00> : vector<2x64xf32>
    %291 = tpu.matmul %290, %39, %cst_53 {dimension_numbers = #tpu.dot_dimension_numbers<[1], [0], [0], [1], [0, 0, 1, 1], [], []>} : vector<2x16xf32>, vector<16x64xf32>, vector<2x64xf32> -> vector<2x64xf32>
    %cst_54 = arith.constant dense<0.000000e+00> : vector<2x64xf32>
    %292 = tpu.matmul %272, %40, %cst_54 {dimension_numbers = #tpu.dot_dimension_numbers<[1], [0], [0], [1], [0, 0, 1, 1], [], []>} : vector<2x16xf32>, vector<16x64xf32>, vector<2x64xf32> -> vector<2x64xf32>
    %293 = arith.addf %291, %292 : vector<2x64xf32>
    %294 = vector.broadcast %3 : vector<1x64xf32> to vector<2x64xf32>
    %295 = arith.addf %293, %294 : vector<2x64xf32>
    %296 = arith.negf %295 : vector<2x64xf32>
    %297 = math.exp %296 : vector<2x64xf32>
    %cst_55 = arith.constant 1.000000e+00 : f32
    %298 = vector.broadcast %cst_55 : f32 to vector<2x64xf32>
    %299 = arith.addf %298, %297 : vector<2x64xf32>
    %300 = arith.divf %298, %299 : vector<2x64xf32>
    %301 = vector.extract_strided_slice %300 {offsets = [0, 0], sizes = [2, 16], strides = [1, 1]} : vector<2x64xf32> to vector<2x16xf32>
    %302 = vector.extract_strided_slice %300 {offsets = [0, 16], sizes = [2, 16], strides = [1, 1]} : vector<2x64xf32> to vector<2x16xf32>
    %303 = vector.extract_strided_slice %300 {offsets = [0, 48], sizes = [2, 16], strides = [1, 1]} : vector<2x64xf32> to vector<2x16xf32>
    %304 = vector.extract_strided_slice %295 {offsets = [0, 32], sizes = [2, 16], strides = [1, 1]} : vector<2x64xf32> to vector<2x16xf32>
    %305 = math.tanh %304 : vector<2x16xf32>
    %306 = arith.mulf %302, %270 : vector<2x16xf32>
    %307 = arith.mulf %301, %305 : vector<2x16xf32>
    %308 = arith.addf %306, %307 : vector<2x16xf32>
    %309 = math.tanh %308 : vector<2x16xf32>
    %310 = arith.mulf %303, %309 : vector<2x16xf32>
    %311 = vector.extract_strided_slice %36 {offsets = [0, 448], sizes = [2, 64], strides = [1, 1]} : vector<2x512xf32> to vector<2x64xf32>
    %cst_56 = arith.constant dense<0.000000e+00> : vector<2x64xf32>
    %312 = tpu.matmul %290, %38, %cst_56 {dimension_numbers = #tpu.dot_dimension_numbers<[1], [0], [0], [1], [0, 0, 1, 1], [], []>} : vector<2x16xf32>, vector<16x64xf32>, vector<2x64xf32> -> vector<2x64xf32>
    %313 = arith.addf %311, %312 : vector<2x64xf32>
    %314 = arith.negf %313 : vector<2x64xf32>
    %315 = math.exp %314 : vector<2x64xf32>
    %cst_57 = arith.constant 1.000000e+00 : f32
    %316 = vector.broadcast %cst_57 : f32 to vector<2x64xf32>
    %317 = arith.addf %316, %315 : vector<2x64xf32>
    %318 = arith.divf %316, %317 : vector<2x64xf32>
    %319 = vector.extract_strided_slice %318 {offsets = [0, 0], sizes = [2, 16], strides = [1, 1]} : vector<2x64xf32> to vector<2x16xf32>
    %320 = vector.extract_strided_slice %318 {offsets = [0, 16], sizes = [2, 16], strides = [1, 1]} : vector<2x64xf32> to vector<2x16xf32>
    %321 = vector.extract_strided_slice %318 {offsets = [0, 48], sizes = [2, 16], strides = [1, 1]} : vector<2x64xf32> to vector<2x16xf32>
    %322 = vector.extract_strided_slice %313 {offsets = [0, 32], sizes = [2, 16], strides = [1, 1]} : vector<2x64xf32> to vector<2x16xf32>
    %323 = math.tanh %322 : vector<2x16xf32>
    %324 = arith.mulf %320, %288 : vector<2x16xf32>
    %325 = arith.mulf %319, %323 : vector<2x16xf32>
    %326 = arith.addf %324, %325 : vector<2x16xf32>
    %327 = math.tanh %326 : vector<2x16xf32>
    %328 = arith.mulf %321, %327 : vector<2x16xf32>
    %cst_58 = arith.constant dense<0.000000e+00> : vector<2x64xf32>
    %329 = tpu.matmul %328, %39, %cst_58 {dimension_numbers = #tpu.dot_dimension_numbers<[1], [0], [0], [1], [0, 0, 1, 1], [], []>} : vector<2x16xf32>, vector<16x64xf32>, vector<2x64xf32> -> vector<2x64xf32>
    %cst_59 = arith.constant dense<0.000000e+00> : vector<2x64xf32>
    %330 = tpu.matmul %310, %40, %cst_59 {dimension_numbers = #tpu.dot_dimension_numbers<[1], [0], [0], [1], [0, 0, 1, 1], [], []>} : vector<2x16xf32>, vector<16x64xf32>, vector<2x64xf32> -> vector<2x64xf32>
    %331 = arith.addf %329, %330 : vector<2x64xf32>
    %332 = vector.broadcast %3 : vector<1x64xf32> to vector<2x64xf32>
    %333 = arith.addf %331, %332 : vector<2x64xf32>
    %334 = arith.negf %333 : vector<2x64xf32>
    %335 = math.exp %334 : vector<2x64xf32>
    %cst_60 = arith.constant 1.000000e+00 : f32
    %336 = vector.broadcast %cst_60 : f32 to vector<2x64xf32>
    %337 = arith.addf %336, %335 : vector<2x64xf32>
    %338 = arith.divf %336, %337 : vector<2x64xf32>
    %339 = vector.extract_strided_slice %338 {offsets = [0, 0], sizes = [2, 16], strides = [1, 1]} : vector<2x64xf32> to vector<2x16xf32>
    %340 = vector.extract_strided_slice %338 {offsets = [0, 16], sizes = [2, 16], strides = [1, 1]} : vector<2x64xf32> to vector<2x16xf32>
    %341 = vector.extract_strided_slice %338 {offsets = [0, 48], sizes = [2, 16], strides = [1, 1]} : vector<2x64xf32> to vector<2x16xf32>
    %342 = vector.extract_strided_slice %333 {offsets = [0, 32], sizes = [2, 16], strides = [1, 1]} : vector<2x64xf32> to vector<2x16xf32>
    %343 = math.tanh %342 : vector<2x16xf32>
    %344 = arith.mulf %340, %308 : vector<2x16xf32>
    %345 = arith.mulf %339, %343 : vector<2x16xf32>
    %346 = arith.addf %344, %345 : vector<2x16xf32>
    %347 = math.tanh %346 : vector<2x16xf32>
    %348 = arith.mulf %341, %347 : vector<2x16xf32>
    %c0_61 = arith.constant 0 : index
    %c0_62 = arith.constant 0 : index
    %349 = vector.load %arg6[%c0_61, %c0_62] : memref<16x128xf32, #tpu.memory_space<vmem>>, vector<16x128xf32>
    %cst_63 = arith.constant dense<0.000000e+00> : vector<2x128xf32>
    %350 = tpu.matmul %348, %349, %cst_63 {dimension_numbers = #tpu.dot_dimension_numbers<[1], [0], [0], [1], [0, 0, 1, 1], [], []>} : vector<2x16xf32>, vector<16x128xf32>, vector<2x128xf32> -> vector<2x128xf32>
    %351 = vector.broadcast %4 : vector<1x128xf32> to vector<2x128xf32>
    %352 = arith.addf %350, %351 : vector<2x128xf32>
    %c0_64 = arith.constant 0 : index
    %c0_65 = arith.constant 0 : index
    %353 = vector.load %arg8[%c0_64, %c0_65] : memref<2x128xf32, #tpu.memory_space<vmem>>, vector<2x128xf32>
    tpu.vector_store %arg8[%c0_64, %c0_65], %352 {strides = array<i32>} : memref<2x128xf32, #tpu.memory_space<vmem>>, vector<2x128xf32>,
    return
  }
}

</mosaic_0001>

<llo_original>
// kernel: cnn_lstm_forward.1
$region0: #{cnn_lstm_forward.1}
  #allocation0 [shape = 'u32[]', space=smem, size = 0x4, offset = 0x4, fixed_abs, tag = 'smem constant byte address 0x4 - core index']
  #allocation1 [shape = 'u32[144,128]{1,0:T(1,128)}', space=vmem, size = 0x12000, scoped, tag = 'internal scratch']
  %s0 = inlined_call_operand.vmem [shape: f32[8,36], index: 0, kind: input, shape index: {}]
  %s1 = inlined_call_operand.hbm [shape: f32[36,64], index: 1, kind: input, shape index: {}]
  %s2 = inlined_call_operand.vmem [shape: f32[64,256], index: 2, kind: input, shape index: {}]
  %s3 = inlined_call_operand.vmem [shape: f32[64,512], index: 3, kind: input, shape index: {}]
  %s4 = inlined_call_operand.hbm [shape: f32[1,512], index: 4, kind: input, shape index: {}]
  %s5 = inlined_call_operand.vmem [shape: f32[48,64], index: 5, kind: input, shape index: {}]
  %s6 = inlined_call_operand.vmem [shape: f32[16,128], index: 6, kind: input, shape index: {}]
  %s7 = inlined_call_operand.hbm [shape: f32[4,128], index: 7, kind: input, shape index: {}]
  %s8 = inlined_call_operand.hbm [shape: f32[2,128], index: 8, kind: output, shape index: {}]
  %s9 = sld [smem:[#allocation0]]
  $region54: #{cnn_lstm_forward.1} parent=0
    _
  %s11 = ssub.s32 1, %s9
  %s12 = scalar_select 0, %s11, %s9
  $region1: #{cnn_lstm_forward.1} parent=0
    #allocation2 [shape = 'u8[20480]{0}', space=vmem, size = 0x5000, scoped, tag = 'input window, operand 1, single buffered']
    #allocation3 [shape = 's32[1]{0}', space=sflag, size = 0x4, scoped, tag = 'scoped memory for cnn_lstm_forward.1']
    #allocation4 [shape = 's32[1]{0}', space=sflag, size = 0x4, scoped, tag = 'scoped memory for cnn_lstm_forward.1']
    #allocation5 [shape = 'u8[2048]{0}', space=vmem, size = 0x800, scoped, tag = 'input window, operand 4, single buffered']
    #allocation6 [shape = 's32[1]{0}', space=sflag, size = 0x4, scoped, tag = 'scoped memory for cnn_lstm_forward.1']
    #allocation7 [shape = 'u8[2048]{0}', space=vmem, size = 0x800, scoped, tag = 'input window, operand 7, single buffered']
    #allocation8 [shape = 'u8[1024]{0}', space=vmem, size = 0x400, scoped, tag = 'output window, operand 0, single buffered']
    %13 = vsyncpa [#allocation3], 0
    %14 = vsyncpa [#allocation6], 0
    %15 = vsyncpa [#allocation4], 0
    // Predicated region
    $region2: #{cnn_lstm_forward.1} parent=1 // pred_check
      _
    $region3: #{cnn_lstm_forward.1} parent=1 // pred_check_branch
      %17 = sbr.rel (0) target = $region5
    $region4: #{cnn_lstm_forward.1} parent=1 // pred_region
      _
    $region5: #{cnn_lstm_forward.1} parent=1 // pred_fallthru
      _
    // Predicated region
    $region6: #{cnn_lstm_forward.1} parent=1 // pred_check
      _
    $region7: #{cnn_lstm_forward.1} parent=1 // pred_check_branch
      %19 = sbr.rel (0) target = $region9
    $region8: #{cnn_lstm_forward.1} parent=1 // pred_region
      %s21 = ssub.s32 640, 640
      %22 = vsyncadd [#allocation3], %s21
      %s23 = sshll.u32 [#allocation2], 4
      %s24 = int_to_ptr.vmem [resolvable:$true] %s23
      %29 = dma.hbm_to_vmem [thread:$0]  %s1, 640, %s24, [#allocation3], 128, 128, 8
    $region9: #{cnn_lstm_forward.1} parent=1 // pred_fallthru
      _
    // Predicated region
    $region10: #{cnn_lstm_forward.1} parent=1 // pred_check
      _
    $region11: #{cnn_lstm_forward.1} parent=1 // pred_check_branch
      %31 = sbr.rel (0) target = $region13
    $region12: #{cnn_lstm_forward.1} parent=1 // pred_region
      _
    $region13: #{cnn_lstm_forward.1} parent=1 // pred_fallthru
      _
    // Predicated region
    $region14: #{cnn_lstm_forward.1} parent=1 // pred_check
      _
    $region15: #{cnn_lstm_forward.1} parent=1 // pred_check_branch
      %33 = sbr.rel (0) target = $region17
    $region16: #{cnn_lstm_forward.1} parent=1 // pred_region
      _
    $region17: #{cnn_lstm_forward.1} parent=1 // pred_fallthru
      _
    // Predicated region
    $region18: #{cnn_lstm_forward.1} parent=1 // pred_check
      _
    $region19: #{cnn_lstm_forward.1} parent=1 // pred_check_branch
      %35 = sbr.rel (0) target = $region21
    $region20: #{cnn_lstm_forward.1} parent=1 // pred_region
      %s37 = ssub.s32 64, 64
      %38 = vsyncadd [#allocation6], %s37
      %s40 = sshll.u32 [#allocation5], 4
      %s41 = int_to_ptr.vmem [resolvable:$true] %s40
      %43 = dma.hbm_to_vmem [thread:$0]  %s4, 64, %s41, [#allocation6]
    $region21: #{cnn_lstm_forward.1} parent=1 // pred_fallthru
      _
    // Predicated region
    $region22: #{cnn_lstm_forward.1} parent=1 // pred_check
      _
    $region23: #{cnn_lstm_forward.1} parent=1 // pred_check_branch
      %45 = sbr.rel (0) target = $region25
    $region24: #{cnn_lstm_forward.1} parent=1 // pred_region
      _
    $region25: #{cnn_lstm_forward.1} parent=1 // pred_fallthru
      _
    // Predicated region
    $region26: #{cnn_lstm_forward.1} parent=1 // pred_check
      _
    $region27: #{cnn_lstm_forward.1} parent=1 // pred_check_branch
      %47 = sbr.rel (0) target = $region29
    $region28: #{cnn_lstm_forward.1} parent=1 // pred_region
      _
    $region29: #{cnn_lstm_forward.1} parent=1 // pred_fallthru
      _
    // Predicated region
    $region30: #{cnn_lstm_forward.1} parent=1 // pred_check
      _
    $region31: #{cnn_lstm_forward.1} parent=1 // pred_check_branch
      %49 = sbr.rel (0) target = $region33
    $region32: #{cnn_lstm_forward.1} parent=1 // pred_region
      %s51 = ssub.s32 64, 64
      %52 = vsyncadd [#allocation6], %s51
      %s54 = sshll.u32 [#allocation7], 4
      %s55 = int_to_ptr.vmem [resolvable:$true] %s54
      %57 = dma.hbm_to_vmem [thread:$0]  %s7, 64, %s55, [#allocation6]
    $region33: #{cnn_lstm_forward.1} parent=1 // pred_fallthru
      _
    // Predicated region
    $region34: #{cnn_lstm_forward.1} parent=1 // pred_check
      _
    $region35: #{cnn_lstm_forward.1} parent=1 // pred_check_branch
      %59 = sbr.rel (0) target = $region37
    $region36: #{cnn_lstm_forward.1} parent=1 // pred_region
      %60 = dma.done [#allocation3], 640
    $region37: #{cnn_lstm_forward.1} parent=1 // pred_fallthru
      _
    // Predicated region
    $region38: #{cnn_lstm_forward.1} parent=1 // pred_check
      _
    $region39: #{cnn_lstm_forward.1} parent=1 // pred_check_branch
      %62 = sbr.rel (0) target = $region41
    $region40: #{cnn_lstm_forward.1} parent=1 // pred_region
      %63 = dma.done [#allocation6], 64
    $region41: #{cnn_lstm_forward.1} parent=1 // pred_fallthru
      _
    // Predicated region
    $region42: #{cnn_lstm_forward.1} parent=1 // pred_check
      _
    $region43: #{cnn_lstm_forward.1} parent=1 // pred_check_branch
      %65 = sbr.rel (0) target = $region45
    $region44: #{cnn_lstm_forward.1} parent=1 // pred_region
      %66 = dma.done [#allocation6], 64
    $region45: #{cnn_lstm_forward.1} parent=1 // pred_fallthru
      _
    %v67 = vld [vmem:[#allocation7] sm:$0xf]
    %v68 = vld [vmem:[%s0] sm:$0xff]
    %v69 = vld [vmem:[#allocation2] sm:$0xff]
    %v70 = vld [vmem:[#allocation2 + $0x8] sm:$0xff]
    %v71 = vld [vmem:[#allocation2 + $0x10] sm:$0xff]
    %v72 = vld [vmem:[#allocation2 + $0x18] sm:$0xff]
    %v73 = vld [vmem:[#allocation2 + $0x20] sm:$0xf]
    %vm74 = vcmask 293888
    %v76 = vsel %vm74, %v68, 0
    %vm78 = vcmask 1043456
    %v80 = vsel %vm78, %v73, 0
    %82 = vmatprep.subr.mxu0 0.0
    %83 = vmatpush1.msra.mxu0 %v69
    %84 = vmatprep.subr.mxu0 0.0
    %85 = vmatpush1.msra.mxu0 %v70
    %86 = vmatprep.subr.mxu0 0.0
    %87 = vmatpush1.msra.mxu0 %v71
    %88 = vmatprep.subr.mxu0 0.0
    %89 = vmatpush1.msra.mxu0 %v72
    %90 = vmatprep.subr.mxu0 0.0
    %91 = vmatpush1.msra.mxu0 %v80
    %92 = vmatprep.subr.mxu0 0.0
    %93 = vmatpush1.msra.mxu0 0.0
    %94 = vmatprep.subr.mxu0 0.0
    %95 = vmatpush1.msra.mxu0 0.0
    %96 = vmatprep.subr.mxu0 0.0
    %97 = vmatpush1.msra.mxu0 0.0
    %98 = vmatprep.subr.mxu0 0.0
    %99 = vmatpush1.msra.mxu0 0.0
    %100 = vmatprep.subr.mxu0 0.0
    %101 = vmatpush1.msra.mxu0 0.0
    %102 = vmatprep.subr.mxu0 0.0
    %103 = vmatpush1.msra.mxu0 0.0
    %104 = vmatprep.subr.mxu0 0.0
    %105 = vmatpush1.msra.mxu0 0.0
    %106 = vmatprep.subr.mxu0 0.0
    %107 = vmatpush1.msra.mxu0 0.0
    %108 = vmatprep.subr.mxu0 0.0
    %109 = vmatpush1.msra.mxu0 0.0
    %110 = vmatprep.subr.mxu0 0.0
    %111 = vmatpush1.msra.mxu0 0.0
    %112 = vmatprep.subr.mxu0 0.0
    %113 = vmatpush1.msra.mxu0 0.0
    %114 = vmatprep.subr.mxu0 0.0
    %115 = vmatpush1.msra.mxu0 0.0
    %116 = vmatprep.subr.mxu0 0.0
    %117 = vmatpush1.msra.mxu0 0.0
    %118 = vmatprep.subr.mxu0 0.0
    %119 = vmatpush1.msra.mxu0 0.0
    %120 = vmatprep.subr.mxu0 0.0
    %121 = vmatpush1.msra.mxu0 0.0
    %122 = vmatprep.subr.mxu0 0.0
    %123 = vmatpush1.msra.mxu0 0.0
    %124 = vmatprep.subr.mxu0 0.0
    %125 = vmatpush1.msra.mxu0 0.0
    %126 = vmatprep.subr.mxu0 0.0
    %127 = vmatpush1.msra.mxu0 0.0
    %128 = vmatprep.subr.mxu0 0.0
    %129 = vmatpush1.msra.mxu0 0.0
    %130 = vmatprep.subr.mxu0 0.0
    %131 = vmatpush1.msra.mxu0 0.0
    %132 = vmatprep.subr.mxu0 0.0
    %133 = vmatpush1.msra.mxu0 0.0
    %134 = vmatprep.subr.mxu0 0.0
    %135 = vmatpush1.msra.mxu0 0.0
    %136 = vmatprep.subr.mxu0 0.0
    %137 = vmatpush1.msra.mxu0 0.0
    %138 = vmatprep.subr.mxu0 0.0
    %139 = vmatpush1.msra.mxu0 0.0
    %140 = vmatprep.subr.mxu0 0.0
    %141 = vmatpush1.msra.mxu0 0.0
    %142 = vmatprep.subr.mxu0 0.0
    %143 = vmatpush1.msra.mxu0 0.0
    %144 = vmatprep.subr.mxu0 0.0
    %145 = vmatpush1.msra.mxu0 0.0
    %146 = vmatprep.mubr.f32.mxu0 0.0
    %147 = vmatmul.mubr.f32.gmra.mrb[0].mxu0 %v76
    %v148 = vpop.f32.mrb[0].mxu0
    %v149 = vadd.f32 0.0, %v148
    %v150 = vpop.f32.mrb[0].mxu0
    %151 = vdwg.mxu0
    %v153 = vrot.slane %v149, 2
    %v155 = vmax.f32 %v149, %v153
    %v157 = vrot.slane %v155, 4
    %v159 = vmax.f32 %v155, %v157
    %v160 = vlaneseq
    %v161 = vshrl.u32 %v160, 7
    %v162 = vsub.s32 0, %v161
    %v163 = vrot.slane %v67, %v162
    %v164 = vadd.f32 %v159, %v163
    %v165 = vmax.f32 %v164, 0.0
    %v166 = vld [vmem:[%s2] sm:$0xff]
    %v167 = vld [vmem:[%s2 + $0x8] sm:$0xff]
    %v168 = vld [vmem:[%s2 + $0x10] sm:$0xff]
    %v169 = vld [vmem:[%s2 + $0x18] sm:$0xff]
    %v170 = vld [vmem:[%s2 + $0x20] sm:$0xff]
    %v171 = vld [vmem:[%s2 + $0x28] sm:$0xff]
    %v172 = vld [vmem:[%s2 + $0x30] sm:$0xff]
    %v173 = vld [vmem:[%s2 + $0x38] sm:$0xff]
    %v174 = vld [vmem:[%s2 + $0x40] sm:$0xff]
    %v175 = vld [vmem:[%s2 + $0x48] sm:$0xff]
    %v176 = vld [vmem:[%s2 + $0x50] sm:$0xff]
    %v177 = vld [vmem:[%s2 + $0x58] sm:$0xff]
    %v178 = vld [vmem:[%s2 + $0x60] sm:$0xff]
    %v179 = vld [vmem:[%s2 + $0x68] sm:$0xff]
    %v180 = vld [vmem:[%s2 + $0x70] sm:$0xff]
    %v181 = vld [vmem:[%s2 + $0x78] sm:$0xff]
    %vm182 = vcmask 523264
    %v184 = vsel %vm182, %v165, 0
    %186 = vmatprep.subr.mxu0 %v167
    %187 = vmatpush1.msra.mxu0 %v166
    %188 = vmatprep.subr.mxu0 %v169
    %189 = vmatpush1.msra.mxu0 %v168
    %190 = vmatprep.subr.mxu0 %v171
    %191 = vmatpush1.msra.mxu0 %v170
    %192 = vmatprep.subr.mxu0 %v173
    %193 = vmatpush1.msra.mxu0 %v172
    %194 = vmatprep.subr.mxu0 %v175
    %195 = vmatpush1.msra.mxu0 %v174
    %196 = vmatprep.subr.mxu0 %v177
    %197 = vmatpush1.msra.mxu0 %v176
    %198 = vmatprep.subr.mxu0 %v179
    %199 = vmatpush1.msra.mxu0 %v178
    %200 = vmatprep.subr.mxu0 %v181
    %201 = vmatpush1.msra.mxu0 %v180
    %202 = vmatprep.subr.mxu0 0.0
    %203 = vmatpush1.msra.mxu0 0.0
    %204 = vmatprep.subr.mxu0 0.0
    %205 = vmatpush1.msra.mxu0 0.0
    %206 = vmatprep.subr.mxu0 0.0
    %207 = vmatpush1.msra.mxu0 0.0
    %208 = vmatprep.subr.mxu0 0.0
    %209 = vmatpush1.msra.mxu0 0.0
    %210 = vmatprep.subr.mxu0 0.0
    %211 = vmatpush1.msra.mxu0 0.0
    %212 = vmatprep.subr.mxu0 0.0
    %213 = vmatpush1.msra.mxu0 0.0
    %214 = vmatprep.subr.mxu0 0.0
    %215 = vmatpush1.msra.mxu0 0.0
    %216 = vmatprep.subr.mxu0 0.0
    %217 = vmatpush1.msra.mxu0 0.0
    %218 = vmatprep.subr.mxu0 0.0
    %219 = vmatpush1.msra.mxu0 0.0
    %220 = vmatprep.subr.mxu0 0.0
    %221 = vmatpush1.msra.mxu0 0.0
    %222 = vmatprep.subr.mxu0 0.0
    %223 = vmatpush1.msra.mxu0 0.0
    %224 = vmatprep.subr.mxu0 0.0
    %225 = vmatpush1.msra.mxu0 0.0
    %226 = vmatprep.subr.mxu0 0.0
    %227 = vmatpush1.msra.mxu0 0.0
    %228 = vmatprep.subr.mxu0 0.0
    %229 = vmatpush1.msra.mxu0 0.0
    %230 = vmatprep.subr.mxu0 0.0
    %231 = vmatpush1.msra.mxu0 0.0
    %232 = vmatprep.subr.mxu0 0.0
    %233 = vmatpush1.msra.mxu0 0.0
    %234 = vmatprep.subr.mxu0 0.0
    %235 = vmatpush1.msra.mxu0 0.0
    %236 = vmatprep.subr.mxu0 0.0
    %237 = vmatpush1.msra.mxu0 0.0
    %238 = vmatprep.subr.mxu0 0.0
    %239 = vmatpush1.msra.mxu0 0.0
    %240 = vmatprep.subr.mxu0 0.0
    %241 = vmatpush1.msra.mxu0 0.0
    %242 = vmatprep.subr.mxu0 0.0
    %243 = vmatpush1.msra.mxu0 0.0
    %244 = vmatprep.subr.mxu0 0.0
    %245 = vmatpush1.msra.mxu0 0.0
    %246 = vmatprep.subr.mxu0 0.0
    %247 = vmatpush1.msra.mxu0 0.0
    %248 = vmatprep.subr.mxu0 0.0
    %249 = vmatpush1.msra.mxu0 0.0
    %250 = vmatprep.mubr.f32.mxu0 0.0
    %251 = vmatmul.mubr.f32.gmra.mrb[0].mxu0 %v184
    %v252 = vpop.f32.mrb[0].mxu0
    %v253 = vadd.f32 0.0, %v252
    %v254 = vpop.f32.mrb[0].mxu0
    %v255 = vadd.f32 0.0, %v254
    %256 = vdwg.mxu0
    %258 = vrot.lane.b32.xlu0 %v253, 64
    %v259 = vpop.permute.xlu0 %258
    %v261 = vmax.f32 %v253, %v259
    %263 = vrot.lane.b32.xlu0 %v255, 64
    %v264 = vpop.permute.xlu0 %263
    %v266 = vmax.f32 %v255, %v264
    %v267 = vmax.f32 %v261, %v266
    %v268 = vlaneseq
    %v269 = vshrl.u32 %v268, 7
    %v270 = vsub.s32 1, %v269
    %v271 = vrot.slane %v67, %v270
    %v272 = vadd.f32 %v267, %v271
    %v273 = vmax.f32 %v272, 0.0
    %v274 = vld [vmem:[%s3] sm:$0xff]
    %v275 = vld [vmem:[%s3 + $0x8] sm:$0xff]
    %v276 = vld [vmem:[%s3 + $0x10] sm:$0xff]
    %v277 = vld [vmem:[%s3 + $0x18] sm:$0xff]
    %v278 = vld [vmem:[%s3 + $0x20] sm:$0xff]
    %v279 = vld [vmem:[%s3 + $0x28] sm:$0xff]
    %v280 = vld [vmem:[%s3 + $0x30] sm:$0xff]
    %v281 = vld [vmem:[%s3 + $0x38] sm:$0xff]
    %v282 = vld [vmem:[%s3 + $0x40] sm:$0xff]
    %v283 = vld [vmem:[%s3 + $0x48] sm:$0xff]
    %v284 = vld [vmem:[%s3 + $0x50] sm:$0xff]
    %v285 = vld [vmem:[%s3 + $0x58] sm:$0xff]
    %v286 = vld [vmem:[%s3 + $0x60] sm:$0xff]
    %v287 = vld [vmem:[%s3 + $0x68] sm:$0xff]
    %v288 = vld [vmem:[%s3 + $0x70] sm:$0xff]
    %v289 = vld [vmem:[%s3 + $0x78] sm:$0xff]
    %v290 = vld [vmem:[%s3 + $0x80] sm:$0xff]
    %v291 = vld [vmem:[%s3 + $0x88] sm:$0xff]
    %v292 = vld [vmem:[%s3 + $0x90] sm:$0xff]
    %v293 = vld [vmem:[%s3 + $0x98] sm:$0xff]
    %v294 = vld [vmem:[%s3 + $0xa0] sm:$0xff]
    %v295 = vld [vmem:[%s3 + $0xa8] sm:$0xff]
    %v296 = vld [vmem:[%s3 + $0xb0] sm:$0xff]
    %v297 = vld [vmem:[%s3 + $0xb8] sm:$0xff]
    %v298 = vld [vmem:[%s3 + $0xc0] sm:$0xff]
    %v299 = vld [vmem:[%s3 + $0xc8] sm:$0xff]
    %v300 = vld [vmem:[%s3 + $0xd0] sm:$0xff]
    %v301 = vld [vmem:[%s3 + $0xd8] sm:$0xff]
    %v302 = vld [vmem:[%s3 + $0xe0] sm:$0xff]
    %v303 = vld [vmem:[%s3 + $0xe8] sm:$0xff]
    %v304 = vld [vmem:[%s3 + $0xf0] sm:$0xff]
    %v305 = vld [vmem:[%s3 + $0xf8] sm:$0xff]
    %v306 = vld [vmem:[#allocation5] sm:$0xf]
    %v308 = vlaneseq
    %v309 = vshrl.u32 %v308, 7
    %v310 = vsub.s32 0, %v309
    %v311 = vrot.slane %v306, %v310
    %v312 = vlaneseq
    %v313 = vshrl.u32 %v312, 7
    %v314 = vsub.s32 1, %v313
    %v315 = vrot.slane %v306, %v314
    %v316 = vlaneseq
    %v317 = vshrl.u32 %v316, 7
    %v318 = vsub.s32 2, %v317
    %v319 = vrot.slane %v306, %v318
    %v320 = vlaneseq
    %v321 = vshrl.u32 %v320, 7
    %v322 = vsub.s32 3, %v321
    %v323 = vrot.slane %v306, %v322
    %v329 = vsel %vm182, %v273, 0
    %331 = vmatprep.subr.mxu0 %v275
    %332 = vmatpush1.msra.mxu0 %v274
    %333 = vmatprep.subr.mxu0 %v279
    %334 = vmatpush1.msra.mxu0 %v278
    %335 = vmatprep.subr.mxu0 %v283
    %336 = vmatpush1.msra.mxu0 %v282
    %337 = vmatprep.subr.mxu0 %v287
    %338 = vmatpush1.msra.mxu0 %v286
    %339 = vmatprep.subr.mxu0 %v291
    %340 = vmatpush1.msra.mxu0 %v290
    %341 = vmatprep.subr.mxu0 %v295
    %342 = vmatpush1.msra.mxu0 %v294
    %343 = vmatprep.subr.mxu0 %v299
    %344 = vmatpush1.msra.mxu0 %v298
    %345 = vmatprep.subr.mxu0 %v303
    %346 = vmatpush1.msra.mxu0 %v302
    %347 = vmatprep.subr.mxu0 0.0
    %348 = vmatpush1.msra.mxu0 0.0
    %349 = vmatprep.subr.mxu0 0.0
    %350 = vmatpush1.msra.mxu0 0.0
    %351 = vmatprep.subr.mxu0 0.0
    %352 = vmatpush1.msra.mxu0 0.0
    %353 = vmatprep.subr.mxu0 0.0
    %354 = vmatpush1.msra.mxu0 0.0
    %355 = vmatprep.subr.mxu0 0.0
    %356 = vmatpush1.msra.mxu0 0.0
    %357 = vmatprep.subr.mxu0 0.0
    %358 = vmatpush1.msra.mxu0 0.0
    %359 = vmatprep.subr.mxu0 0.0
    %360 = vmatpush1.msra.mxu0 0.0
    %361 = vmatprep.subr.mxu0 0.0
    %362 = vmatpush1.msra.mxu0 0.0
    %363 = vmatprep.subr.mxu0 0.0
    %364 = vmatpush1.msra.mxu0 0.0
    %365 = vmatprep.subr.mxu0 0.0
    %366 = vmatpush1.msra.mxu0 0.0
    %367 = vmatprep.subr.mxu0 0.0
    %368 = vmatpush1.msra.mxu0 0.0
    %369 = vmatprep.subr.mxu0 0.0
    %370 = vmatpush1.msra.mxu0 0.0
    %371 = vmatprep.subr.mxu0 0.0
    %372 = vmatpush1.msra.mxu0 0.0
    %373 = vmatprep.subr.mxu0 0.0
    %374 = vmatpush1.msra.mxu0 0.0
    %375 = vmatprep.subr.mxu0 0.0
    %376 = vmatpush1.msra.mxu0 0.0
    %377 = vmatprep.subr.mxu0 0.0
    %378 = vmatpush1.msra.mxu0 0.0
    %379 = vmatprep.subr.mxu0 0.0
    %380 = vmatpush1.msra.mxu0 0.0
    %381 = vmatprep.subr.mxu0 0.0
    %382 = vmatpush1.msra.mxu0 0.0
    %383 = vmatprep.subr.mxu0 0.0
    %384 = vmatpush1.msra.mxu0 0.0
    %385 = vmatprep.subr.mxu0 0.0
    %386 = vmatpush1.msra.mxu0 0.0
    %387 = vmatprep.subr.mxu0 0.0
    %388 = vmatpush1.msra.mxu0 0.0
    %389 = vmatprep.subr.mxu0 0.0
    %390 = vmatpush1.msra.mxu0 0.0
    %391 = vmatprep.subr.mxu0 0.0
    %392 = vmatpush1.msra.mxu0 0.0
    %393 = vmatprep.subr.mxu0 0.0
    %394 = vmatpush1.msra.mxu0 0.0
    %395 = vmatprep.mubr.f32.mxu0 0.0
    %396 = vmatmul.mubr.f32.gmra.mrb[0].mxu0 %v329
    %v397 = vpop.f32.mrb[0].mxu0
    %v398 = vadd.f32 %v311, %v397
    %v399 = vpop.f32.mrb[0].mxu0
    %v400 = vadd.f32 %v315, %v399
    %401 = vdwg.mxu0
    %402 = vmatprep.subr.mxu0 %v277
    %403 = vmatpush1.msra.mxu0 %v276
    %404 = vmatprep.subr.mxu0 %v281
    %405 = vmatpush1.msra.mxu0 %v280
    %406 = vmatprep.subr.mxu0 %v285
    %407 = vmatpush1.msra.mxu0 %v284
    %408 = vmatprep.subr.mxu0 %v289
    %409 = vmatpush1.msra.mxu0 %v288
    %410 = vmatprep.subr.mxu0 %v293
    %411 = vmatpush1.msra.mxu0 %v292
    %412 = vmatprep.subr.mxu0 %v297
    %413 = vmatpush1.msra.mxu0 %v296
    %414 = vmatprep.subr.mxu0 %v301
    %415 = vmatpush1.msra.mxu0 %v300
    %416 = vmatprep.subr.mxu0 %v305
    %417 = vmatpush1.msra.mxu0 %v304
    %418 = vmatprep.subr.mxu0 0.0
    %419 = vmatpush1.msra.mxu0 0.0
    %420 = vmatprep.subr.mxu0 0.0
    %421 = vmatpush1.msra.mxu0 0.0
    %422 = vmatprep.subr.mxu0 0.0
    %423 = vmatpush1.msra.mxu0 0.0
    %424 = vmatprep.subr.mxu0 0.0
    %425 = vmatpush1.msra.mxu0 0.0
    %426 = vmatprep.subr.mxu0 0.0
    %427 = vmatpush1.msra.mxu0 0.0
    %428 = vmatprep.subr.mxu0 0.0
    %429 = vmatpush1.msra.mxu0 0.0
    %430 = vmatprep.subr.mxu0 0.0
    %431 = vmatpush1.msra.mxu0 0.0
    %432 = vmatprep.subr.mxu0 0.0
    %433 = vmatpush1.msra.mxu0 0.0
    %434 = vmatprep.subr.mxu0 0.0
    %435 = vmatpush1.msra.mxu0 0.0
    %436 = vmatprep.subr.mxu0 0.0
    %437 = vmatpush1.msra.mxu0 0.0
    %438 = vmatprep.subr.mxu0 0.0
    %439 = vmatpush1.msra.mxu0 0.0
    %440 = vmatprep.subr.mxu0 0.0
    %441 = vmatpush1.msra.mxu0 0.0
    %442 = vmatprep.subr.mxu0 0.0
    %443 = vmatpush1.msra.mxu0 0.0
    %444 = vmatprep.subr.mxu0 0.0
    %445 = vmatpush1.msra.mxu0 0.0
    %446 = vmatprep.subr.mxu0 0.0
    %447 = vmatpush1.msra.mxu0 0.0
    %448 = vmatprep.subr.mxu0 0.0
    %449 = vmatpush1.msra.mxu0 0.0
    %450 = vmatprep.subr.mxu0 0.0
    %451 = vmatpush1.msra.mxu0 0.0
    %452 = vmatprep.subr.mxu0 0.0
    %453 = vmatpush1.msra.mxu0 0.0
    %454 = vmatprep.subr.mxu0 0.0
    %455 = vmatpush1.msra.mxu0 0.0
    %456 = vmatprep.subr.mxu0 0.0
    %457 = vmatpush1.msra.mxu0 0.0
    %458 = vmatprep.subr.mxu0 0.0
    %459 = vmatpush1.msra.mxu0 0.0
    %460 = vmatprep.subr.mxu0 0.0
    %461 = vmatpush1.msra.mxu0 0.0
    %462 = vmatprep.subr.mxu0 0.0
    %463 = vmatpush1.msra.mxu0 0.0
    %464 = vmatprep.subr.mxu0 0.0
    %465 = vmatpush1.msra.mxu0 0.0
    %466 = vmatprep.mubr.f32.mxu0 0.0
    %467 = vmatmul.mubr.f32.gmra.mrb[0].mxu0 %v329
    %v468 = vpop.f32.mrb[0].mxu0
    %v469 = vadd.f32 %v319, %v468
    %v470 = vpop.f32.mrb[0].mxu0
    %v471 = vadd.f32 %v323, %v470
    %472 = vdwg.mxu0
    %v473 = vld [vmem:[%s5] sm:$0xff]
    %v474 = vld [vmem:[%s5 + $0x8] sm:$0xff]
    %v475 = vld [vmem:[%s5 + $0x10] sm:$0xff]
    %v476 = vld [vmem:[%s5 + $0x18] sm:$0xff]
    %v477 = vld [vmem:[%s5 + $0x20] sm:$0xff]
    %v478 = vld [vmem:[%s5 + $0x28] sm:$0xff]
    %vm479 = vcmask 130048
    %v481 = vsel %vm479, 0.0, 0
    %483 = vmatprep.subr.mxu0 0.0
    %484 = vmatpush1.msra.mxu0 %v473
    %485 = vmatprep.subr.mxu0 0.0
    %486 = vmatpush1.msra.mxu0 %v474
    %487 = vmatprep.subr.mxu0 0.0
    %488 = vmatpush1.msra.mxu0 0.0
    %489 = vmatprep.subr.mxu0 0.0
    %490 = vmatpush1.msra.mxu0 0.0
    %491 = vmatprep.subr.mxu0 0.0
    %492 = vmatpush1.msra.mxu0 0.0
    %493 = vmatprep.subr.mxu0 0.0
    %494 = vmatpush1.msra.mxu0 0.0
    %495 = vmatprep.subr.mxu0 0.0
    %496 = vmatpush1.msra.mxu0 0.0
    %497 = vmatprep.subr.mxu0 0.0
    %498 = vmatpush1.msra.mxu0 0.0
    %499 = vmatprep.subr.mxu0 0.0
    %500 = vmatpush1.msra.mxu0 0.0
    %501 = vmatprep.subr.mxu0 0.0
    %502 = vmatpush1.msra.mxu0 0.0
    %503 = vmatprep.subr.mxu0 0.0
    %504 = vmatpush1.msra.mxu0 0.0
    %505 = vmatprep.subr.mxu0 0.0
    %506 = vmatpush1.msra.mxu0 0.0
    %507 = vmatprep.subr.mxu0 0.0
    %508 = vmatpush1.msra.mxu0 0.0
    %509 = vmatprep.subr.mxu0 0.0
    %510 = vmatpush1.msra.mxu0 0.0
    %511 = vmatprep.subr.mxu0 0.0
    %512 = vmatpush1.msra.mxu0 0.0
    %513 = vmatprep.subr.mxu0 0.0
    %514 = vmatpush1.msra.mxu0 0.0
    %515 = vmatprep.subr.mxu0 0.0
    %516 = vmatpush1.msra.mxu0 0.0
    %517 = vmatprep.subr.mxu0 0.0
    %518 = vmatpush1.msra.mxu0 0.0
    %519 = vmatprep.subr.mxu0 0.0
    %520 = vmatpush1.msra.mxu0 0.0
    %521 = vmatprep.subr.mxu0 0.0
    %522 = vmatpush1.msra.mxu0 0.0
    %523 = vmatprep.subr.mxu0 0.0
    %524 = vmatpush1.msra.mxu0 0.0
    %525 = vmatprep.subr.mxu0 0.0
    %526 = vmatpush1.msra.mxu0 0.0
    %527 = vmatprep.subr.mxu0 0.0
    %528 = vmatpush1.msra.mxu0 0.0
    %529 = vmatprep.subr.mxu0 0.0
    %530 = vmatpush1.msra.mxu0 0.0
    %531 = vmatprep.subr.mxu0 0.0
    %532 = vmatpush1.msra.mxu0 0.0
    %533 = vmatprep.subr.mxu0 0.0
    %534 = vmatpush1.msra.mxu0 0.0
    %535 = vmatprep.subr.mxu0 0.0
    %536 = vmatpush1.msra.mxu0 0.0
    %537 = vmatprep.subr.mxu0 0.0
    %538 = vmatpush1.msra.mxu0 0.0
    %539 = vmatprep.subr.mxu0 0.0
    %540 = vmatpush1.msra.mxu0 0.0
    %541 = vmatprep.subr.mxu0 0.0
    %542 = vmatpush1.msra.mxu0 0.0
    %543 = vmatprep.subr.mxu0 0.0
    %544 = vmatpush1.msra.mxu0 0.0
    %545 = vmatprep.subr.mxu0 0.0
    %546 = vmatpush1.msra.mxu0 0.0
    %547 = vmatprep.mubr.f32.mxu0 0.0
    %548 = vmatmul.mubr.f32.gmra.mrb[0].mxu0 %v481
    %v549 = vpop.f32.mrb[0].mxu0
    %v550 = vadd.f32 0.0, %v549
    %v551 = vpop.f32.mrb[0].mxu0
    %552 = vdwg.mxu0
    %v553 = vadd.f32 %v398, %v550
    %v554 = vxor.u32 %v553, 2147483648
    %v555 = vmul.f32 %v554, 1.442695
    %v556 = vpow.pop %v555
    %v557 = vadd.f32 %v556, 1.0
    %v558 = vrcp.pop %v557
    %v559 = vmul.f32 1.0, %v558
    %v560 = vtanh.pop %v553
    %v561 = vmul.f32 %v559, 0.0
    %563 = vrot.lane.b32.xlu0 %v560, 96
    %v564 = vpop.permute.xlu0 %563
    %v566 = vmul.f32 %v559, %v564
    %568 = vrot.lane.b32.xlu0 %v566, 16
    %v569 = vpop.permute.xlu0 %568
    %v571 = vadd.f32 %v561, %v569
    %v572 = vtanh.pop %v571
    %574 = vrot.lane.b32.xlu0 %v572, 32
    %v575 = vpop.permute.xlu0 %574
    %v577 = vmul.f32 %v559, %v575
    %578 = vmatprep.subr.mxu0 0.0
    %579 = vmatpush1.msra.mxu0 %v477
    %580 = vmatprep.subr.mxu0 0.0
    %581 = vmatpush1.msra.mxu0 %v478
    %582 = vmatprep.subr.mxu0 0.0
    %583 = vmatpush1.msra.mxu0 0.0
    %584 = vmatprep.subr.mxu0 0.0
    %585 = vmatpush1.msra.mxu0 0.0
    %586 = vmatprep.subr.mxu0 0.0
    %587 = vmatpush1.msra.mxu0 0.0
    %588 = vmatprep.subr.mxu0 0.0
    %589 = vmatpush1.msra.mxu0 0.0
    %590 = vmatprep.subr.mxu0 0.0
    %591 = vmatpush1.msra.mxu0 0.0
    %592 = vmatprep.subr.mxu0 0.0
    %593 = vmatpush1.msra.mxu0 0.0
    %594 = vmatprep.subr.mxu0 0.0
    %595 = vmatpush1.msra.mxu0 0.0
    %596 = vmatprep.subr.mxu0 0.0
    %597 = vmatpush1.msra.mxu0 0.0
    %598 = vmatprep.subr.mxu0 0.0
    %599 = vmatpush1.msra.mxu0 0.0
    %600 = vmatprep.subr.mxu0 0.0
    %601 = vmatpush1.msra.mxu0 0.0
    %602 = vmatprep.subr.mxu0 0.0
    %603 = vmatpush1.msra.mxu0 0.0
    %604 = vmatprep.subr.mxu0 0.0
    %605 = vmatpush1.msra.mxu0 0.0
    %606 = vmatprep.subr.mxu0 0.0
    %607 = vmatpush1.msra.mxu0 0.0
    %608 = vmatprep.subr.mxu0 0.0
    %609 = vmatpush1.msra.mxu0 0.0
    %610 = vmatprep.subr.mxu0 0.0
    %611 = vmatpush1.msra.mxu0 0.0
    %612 = vmatprep.subr.mxu0 0.0
    %613 = vmatpush1.msra.mxu0 0.0
    %614 = vmatprep.subr.mxu0 0.0
    %615 = vmatpush1.msra.mxu0 0.0
    %616 = vmatprep.subr.mxu0 0.0
    %617 = vmatpush1.msra.mxu0 0.0
    %618 = vmatprep.subr.mxu0 0.0
    %619 = vmatpush1.msra.mxu0 0.0
    %620 = vmatprep.subr.mxu0 0.0
    %621 = vmatpush1.msra.mxu0 0.0
    %622 = vmatprep.subr.mxu0 0.0
    %623 = vmatpush1.msra.mxu0 0.0
    %624 = vmatprep.subr.mxu0 0.0
    %625 = vmatpush1.msra.mxu0 0.0
    %626 = vmatprep.subr.mxu0 0.0
    %627 = vmatpush1.msra.mxu0 0.0
    %628 = vmatprep.subr.mxu0 0.0
    %629 = vmatpush1.msra.mxu0 0.0
    %630 = vmatprep.subr.mxu0 0.0
    %631 = vmatpush1.msra.mxu0 0.0
    %632 = vmatprep.subr.mxu0 0.0
    %633 = vmatpush1.msra.mxu0 0.0
    %634 = vmatprep.subr.mxu0 0.0
    %635 = vmatpush1.msra.mxu0 0.0
    %636 = vmatprep.subr.mxu0 0.0
    %637 = vmatpush1.msra.mxu0 0.0
    %638 = vmatprep.subr.mxu0 0.0
    %639 = vmatpush1.msra.mxu0 0.0
    %640 = vmatprep.subr.mxu0 0.0
    %641 = vmatpush1.msra.mxu0 0.0
    %642 = vmatprep.mubr.f32.mxu0 0.0
    %643 = vmatmul.mubr.f32.gmra.mrb[0].mxu0 %v481
    %v644 = vpop.f32.mrb[0].mxu0
    %v645 = vadd.f32 0.0, %v644
    %v646 = vpop.f32.mrb[0].mxu0
    %647 = vdwg.mxu0
    %649 = vrot.lane.b32.xlu0 %v577, 80
    %v650 = vpop.permute.xlu0 %649
    %v651 = vsel %vm479, %v650, 0
    %653 = vmatprep.subr.mxu0 0.0
    %654 = vmatpush1.msra.mxu0 %v475
    %655 = vmatprep.subr.mxu0 0.0
    %656 = vmatpush1.msra.mxu0 %v476
    %657 = vmatprep.subr.mxu0 0.0
    %658 = vmatpush1.msra.mxu0 0.0
    %659 = vmatprep.subr.mxu0 0.0
    %660 = vmatpush1.msra.mxu0 0.0
    %661 = vmatprep.subr.mxu0 0.0
    %662 = vmatpush1.msra.mxu0 0.0
    %663 = vmatprep.subr.mxu0 0.0
    %664 = vmatpush1.msra.mxu0 0.0
    %665 = vmatprep.subr.mxu0 0.0
    %666 = vmatpush1.msra.mxu0 0.0
    %667 = vmatprep.subr.mxu0 0.0
    %668 = vmatpush1.msra.mxu0 0.0
    %669 = vmatprep.subr.mxu0 0.0
    %670 = vmatpush1.msra.mxu0 0.0
    %671 = vmatprep.subr.mxu0 0.0
    %672 = vmatpush1.msra.mxu0 0.0
    %673 = vmatprep.subr.mxu0 0.0
    %674 = vmatpush1.msra.mxu0 0.0
    %675 = vmatprep.subr.mxu0 0.0
    %676 = vmatpush1.msra.mxu0 0.0
    %677 = vmatprep.subr.mxu0 0.0
    %678 = vmatpush1.msra.mxu0 0.0
    %679 = vmatprep.subr.mxu0 0.0
    %680 = vmatpush1.msra.mxu0 0.0
    %681 = vmatprep.subr.mxu0 0.0
    %682 = vmatpush1.msra.mxu0 0.0
    %683 = vmatprep.subr.mxu0 0.0
    %684 = vmatpush1.msra.mxu0 0.0
    %685 = vmatprep.subr.mxu0 0.0
    %686 = vmatpush1.msra.mxu0 0.0
    %687 = vmatprep.subr.mxu0 0.0
    %688 = vmatpush1.msra.mxu0 0.0
    %689 = vmatprep.subr.mxu0 0.0
    %690 = vmatpush1.msra.mxu0 0.0
    %691 = vmatprep.subr.mxu0 0.0
    %692 = vmatpush1.msra.mxu0 0.0
    %693 = vmatprep.subr.mxu0 0.0
    %694 = vmatpush1.msra.mxu0 0.0
    %695 = vmatprep.subr.mxu0 0.0
    %696 = vmatpush1.msra.mxu0 0.0
    %697 = vmatprep.subr.mxu0 0.0
    %698 = vmatpush1.msra.mxu0 0.0
    %699 = vmatprep.subr.mxu0 0.0
    %700 = vmatpush1.msra.mxu0 0.0
    %701 = vmatprep.subr.mxu0 0.0
    %702 = vmatpush1.msra.mxu0 0.0
    %703 = vmatprep.subr.mxu0 0.0
    %704 = vmatpush1.msra.mxu0 0.0
    %705 = vmatprep.subr.mxu0 0.0
    %706 = vmatpush1.msra.mxu0 0.0
    %707 = vmatprep.subr.mxu0 0.0
    %708 = vmatpush1.msra.mxu0 0.0
    %709 = vmatprep.subr.mxu0 0.0
    %710 = vmatpush1.msra.mxu0 0.0
    %711 = vmatprep.subr.mxu0 0.0
    %712 = vmatpush1.msra.mxu0 0.0
    %713 = vmatprep.subr.mxu0 0.0
    %714 = vmatpush1.msra.mxu0 0.0
    %715 = vmatprep.subr.mxu0 0.0
    %716 = vmatpush1.msra.mxu0 0.0
    %717 = vmatprep.mubr.f32.mxu0 0.0
    %718 = vmatmul.mubr.f32.gmra.mrb[0].mxu0 %v651
    %v719 = vpop.f32.mrb[0].mxu0
    %v720 = vadd.f32 %v645, %v719
    %v721 = vpop.f32.mrb[0].mxu0
    %722 = vdwg.mxu0
    %v723 = vlaneseq
    %v724 = vshrl.u32 %v723, 7
    %v725 = vsub.s32 2, %v724
    %v726 = vrot.slane %v67, %v725
    %v727 = vadd.f32 %v720, %v726
    %v728 = vxor.u32 %v727, 2147483648
    %v729 = vmul.f32 %v728, 1.442695
    %v730 = vpow.pop %v729
    %v731 = vadd.f32 %v730, 1.0
    %v732 = vrcp.pop %v731
    %v733 = vmul.f32 1.0, %v732
    %v734 = vtanh.pop %v727
    %v735 = vmul.f32 %v733, 0.0
    %737 = vrot.lane.b32.xlu0 %v734, 96
    %v738 = vpop.permute.xlu0 %737
    %v740 = vmul.f32 %v733, %v738
    %742 = vrot.lane.b32.xlu0 %v740, 16
    %v743 = vpop.permute.xlu0 %742
    %v745 = vadd.f32 %v735, %v743
    %v746 = vtanh.pop %v745
    %748 = vrot.lane.b32.xlu0 %v746, 32
    %v749 = vpop.permute.xlu0 %748
    %v751 = vmul.f32 %v733, %v749
    %752 = vmatprep.subr.mxu0 0.0
    %753 = vmatpush1.msra.mxu0 %v473
    %754 = vmatprep.subr.mxu0 0.0
    %755 = vmatpush1.msra.mxu0 %v474
    %756 = vmatprep.subr.mxu0 0.0
    %757 = vmatpush1.msra.mxu0 0.0
    %758 = vmatprep.subr.mxu0 0.0
    %759 = vmatpush1.msra.mxu0 0.0
    %760 = vmatprep.subr.mxu0 0.0
    %761 = vmatpush1.msra.mxu0 0.0
    %762 = vmatprep.subr.mxu0 0.0
    %763 = vmatpush1.msra.mxu0 0.0
    %764 = vmatprep.subr.mxu0 0.0
    %765 = vmatpush1.msra.mxu0 0.0
    %766 = vmatprep.subr.mxu0 0.0
    %767 = vmatpush1.msra.mxu0 0.0
    %768 = vmatprep.subr.mxu0 0.0
    %769 = vmatpush1.msra.mxu0 0.0
    %770 = vmatprep.subr.mxu0 0.0
    %771 = vmatpush1.msra.mxu0 0.0
    %772 = vmatprep.subr.mxu0 0.0
    %773 = vmatpush1.msra.mxu0 0.0
    %774 = vmatprep.subr.mxu0 0.0
    %775 = vmatpush1.msra.mxu0 0.0
    %776 = vmatprep.subr.mxu0 0.0
    %777 = vmatpush1.msra.mxu0 0.0
    %778 = vmatprep.subr.mxu0 0.0
    %779 = vmatpush1.msra.mxu0 0.0
    %780 = vmatprep.subr.mxu0 0.0
    %781 = vmatpush1.msra.mxu0 0.0
    %782 = vmatprep.subr.mxu0 0.0
    %783 = vmatpush1.msra.mxu0 0.0
    %784 = vmatprep.subr.mxu0 0.0
    %785 = vmatpush1.msra.mxu0 0.0
    %786 = vmatprep.subr.mxu0 0.0
    %787 = vmatpush1.msra.mxu0 0.0
    %788 = vmatprep.subr.mxu0 0.0
    %789 = vmatpush1.msra.mxu0 0.0
    %790 = vmatprep.subr.mxu0 0.0
    %791 = vmatpush1.msra.mxu0 0.0
    %792 = vmatprep.subr.mxu0 0.0
    %793 = vmatpush1.msra.mxu0 0.0
    %794 = vmatprep.subr.mxu0 0.0
    %795 = vmatpush1.msra.mxu0 0.0
    %796 = vmatprep.subr.mxu0 0.0
    %797 = vmatpush1.msra.mxu0 0.0
    %798 = vmatprep.subr.mxu0 0.0
    %799 = vmatpush1.msra.mxu0 0.0
    %800 = vmatprep.subr.mxu0 0.0
    %801 = vmatpush1.msra.mxu0 0.0
    %802 = vmatprep.subr.mxu0 0.0
    %803 = vmatpush1.msra.mxu0 0.0
    %804 = vmatprep.subr.mxu0 0.0
    %805 = vmatpush1.msra.mxu0 0.0
    %806 = vmatprep.subr.mxu0 0.0
    %807 = vmatpush1.msra.mxu0 0.0
    %808 = vmatprep.subr.mxu0 0.0
    %809 = vmatpush1.msra.mxu0 0.0
    %810 = vmatprep.subr.mxu0 0.0
    %811 = vmatpush1.msra.mxu0 0.0
    %812 = vmatprep.subr.mxu0 0.0
    %813 = vmatpush1.msra.mxu0 0.0
    %814 = vmatprep.subr.mxu0 0.0
    %815 = vmatpush1.msra.mxu0 0.0
    %816 = vmatprep.mubr.f32.mxu0 0.0
    %817 = vmatmul.mubr.f32.gmra.mrb[0].mxu0 %v651
    %v818 = vpop.f32.mrb[0].mxu0
    %v819 = vadd.f32 0.0, %v818
    %v820 = vpop.f32.mrb[0].mxu0
    %821 = vdwg.mxu0
    %823 = vrot.lane.b32.xlu0 %v819, 64
    %v824 = vpop.permute.xlu0 %823
    %v826 = vadd.f32 %v398, %v824
    %v827 = vxor.u32 %v826, 2147483648
    %v828 = vmul.f32 %v827, 1.442695
    %v829 = vpow.pop %v828
    %v830 = vadd.f32 %v829, 1.0
    %v831 = vrcp.pop %v830
    %v832 = vmul.f32 1.0, %v831
    %v833 = vtanh.pop %v826
    %835 = vrot.lane.b32.xlu0 %v571, 64
    %v836 = vpop.permute.xlu0 %835
    %v838 = vmul.f32 %v832, %v836
    %840 = vrot.lane.b32.xlu0 %v833, 96
    %v841 = vpop.permute.xlu0 %840
    %v843 = vmul.f32 %v832, %v841
    %845 = vrot.lane.b32.xlu0 %v843, 16
    %v846 = vpop.permute.xlu0 %845
    %v848 = vadd.f32 %v838, %v846
    %v849 = vtanh.pop %v848
    %851 = vrot.lane.b32.xlu0 %v849, 32
    %v852 = vpop.permute.xlu0 %851
    %v854 = vmul.f32 %v832, %v852
    %856 = vrot.lane.b32.xlu0 %v751, 80
    %v857 = vpop.permute.xlu0 %856
    %v858 = vsel %vm479, %v857, 0
    %860 = vmatprep.subr.mxu0 0.0
    %861 = vmatpush1.msra.mxu0 %v477
    %862 = vmatprep.subr.mxu0 0.0
    %863 = vmatpush1.msra.mxu0 %v478
    %864 = vmatprep.subr.mxu0 0.0
    %865 = vmatpush1.msra.mxu0 0.0
    %866 = vmatprep.subr.mxu0 0.0
    %867 = vmatpush1.msra.mxu0 0.0
    %868 = vmatprep.subr.mxu0 0.0
    %869 = vmatpush1.msra.mxu0 0.0
    %870 = vmatprep.subr.mxu0 0.0
    %871 = vmatpush1.msra.mxu0 0.0
    %872 = vmatprep.subr.mxu0 0.0
    %873 = vmatpush1.msra.mxu0 0.0
    %874 = vmatprep.subr.mxu0 0.0
    %875 = vmatpush1.msra.mxu0 0.0
    %876 = vmatprep.subr.mxu0 0.0
    %877 = vmatpush1.msra.mxu0 0.0
    %878 = vmatprep.subr.mxu0 0.0
    %879 = vmatpush1.msra.mxu0 0.0
    %880 = vmatprep.subr.mxu0 0.0
    %881 = vmatpush1.msra.mxu0 0.0
    %882 = vmatprep.subr.mxu0 0.0
    %883 = vmatpush1.msra.mxu0 0.0
    %884 = vmatprep.subr.mxu0 0.0
    %885 = vmatpush1.msra.mxu0 0.0
    %886 = vmatprep.subr.mxu0 0.0
    %887 = vmatpush1.msra.mxu0 0.0
    %888 = vmatprep.subr.mxu0 0.0
    %889 = vmatpush1.msra.mxu0 0.0
    %890 = vmatprep.subr.mxu0 0.0
    %891 = vmatpush1.msra.mxu0 0.0
    %892 = vmatprep.subr.mxu0 0.0
    %893 = vmatpush1.msra.mxu0 0.0
    %894 = vmatprep.subr.mxu0 0.0
    %895 = vmatpush1.msra.mxu0 0.0
    %896 = vmatprep.subr.mxu0 0.0
    %897 = vmatpush1.msra.mxu0 0.0
    %898 = vmatprep.subr.mxu0 0.0
    %899 = vmatpush1.msra.mxu0 0.0
    %900 = vmatprep.subr.mxu0 0.0
    %901 = vmatpush1.msra.mxu0 0.0
    %902 = vmatprep.subr.mxu0 0.0
    %903 = vmatpush1.msra.mxu0 0.0
    %904 = vmatprep.subr.mxu0 0.0
    %905 = vmatpush1.msra.mxu0 0.0
    %906 = vmatprep.subr.mxu0 0.0
    %907 = vmatpush1.msra.mxu0 0.0
    %908 = vmatprep.subr.mxu0 0.0
    %909 = vmatpush1.msra.mxu0 0.0
    %910 = vmatprep.subr.mxu0 0.0
    %911 = vmatpush1.msra.mxu0 0.0
    %912 = vmatprep.subr.mxu0 0.0
    %913 = vmatpush1.msra.mxu0 0.0
    %914 = vmatprep.subr.mxu0 0.0
    %915 = vmatpush1.msra.mxu0 0.0
    %916 = vmatprep.subr.mxu0 0.0
    %917 = vmatpush1.msra.mxu0 0.0
    %918 = vmatprep.subr.mxu0 0.0
    %919 = vmatpush1.msra.mxu0 0.0
    %920 = vmatprep.subr.mxu0 0.0
    %921 = vmatpush1.msra.mxu0 0.0
    %922 = vmatprep.subr.mxu0 0.0
    %923 = vmatpush1.msra.mxu0 0.0
    %924 = vmatprep.mubr.f32.mxu0 0.0
    %925 = vmatmul.mubr.f32.gmra.mrb[0].mxu0 %v858
    %v926 = vpop.f32.mrb[0].mxu0
    %v927 = vadd.f32 0.0, %v926
    %v928 = vpop.f32.mrb[0].mxu0
    %929 = vdwg.mxu0
    %931 = vrot.lane.b32.xlu0 %v854, 16
    %v932 = vpop.permute.xlu0 %931
    %v933 = vsel %vm479, %v932, 0
    %935 = vmatprep.subr.mxu0 0.0
    %936 = vmatpush1.msra.mxu0 %v475
    %937 = vmatprep.subr.mxu0 0.0
    %938 = vmatpush1.msra.mxu0 %v476
    %939 = vmatprep.subr.mxu0 0.0
    %940 = vmatpush1.msra.mxu0 0.0
    %941 = vmatprep.subr.mxu0 0.0
    %942 = vmatpush1.msra.mxu0 0.0
    %943 = vmatprep.subr.mxu0 0.0
    %944 = vmatpush1.msra.mxu0 0.0
    %945 = vmatprep.subr.mxu0 0.0
    %946 = vmatpush1.msra.mxu0 0.0
    %947 = vmatprep.subr.mxu0 0.0
    %948 = vmatpush1.msra.mxu0 0.0
    %949 = vmatprep.subr.mxu0 0.0
    %950 = vmatpush1.msra.mxu0 0.0
    %951 = vmatprep.subr.mxu0 0.0
    %952 = vmatpush1.msra.mxu0 0.0
    %953 = vmatprep.subr.mxu0 0.0
    %954 = vmatpush1.msra.mxu0 0.0
    %955 = vmatprep.subr.mxu0 0.0
    %956 = vmatpush1.msra.mxu0 0.0
    %957 = vmatprep.subr.mxu0 0.0
    %958 = vmatpush1.msra.mxu0 0.0
    %959 = vmatprep.subr.mxu0 0.0
    %960 = vmatpush1.msra.mxu0 0.0
    %961 = vmatprep.subr.mxu0 0.0
    %962 = vmatpush1.msra.mxu0 0.0
    %963 = vmatprep.subr.mxu0 0.0
    %964 = vmatpush1.msra.mxu0 0.0
    %965 = vmatprep.subr.mxu0 0.0
    %966 = vmatpush1.msra.mxu0 0.0
    %967 = vmatprep.subr.mxu0 0.0
    %968 = vmatpush1.msra.mxu0 0.0
    %969 = vmatprep.subr.mxu0 0.0
    %970 = vmatpush1.msra.mxu0 0.0
    %971 = vmatprep.subr.mxu0 0.0
    %972 = vmatpush1.msra.mxu0 0.0
    %973 = vmatprep.subr.mxu0 0.0
    %974 = vmatpush1.msra.mxu0 0.0
    %975 = vmatprep.subr.mxu0 0.0
    %976 = vmatpush1.msra.mxu0 0.0
    %977 = vmatprep.subr.mxu0 0.0
    %978 = vmatpush1.msra.mxu0 0.0
    %979 = vmatprep.subr.mxu0 0.0
    %980 = vmatpush1.msra.mxu0 0.0
    %981 = vmatprep.subr.mxu0 0.0
    %982 = vmatpush1.msra.mxu0 0.0
    %983 = vmatprep.subr.mxu0 0.0
    %984 = vmatpush1.msra.mxu0 0.0
    %985 = vmatprep.subr.mxu0 0.0
    %986 = vmatpush1.msra.mxu0 0.0
    %987 = vmatprep.subr.mxu0 0.0
    %988 = vmatpush1.msra.mxu0 0.0
    %989 = vmatprep.subr.mxu0 0.0
    %990 = vmatpush1.msra.mxu0 0.0
    %991 = vmatprep.subr.mxu0 0.0
    %992 = vmatpush1.msra.mxu0 0.0
    %993 = vmatprep.subr.mxu0 0.0
    %994 = vmatpush1.msra.mxu0 0.0
    %995 = vmatprep.subr.mxu0 0.0
    %996 = vmatpush1.msra.mxu0 0.0
    %997 = vmatprep.subr.mxu0 0.0
    %998 = vmatpush1.msra.mxu0 0.0
    %999 = vmatprep.mubr.f32.mxu0 0.0
    %1000 = vmatmul.mubr.f32.gmra.mrb[0].mxu0 %v933
    %v1001 = vpop.f32.mrb[0].mxu0
    %v1002 = vadd.f32 %v927, %v1001
    %v1003 = vpop.f32.mrb[0].mxu0
    %1004 = vdwg.mxu0
    %v1005 = vadd.f32 %v1002, %v726
    %v1006 = vxor.u32 %v1005, 2147483648
    %v1007 = vmul.f32 %v1006, 1.442695
    %v1008 = vpow.pop %v1007
    %v1009 = vadd.f32 %v1008, 1.0
    %v1010 = vrcp.pop %v1009
    %v1011 = vmul.f32 1.0, %v1010
    %v1012 = vtanh.pop %v1005
    %v1013 = vmul.f32 %v1011, %v745
    %1015 = vrot.lane.b32.xlu0 %v1012, 96
    %v1016 = vpop.permute.xlu0 %1015
    %v1018 = vmul.f32 %v1011, %v1016
    %1020 = vrot.lane.b32.xlu0 %v1018, 16
    %v1021 = vpop.permute.xlu0 %1020
    %v1023 = vadd.f32 %v1013, %v1021
    %v1024 = vtanh.pop %v1023
    %1026 = vrot.lane.b32.xlu0 %v1024, 32
    %v1027 = vpop.permute.xlu0 %1026
    %v1029 = vmul.f32 %v1011, %v1027
    %1030 = vmatprep.subr.mxu0 0.0
    %1031 = vmatpush1.msra.mxu0 %v473
    %1032 = vmatprep.subr.mxu0 0.0
    %1033 = vmatpush1.msra.mxu0 %v474
    %1034 = vmatprep.subr.mxu0 0.0
    %1035 = vmatpush1.msra.mxu0 0.0
    %1036 = vmatprep.subr.mxu0 0.0
    %1037 = vmatpush1.msra.mxu0 0.0
    %1038 = vmatprep.subr.mxu0 0.0
    %1039 = vmatpush1.msra.mxu0 0.0
    %1040 = vmatprep.subr.mxu0 0.0
    %1041 = vmatpush1.msra.mxu0 0.0
    %1042 = vmatprep.subr.mxu0 0.0
    %1043 = vmatpush1.msra.mxu0 0.0
    %1044 = vmatprep.subr.mxu0 0.0
    %1045 = vmatpush1.msra.mxu0 0.0
    %1046 = vmatprep.subr.mxu0 0.0
    %1047 = vmatpush1.msra.mxu0 0.0
    %1048 = vmatprep.subr.mxu0 0.0
    %1049 = vmatpush1.msra.mxu0 0.0
    %1050 = vmatprep.subr.mxu0 0.0
    %1051 = vmatpush1.msra.mxu0 0.0
    %1052 = vmatprep.subr.mxu0 0.0
    %1053 = vmatpush1.msra.mxu0 0.0
    %1054 = vmatprep.subr.mxu0 0.0
    %1055 = vmatpush1.msra.mxu0 0.0
    %1056 = vmatprep.subr.mxu0 0.0
    %1057 = vmatpush1.msra.mxu0 0.0
    %1058 = vmatprep.subr.mxu0 0.0
    %1059 = vmatpush1.msra.mxu0 0.0
    %1060 = vmatprep.subr.mxu0 0.0
    %1061 = vmatpush1.msra.mxu0 0.0
    %1062 = vmatprep.subr.mxu0 0.0
    %1063 = vmatpush1.msra.mxu0 0.0
    %1064 = vmatprep.subr.mxu0 0.0
    %1065 = vmatpush1.msra.mxu0 0.0
    %1066 = vmatprep.subr.mxu0 0.0
    %1067 = vmatpush1.msra.mxu0 0.0
    %1068 = vmatprep.subr.mxu0 0.0
    %1069 = vmatpush1.msra.mxu0 0.0
    %1070 = vmatprep.subr.mxu0 0.0
    %1071 = vmatpush1.msra.mxu0 0.0
    %1072 = vmatprep.subr.mxu0 0.0
    %1073 = vmatpush1.msra.mxu0 0.0
    %1074 = vmatprep.subr.mxu0 0.0
    %1075 = vmatpush1.msra.mxu0 0.0
    %1076 = vmatprep.subr.mxu0 0.0
    %1077 = vmatpush1.msra.mxu0 0.0
    %1078 = vmatprep.subr.mxu0 0.0
    %1079 = vmatpush1.msra.mxu0 0.0
    %1080 = vmatprep.subr.mxu0 0.0
    %1081 = vmatpush1.msra.mxu0 0.0
    %1082 = vmatprep.subr.mxu0 0.0
    %1083 = vmatpush1.msra.mxu0 0.0
    %1084 = vmatprep.subr.mxu0 0.0
    %1085 = vmatpush1.msra.mxu0 0.0
    %1086 = vmatprep.subr.mxu0 0.0
    %1087 = vmatpush1.msra.mxu0 0.0
    %1088 = vmatprep.subr.mxu0 0.0
    %1089 = vmatpush1.msra.mxu0 0.0
    %1090 = vmatprep.subr.mxu0 0.0
    %1091 = vmatpush1.msra.mxu0 0.0
    %1092 = vmatprep.subr.mxu0 0.0
    %1093 = vmatpush1.msra.mxu0 0.0
    %1094 = vmatprep.mubr.f32.mxu0 0.0
    %1095 = vmatmul.mubr.f32.gmra.mrb[0].mxu0 %v933
    %v1096 = vpop.f32.mrb[0].mxu0
    %v1097 = vadd.f32 0.0, %v1096
    %v1098 = vpop.f32.mrb[0].mxu0
    %1099 = vdwg.mxu0
    %v1100 = vadd.f32 %v400, %v1097
    %v1101 = vxor.u32 %v1100, 2147483648
    %v1102 = vmul.f32 %v1101, 1.442695
    %v1103 = vpow.pop %v1102
    %v1104 = vadd.f32 %v1103, 1.0
    %v1105 = vrcp.pop %v1104
    %v1106 = vmul.f32 1.0, %v1105
    %v1107 = vtanh.pop %v1100
    %1109 = vrot.lane.b32.xlu0 %v848, 64
    %v1110 = vpop.permute.xlu0 %1109
    %v1112 = vmul.f32 %v1106, %v1110
    %1114 = vrot.lane.b32.xlu0 %v1107, 96
    %v1115 = vpop.permute.xlu0 %1114
    %v1117 = vmul.f32 %v1106, %v1115
    %1119 = vrot.lane.b32.xlu0 %v1117, 16
    %v1120 = vpop.permute.xlu0 %1119
    %v1122 = vadd.f32 %v1112, %v1120
    %v1123 = vtanh.pop %v1122
    %1125 = vrot.lane.b32.xlu0 %v1123, 32
    %v1126 = vpop.permute.xlu0 %1125
    %v1128 = vmul.f32 %v1106, %v1126
    %1130 = vrot.lane.b32.xlu0 %v1029, 80
    %v1131 = vpop.permute.xlu0 %1130
    %v1132 = vsel %vm479, %v1131, 0
    %1134 = vmatprep.subr.mxu0 0.0
    %1135 = vmatpush1.msra.mxu0 %v477
    %1136 = vmatprep.subr.mxu0 0.0
    %1137 = vmatpush1.msra.mxu0 %v478
    %1138 = vmatprep.subr.mxu0 0.0
    %1139 = vmatpush1.msra.mxu0 0.0
    %1140 = vmatprep.subr.mxu0 0.0
    %1141 = vmatpush1.msra.mxu0 0.0
    %1142 = vmatprep.subr.mxu0 0.0
    %1143 = vmatpush1.msra.mxu0 0.0
    %1144 = vmatprep.subr.mxu0 0.0
    %1145 = vmatpush1.msra.mxu0 0.0
    %1146 = vmatprep.subr.mxu0 0.0
    %1147 = vmatpush1.msra.mxu0 0.0
    %1148 = vmatprep.subr.mxu0 0.0
    %1149 = vmatpush1.msra.mxu0 0.0
    %1150 = vmatprep.subr.mxu0 0.0
    %1151 = vmatpush1.msra.mxu0 0.0
    %1152 = vmatprep.subr.mxu0 0.0
    %1153 = vmatpush1.msra.mxu0 0.0
    %1154 = vmatprep.subr.mxu0 0.0
    %1155 = vmatpush1.msra.mxu0 0.0
    %1156 = vmatprep.subr.mxu0 0.0
    %1157 = vmatpush1.msra.mxu0 0.0
    %1158 = vmatprep.subr.mxu0 0.0
    %1159 = vmatpush1.msra.mxu0 0.0
    %1160 = vmatprep.subr.mxu0 0.0
    %1161 = vmatpush1.msra.mxu0 0.0
    %1162 = vmatprep.subr.mxu0 0.0
    %1163 = vmatpush1.msra.mxu0 0.0
    %1164 = vmatprep.subr.mxu0 0.0
    %1165 = vmatpush1.msra.mxu0 0.0
    %1166 = vmatprep.subr.mxu0 0.0
    %1167 = vmatpush1.msra.mxu0 0.0
    %1168 = vmatprep.subr.mxu0 0.0
    %1169 = vmatpush1.msra.mxu0 0.0
    %1170 = vmatprep.subr.mxu0 0.0
    %1171 = vmatpush1.msra.mxu0 0.0
    %1172 = vmatprep.subr.mxu0 0.0
    %1173 = vmatpush1.msra.mxu0 0.0
    %1174 = vmatprep.subr.mxu0 0.0
    %1175 = vmatpush1.msra.mxu0 0.0
    %1176 = vmatprep.subr.mxu0 0.0
    %1177 = vmatpush1.msra.mxu0 0.0
    %1178 = vmatprep.subr.mxu0 0.0
    %1179 = vmatpush1.msra.mxu0 0.0
    %1180 = vmatprep.subr.mxu0 0.0
    %1181 = vmatpush1.msra.mxu0 0.0
    %1182 = vmatprep.subr.mxu0 0.0
    %1183 = vmatpush1.msra.mxu0 0.0
    %1184 = vmatprep.subr.mxu0 0.0
    %1185 = vmatpush1.msra.mxu0 0.0
    %1186 = vmatprep.subr.mxu0 0.0
    %1187 = vmatpush1.msra.mxu0 0.0
    %1188 = vmatprep.subr.mxu0 0.0
    %1189 = vmatpush1.msra.mxu0 0.0
    %1190 = vmatprep.subr.mxu0 0.0
    %1191 = vmatpush1.msra.mxu0 0.0
    %1192 = vmatprep.subr.mxu0 0.0
    %1193 = vmatpush1.msra.mxu0 0.0
    %1194 = vmatprep.subr.mxu0 0.0
    %1195 = vmatpush1.msra.mxu0 0.0
    %1196 = vmatprep.subr.mxu0 0.0
    %1197 = vmatpush1.msra.mxu0 0.0
    %1198 = vmatprep.mubr.f32.mxu0 0.0
    %1199 = vmatmul.mubr.f32.gmra.mrb[0].mxu0 %v1132
    %v1200 = vpop.f32.mrb[0].mxu0
    %v1201 = vadd.f32 0.0, %v1200
    %v1202 = vpop.f32.mrb[0].mxu0
    %1203 = vdwg.mxu0
    %1205 = vrot.lane.b32.xlu0 %v1128, 80
    %v1206 = vpop.permute.xlu0 %1205
    %v1207 = vsel %vm479, %v1206, 0
    %1209 = vmatprep.subr.mxu0 0.0
    %1210 = vmatpush1.msra.mxu0 %v475
    %1211 = vmatprep.subr.mxu0 0.0
    %1212 = vmatpush1.msra.mxu0 %v476
    %1213 = vmatprep.subr.mxu0 0.0
    %1214 = vmatpush1.msra.mxu0 0.0
    %1215 = vmatprep.subr.mxu0 0.0
    %1216 = vmatpush1.msra.mxu0 0.0
    %1217 = vmatprep.subr.mxu0 0.0
    %1218 = vmatpush1.msra.mxu0 0.0
    %1219 = vmatprep.subr.mxu0 0.0
    %1220 = vmatpush1.msra.mxu0 0.0
    %1221 = vmatprep.subr.mxu0 0.0
    %1222 = vmatpush1.msra.mxu0 0.0
    %1223 = vmatprep.subr.mxu0 0.0
    %1224 = vmatpush1.msra.mxu0 0.0
    %1225 = vmatprep.subr.mxu0 0.0
    %1226 = vmatpush1.msra.mxu0 0.0
    %1227 = vmatprep.subr.mxu0 0.0
    %1228 = vmatpush1.msra.mxu0 0.0
    %1229 = vmatprep.subr.mxu0 0.0
    %1230 = vmatpush1.msra.mxu0 0.0
    %1231 = vmatprep.subr.mxu0 0.0
    %1232 = vmatpush1.msra.mxu0 0.0
    %1233 = vmatprep.subr.mxu0 0.0
    %1234 = vmatpush1.msra.mxu0 0.0
    %1235 = vmatprep.subr.mxu0 0.0
    %1236 = vmatpush1.msra.mxu0 0.0
    %1237 = vmatprep.subr.mxu0 0.0
    %1238 = vmatpush1.msra.mxu0 0.0
    %1239 = vmatprep.subr.mxu0 0.0
    %1240 = vmatpush1.msra.mxu0 0.0
    %1241 = vmatprep.subr.mxu0 0.0
    %1242 = vmatpush1.msra.mxu0 0.0
    %1243 = vmatprep.subr.mxu0 0.0
    %1244 = vmatpush1.msra.mxu0 0.0
    %1245 = vmatprep.subr.mxu0 0.0
    %1246 = vmatpush1.msra.mxu0 0.0
    %1247 = vmatprep.subr.mxu0 0.0
    %1248 = vmatpush1.msra.mxu0 0.0
    %1249 = vmatprep.subr.mxu0 0.0
    %1250 = vmatpush1.msra.mxu0 0.0
    %1251 = vmatprep.subr.mxu0 0.0
    %1252 = vmatpush1.msra.mxu0 0.0
    %1253 = vmatprep.subr.mxu0 0.0
    %1254 = vmatpush1.msra.mxu0 0.0
    %1255 = vmatprep.subr.mxu0 0.0
    %1256 = vmatpush1.msra.mxu0 0.0
    %1257 = vmatprep.subr.mxu0 0.0
    %1258 = vmatpush1.msra.mxu0 0.0
    %1259 = vmatprep.subr.mxu0 0.0
    %1260 = vmatpush1.msra.mxu0 0.0
    %1261 = vmatprep.subr.mxu0 0.0
    %1262 = vmatpush1.msra.mxu0 0.0
    %1263 = vmatprep.subr.mxu0 0.0
    %1264 = vmatpush1.msra.mxu0 0.0
    %1265 = vmatprep.subr.mxu0 0.0
    %1266 = vmatpush1.msra.mxu0 0.0
    %1267 = vmatprep.subr.mxu0 0.0
    %1268 = vmatpush1.msra.mxu0 0.0
    %1269 = vmatprep.subr.mxu0 0.0
    %1270 = vmatpush1.msra.mxu0 0.0
    %1271 = vmatprep.subr.mxu0 0.0
    %1272 = vmatpush1.msra.mxu0 0.0
    %1273 = vmatprep.mubr.f32.mxu0 0.0
    %1274 = vmatmul.mubr.f32.gmra.mrb[0].mxu0 %v1207
    %v1275 = vpop.f32.mrb[0].mxu0
    %v1276 = vadd.f32 %v1201, %v1275
    %v1277 = vpop.f32.mrb[0].mxu0
    %1278 = vdwg.mxu0
    %v1279 = vadd.f32 %v1276, %v726
    %v1280 = vxor.u32 %v1279, 2147483648
    %v1281 = vmul.f32 %v1280, 1.442695
    %v1282 = vpow.pop %v1281
    %v1283 = vadd.f32 %v1282, 1.0
    %v1284 = vrcp.pop %v1283
    %v1285 = vmul.f32 1.0, %v1284
    %v1286 = vtanh.pop %v1279
    %v1287 = vmul.f32 %v1285, %v1023
    %1289 = vrot.lane.b32.xlu0 %v1286, 96
    %v1290 = vpop.permute.xlu0 %1289
    %v1292 = vmul.f32 %v1285, %v1290
    %1294 = vrot.lane.b32.xlu0 %v1292, 16
    %v1295 = vpop.permute.xlu0 %1294
    %v1297 = vadd.f32 %v1287, %v1295
    %v1298 = vtanh.pop %v1297
    %1300 = vrot.lane.b32.xlu0 %v1298, 32
    %v1301 = vpop.permute.xlu0 %1300
    %v1303 = vmul.f32 %v1285, %v1301
    %1304 = vmatprep.subr.mxu0 0.0
    %1305 = vmatpush1.msra.mxu0 %v473
    %1306 = vmatprep.subr.mxu0 0.0
    %1307 = vmatpush1.msra.mxu0 %v474
    %1308 = vmatprep.subr.mxu0 0.0
    %1309 = vmatpush1.msra.mxu0 0.0
    %1310 = vmatprep.subr.mxu0 0.0
    %1311 = vmatpush1.msra.mxu0 0.0
    %1312 = vmatprep.subr.mxu0 0.0
    %1313 = vmatpush1.msra.mxu0 0.0
    %1314 = vmatprep.subr.mxu0 0.0
    %1315 = vmatpush1.msra.mxu0 0.0
    %1316 = vmatprep.subr.mxu0 0.0
    %1317 = vmatpush1.msra.mxu0 0.0
    %1318 = vmatprep.subr.mxu0 0.0
    %1319 = vmatpush1.msra.mxu0 0.0
    %1320 = vmatprep.subr.mxu0 0.0
    %1321 = vmatpush1.msra.mxu0 0.0
    %1322 = vmatprep.subr.mxu0 0.0
    %1323 = vmatpush1.msra.mxu0 0.0
    %1324 = vmatprep.subr.mxu0 0.0
    %1325 = vmatpush1.msra.mxu0 0.0
    %1326 = vmatprep.subr.mxu0 0.0
    %1327 = vmatpush1.msra.mxu0 0.0
    %1328 = vmatprep.subr.mxu0 0.0
    %1329 = vmatpush1.msra.mxu0 0.0
    %1330 = vmatprep.subr.mxu0 0.0
    %1331 = vmatpush1.msra.mxu0 0.0
    %1332 = vmatprep.subr.mxu0 0.0
    %1333 = vmatpush1.msra.mxu0 0.0
    %1334 = vmatprep.subr.mxu0 0.0
    %1335 = vmatpush1.msra.mxu0 0.0
    %1336 = vmatprep.subr.mxu0 0.0
    %1337 = vmatpush1.msra.mxu0 0.0
    %1338 = vmatprep.subr.mxu0 0.0
    %1339 = vmatpush1.msra.mxu0 0.0
    %1340 = vmatprep.subr.mxu0 0.0
    %1341 = vmatpush1.msra.mxu0 0.0
    %1342 = vmatprep.subr.mxu0 0.0
    %1343 = vmatpush1.msra.mxu0 0.0
    %1344 = vmatprep.subr.mxu0 0.0
    %1345 = vmatpush1.msra.mxu0 0.0
    %1346 = vmatprep.subr.mxu0 0.0
    %1347 = vmatpush1.msra.mxu0 0.0
    %1348 = vmatprep.subr.mxu0 0.0
    %1349 = vmatpush1.msra.mxu0 0.0
    %1350 = vmatprep.subr.mxu0 0.0
    %1351 = vmatpush1.msra.mxu0 0.0
    %1352 = vmatprep.subr.mxu0 0.0
    %1353 = vmatpush1.msra.mxu0 0.0
    %1354 = vmatprep.subr.mxu0 0.0
    %1355 = vmatpush1.msra.mxu0 0.0
    %1356 = vmatprep.subr.mxu0 0.0
    %1357 = vmatpush1.msra.mxu0 0.0
    %1358 = vmatprep.subr.mxu0 0.0
    %1359 = vmatpush1.msra.mxu0 0.0
    %1360 = vmatprep.subr.mxu0 0.0
    %1361 = vmatpush1.msra.mxu0 0.0
    %1362 = vmatprep.subr.mxu0 0.0
    %1363 = vmatpush1.msra.mxu0 0.0
    %1364 = vmatprep.subr.mxu0 0.0
    %1365 = vmatpush1.msra.mxu0 0.0
    %1366 = vmatprep.subr.mxu0 0.0
    %1367 = vmatpush1.msra.mxu0 0.0
    %1368 = vmatprep.mubr.f32.mxu0 0.0
    %1369 = vmatmul.mubr.f32.gmra.mrb[0].mxu0 %v1207
    %v1370 = vpop.f32.mrb[0].mxu0
    %v1371 = vadd.f32 0.0, %v1370
    %v1372 = vpop.f32.mrb[0].mxu0
    %1373 = vdwg.mxu0
    %1375 = vrot.lane.b32.xlu0 %v1371, 64
    %v1376 = vpop.permute.xlu0 %1375
    %v1378 = vadd.f32 %v400, %v1376
    %v1379 = vxor.u32 %v1378, 2147483648
    %v1380 = vmul.f32 %v1379, 1.442695
    %v1381 = vpow.pop %v1380
    %v1382 = vadd.f32 %v1381, 1.0
    %v1383 = vrcp.pop %v1382
    %v1384 = vmul.f32 1.0, %v1383
    %v1385 = vtanh.pop %v1378
    %1387 = vrot.lane.b32.xlu0 %v1122, 64
    %v1388 = vpop.permute.xlu0 %1387
    %v1390 = vmul.f32 %v1384, %v1388
    %1392 = vrot.lane.b32.xlu0 %v1385, 96
    %v1393 = vpop.permute.xlu0 %1392
    %v1395 = vmul.f32 %v1384, %v1393
    %1397 = vrot.lane.b32.xlu0 %v1395, 16
    %v1398 = vpop.permute.xlu0 %1397
    %v1400 = vadd.f32 %v1390, %v1398
    %v1401 = vtanh.pop %v1400
    %1403 = vrot.lane.b32.xlu0 %v1401, 32
    %v1404 = vpop.permute.xlu0 %1403
    %v1406 = vmul.f32 %v1384, %v1404
    %1408 = vrot.lane.b32.xlu0 %v1303, 80
    %v1409 = vpop.permute.xlu0 %1408
    %v1410 = vsel %vm479, %v1409, 0
    %1412 = vmatprep.subr.mxu0 0.0
    %1413 = vmatpush1.msra.mxu0 %v477
    %1414 = vmatprep.subr.mxu0 0.0
    %1415 = vmatpush1.msra.mxu0 %v478
    %1416 = vmatprep.subr.mxu0 0.0
    %1417 = vmatpush1.msra.mxu0 0.0
    %1418 = vmatprep.subr.mxu0 0.0
    %1419 = vmatpush1.msra.mxu0 0.0
    %1420 = vmatprep.subr.mxu0 0.0
    %1421 = vmatpush1.msra.mxu0 0.0
    %1422 = vmatprep.subr.mxu0 0.0
    %1423 = vmatpush1.msra.mxu0 0.0
    %1424 = vmatprep.subr.mxu0 0.0
    %1425 = vmatpush1.msra.mxu0 0.0
    %1426 = vmatprep.subr.mxu0 0.0
    %1427 = vmatpush1.msra.mxu0 0.0
    %1428 = vmatprep.subr.mxu0 0.0
    %1429 = vmatpush1.msra.mxu0 0.0
    %1430 = vmatprep.subr.mxu0 0.0
    %1431 = vmatpush1.msra.mxu0 0.0
    %1432 = vmatprep.subr.mxu0 0.0
    %1433 = vmatpush1.msra.mxu0 0.0
    %1434 = vmatprep.subr.mxu0 0.0
    %1435 = vmatpush1.msra.mxu0 0.0
    %1436 = vmatprep.subr.mxu0 0.0
    %1437 = vmatpush1.msra.mxu0 0.0
    %1438 = vmatprep.subr.mxu0 0.0
    %1439 = vmatpush1.msra.mxu0 0.0
    %1440 = vmatprep.subr.mxu0 0.0
    %1441 = vmatpush1.msra.mxu0 0.0
    %1442 = vmatprep.subr.mxu0 0.0
    %1443 = vmatpush1.msra.mxu0 0.0
    %1444 = vmatprep.subr.mxu0 0.0
    %1445 = vmatpush1.msra.mxu0 0.0
    %1446 = vmatprep.subr.mxu0 0.0
    %1447 = vmatpush1.msra.mxu0 0.0
    %1448 = vmatprep.subr.mxu0 0.0
    %1449 = vmatpush1.msra.mxu0 0.0
    %1450 = vmatprep.subr.mxu0 0.0
    %1451 = vmatpush1.msra.mxu0 0.0
    %1452 = vmatprep.subr.mxu0 0.0
    %1453 = vmatpush1.msra.mxu0 0.0
    %1454 = vmatprep.subr.mxu0 0.0
    %1455 = vmatpush1.msra.mxu0 0.0
    %1456 = vmatprep.subr.mxu0 0.0
    %1457 = vmatpush1.msra.mxu0 0.0
    %1458 = vmatprep.subr.mxu0 0.0
    %1459 = vmatpush1.msra.mxu0 0.0
    %1460 = vmatprep.subr.mxu0 0.0
    %1461 = vmatpush1.msra.mxu0 0.0
    %1462 = vmatprep.subr.mxu0 0.0
    %1463 = vmatpush1.msra.mxu0 0.0
    %1464 = vmatprep.subr.mxu0 0.0
    %1465 = vmatpush1.msra.mxu0 0.0
    %1466 = vmatprep.subr.mxu0 0.0
    %1467 = vmatpush1.msra.mxu0 0.0
    %1468 = vmatprep.subr.mxu0 0.0
    %1469 = vmatpush1.msra.mxu0 0.0
    %1470 = vmatprep.subr.mxu0 0.0
    %1471 = vmatpush1.msra.mxu0 0.0
    %1472 = vmatprep.subr.mxu0 0.0
    %1473 = vmatpush1.msra.mxu0 0.0
    %1474 = vmatprep.subr.mxu0 0.0
    %1475 = vmatpush1.msra.mxu0 0.0
    %1476 = vmatprep.mubr.f32.mxu0 0.0
    %1477 = vmatmul.mubr.f32.gmra.mrb[0].mxu0 %v1410
    %v1478 = vpop.f32.mrb[0].mxu0
    %v1479 = vadd.f32 0.0, %v1478
    %v1480 = vpop.f32.mrb[0].mxu0
    %1481 = vdwg.mxu0
    %1483 = vrot.lane.b32.xlu0 %v1406, 16
    %v1484 = vpop.permute.xlu0 %1483
    %v1485 = vsel %vm479, %v1484, 0
    %1487 = vmatprep.subr.mxu0 0.0
    %1488 = vmatpush1.msra.mxu0 %v475
    %1489 = vmatprep.subr.mxu0 0.0
    %1490 = vmatpush1.msra.mxu0 %v476
    %1491 = vmatprep.subr.mxu0 0.0
    %1492 = vmatpush1.msra.mxu0 0.0
    %1493 = vmatprep.subr.mxu0 0.0
    %1494 = vmatpush1.msra.mxu0 0.0
    %1495 = vmatprep.subr.mxu0 0.0
    %1496 = vmatpush1.msra.mxu0 0.0
    %1497 = vmatprep.subr.mxu0 0.0
    %1498 = vmatpush1.msra.mxu0 0.0
    %1499 = vmatprep.subr.mxu0 0.0
    %1500 = vmatpush1.msra.mxu0 0.0
    %1501 = vmatprep.subr.mxu0 0.0
    %1502 = vmatpush1.msra.mxu0 0.0
    %1503 = vmatprep.subr.mxu0 0.0
    %1504 = vmatpush1.msra.mxu0 0.0
    %1505 = vmatprep.subr.mxu0 0.0
    %1506 = vmatpush1.msra.mxu0 0.0
    %1507 = vmatprep.subr.mxu0 0.0
    %1508 = vmatpush1.msra.mxu0 0.0
    %1509 = vmatprep.subr.mxu0 0.0
    %1510 = vmatpush1.msra.mxu0 0.0
    %1511 = vmatprep.subr.mxu0 0.0
    %1512 = vmatpush1.msra.mxu0 0.0
    %1513 = vmatprep.subr.mxu0 0.0
    %1514 = vmatpush1.msra.mxu0 0.0
    %1515 = vmatprep.subr.mxu0 0.0
    %1516 = vmatpush1.msra.mxu0 0.0
    %1517 = vmatprep.subr.mxu0 0.0
    %1518 = vmatpush1.msra.mxu0 0.0
    %1519 = vmatprep.subr.mxu0 0.0
    %1520 = vmatpush1.msra.mxu0 0.0
    %1521 = vmatprep.subr.mxu0 0.0
    %1522 = vmatpush1.msra.mxu0 0.0
    %1523 = vmatprep.subr.mxu0 0.0
    %1524 = vmatpush1.msra.mxu0 0.0
    %1525 = vmatprep.subr.mxu0 0.0
    %1526 = vmatpush1.msra.mxu0 0.0
    %1527 = vmatprep.subr.mxu0 0.0
    %1528 = vmatpush1.msra.mxu0 0.0
    %1529 = vmatprep.subr.mxu0 0.0
    %1530 = vmatpush1.msra.mxu0 0.0
    %1531 = vmatprep.subr.mxu0 0.0
    %1532 = vmatpush1.msra.mxu0 0.0
    %1533 = vmatprep.subr.mxu0 0.0
    %1534 = vmatpush1.msra.mxu0 0.0
    %1535 = vmatprep.subr.mxu0 0.0
    %1536 = vmatpush1.msra.mxu0 0.0
    %1537 = vmatprep.subr.mxu0 0.0
    %1538 = vmatpush1.msra.mxu0 0.0
    %1539 = vmatprep.subr.mxu0 0.0
    %1540 = vmatpush1.msra.mxu0 0.0
    %1541 = vmatprep.subr.mxu0 0.0
    %1542 = vmatpush1.msra.mxu0 0.0
    %1543 = vmatprep.subr.mxu0 0.0
    %1544 = vmatpush1.msra.mxu0 0.0
    %1545 = vmatprep.subr.mxu0 0.0
    %1546 = vmatpush1.msra.mxu0 0.0
    %1547 = vmatprep.subr.mxu0 0.0
    %1548 = vmatpush1.msra.mxu0 0.0
    %1549 = vmatprep.subr.mxu0 0.0
    %1550 = vmatpush1.msra.mxu0 0.0
    %1551 = vmatprep.mubr.f32.mxu0 0.0
    %1552 = vmatmul.mubr.f32.gmra.mrb[0].mxu0 %v1485
    %v1553 = vpop.f32.mrb[0].mxu0
    %v1554 = vadd.f32 %v1479, %v1553
    %v1555 = vpop.f32.mrb[0].mxu0
    %1556 = vdwg.mxu0
    %v1557 = vadd.f32 %v1554, %v726
    %v1558 = vxor.u32 %v1557, 2147483648
    %v1559 = vmul.f32 %v1558, 1.442695
    %v1560 = vpow.pop %v1559
    %v1561 = vadd.f32 %v1560, 1.0
    %v1562 = vrcp.pop %v1561
    %v1563 = vmul.f32 1.0, %v1562
    %v1564 = vtanh.pop %v1557
    %v1565 = vmul.f32 %v1563, %v1297
    %1567 = vrot.lane.b32.xlu0 %v1564, 96
    %v1568 = vpop.permute.xlu0 %1567
    %v1570 = vmul.f32 %v1563, %v1568
    %1572 = vrot.lane.b32.xlu0 %v1570, 16
    %v1573 = vpop.permute.xlu0 %1572
    %v1575 = vadd.f32 %v1565, %v1573
    %v1576 = vtanh.pop %v1575
    %1578 = vrot.lane.b32.xlu0 %v1576, 32
    %v1579 = vpop.permute.xlu0 %1578
    %v1581 = vmul.f32 %v1563, %v1579
    %1582 = vmatprep.subr.mxu0 0.0
    %1583 = vmatpush1.msra.mxu0 %v473
    %1584 = vmatprep.subr.mxu0 0.0
    %1585 = vmatpush1.msra.mxu0 %v474
    %1586 = vmatprep.subr.mxu0 0.0
    %1587 = vmatpush1.msra.mxu0 0.0
    %1588 = vmatprep.subr.mxu0 0.0
    %1589 = vmatpush1.msra.mxu0 0.0
    %1590 = vmatprep.subr.mxu0 0.0
    %1591 = vmatpush1.msra.mxu0 0.0
    %1592 = vmatprep.subr.mxu0 0.0
    %1593 = vmatpush1.msra.mxu0 0.0
    %1594 = vmatprep.subr.mxu0 0.0
    %1595 = vmatpush1.msra.mxu0 0.0
    %1596 = vmatprep.subr.mxu0 0.0
    %1597 = vmatpush1.msra.mxu0 0.0
    %1598 = vmatprep.subr.mxu0 0.0
    %1599 = vmatpush1.msra.mxu0 0.0
    %1600 = vmatprep.subr.mxu0 0.0
    %1601 = vmatpush1.msra.mxu0 0.0
    %1602 = vmatprep.subr.mxu0 0.0
    %1603 = vmatpush1.msra.mxu0 0.0
    %1604 = vmatprep.subr.mxu0 0.0
    %1605 = vmatpush1.msra.mxu0 0.0
    %1606 = vmatprep.subr.mxu0 0.0
    %1607 = vmatpush1.msra.mxu0 0.0
    %1608 = vmatprep.subr.mxu0 0.0
    %1609 = vmatpush1.msra.mxu0 0.0
    %1610 = vmatprep.subr.mxu0 0.0
    %1611 = vmatpush1.msra.mxu0 0.0
    %1612 = vmatprep.subr.mxu0 0.0
    %1613 = vmatpush1.msra.mxu0 0.0
    %1614 = vmatprep.subr.mxu0 0.0
    %1615 = vmatpush1.msra.mxu0 0.0
    %1616 = vmatprep.subr.mxu0 0.0
    %1617 = vmatpush1.msra.mxu0 0.0
    %1618 = vmatprep.subr.mxu0 0.0
    %1619 = vmatpush1.msra.mxu0 0.0
    %1620 = vmatprep.subr.mxu0 0.0
    %1621 = vmatpush1.msra.mxu0 0.0
    %1622 = vmatprep.subr.mxu0 0.0
    %1623 = vmatpush1.msra.mxu0 0.0
    %1624 = vmatprep.subr.mxu0 0.0
    %1625 = vmatpush1.msra.mxu0 0.0
    %1626 = vmatprep.subr.mxu0 0.0
    %1627 = vmatpush1.msra.mxu0 0.0
    %1628 = vmatprep.subr.mxu0 0.0
    %1629 = vmatpush1.msra.mxu0 0.0
    %1630 = vmatprep.subr.mxu0 0.0
    %1631 = vmatpush1.msra.mxu0 0.0
    %1632 = vmatprep.subr.mxu0 0.0
    %1633 = vmatpush1.msra.mxu0 0.0
    %1634 = vmatprep.subr.mxu0 0.0
    %1635 = vmatpush1.msra.mxu0 0.0
    %1636 = vmatprep.subr.mxu0 0.0
    %1637 = vmatpush1.msra.mxu0 0.0
    %1638 = vmatprep.subr.mxu0 0.0
    %1639 = vmatpush1.msra.mxu0 0.0
    %1640 = vmatprep.subr.mxu0 0.0
    %1641 = vmatpush1.msra.mxu0 0.0
    %1642 = vmatprep.subr.mxu0 0.0
    %1643 = vmatpush1.msra.mxu0 0.0
    %1644 = vmatprep.subr.mxu0 0.0
    %1645 = vmatpush1.msra.mxu0 0.0
    %1646 = vmatprep.mubr.f32.mxu0 0.0
    %1647 = vmatmul.mubr.f32.gmra.mrb[0].mxu0 %v1485
    %v1648 = vpop.f32.mrb[0].mxu0
    %v1649 = vadd.f32 0.0, %v1648
    %v1650 = vpop.f32.mrb[0].mxu0
    %1651 = vdwg.mxu0
    %v1652 = vadd.f32 %v469, %v1649
    %v1653 = vxor.u32 %v1652, 2147483648
    %v1654 = vmul.f32 %v1653, 1.442695
    %v1655 = vpow.pop %v1654
    %v1656 = vadd.f32 %v1655, 1.0
    %v1657 = vrcp.pop %v1656
    %v1658 = vmul.f32 1.0, %v1657
    %v1659 = vtanh.pop %v1652
    %1661 = vrot.lane.b32.xlu0 %v1400, 64
    %v1662 = vpop.permute.xlu0 %1661
    %v1664 = vmul.f32 %v1658, %v1662
    %1666 = vrot.lane.b32.xlu0 %v1659, 96
    %v1667 = vpop.permute.xlu0 %1666
    %v1669 = vmul.f32 %v1658, %v1667
    %1671 = vrot.lane.b32.xlu0 %v1669, 16
    %v1672 = vpop.permute.xlu0 %1671
    %v1674 = vadd.f32 %v1664, %v1672
    %v1675 = vtanh.pop %v1674
    %1677 = vrot.lane.b32.xlu0 %v1675, 32
    %v1678 = vpop.permute.xlu0 %1677
    %v1680 = vmul.f32 %v1658, %v1678
    %1682 = vrot.lane.b32.xlu0 %v1581, 80
    %v1683 = vpop.permute.xlu0 %1682
    %v1684 = vsel %vm479, %v1683, 0
    %1686 = vmatprep.subr.mxu0 0.0
    %1687 = vmatpush1.msra.mxu0 %v477
    %1688 = vmatprep.subr.mxu0 0.0
    %1689 = vmatpush1.msra.mxu0 %v478
    %1690 = vmatprep.subr.mxu0 0.0
    %1691 = vmatpush1.msra.mxu0 0.0
    %1692 = vmatprep.subr.mxu0 0.0
    %1693 = vmatpush1.msra.mxu0 0.0
    %1694 = vmatprep.subr.mxu0 0.0
    %1695 = vmatpush1.msra.mxu0 0.0
    %1696 = vmatprep.subr.mxu0 0.0
    %1697 = vmatpush1.msra.mxu0 0.0
    %1698 = vmatprep.subr.mxu0 0.0
    %1699 = vmatpush1.msra.mxu0 0.0
    %1700 = vmatprep.subr.mxu0 0.0
    %1701 = vmatpush1.msra.mxu0 0.0
    %1702 = vmatprep.subr.mxu0 0.0
    %1703 = vmatpush1.msra.mxu0 0.0
    %1704 = vmatprep.subr.mxu0 0.0
    %1705 = vmatpush1.msra.mxu0 0.0
    %1706 = vmatprep.subr.mxu0 0.0
    %1707 = vmatpush1.msra.mxu0 0.0
    %1708 = vmatprep.subr.mxu0 0.0
    %1709 = vmatpush1.msra.mxu0 0.0
    %1710 = vmatprep.subr.mxu0 0.0
    %1711 = vmatpush1.msra.mxu0 0.0
    %1712 = vmatprep.subr.mxu0 0.0
    %1713 = vmatpush1.msra.mxu0 0.0
    %1714 = vmatprep.subr.mxu0 0.0
    %1715 = vmatpush1.msra.mxu0 0.0
    %1716 = vmatprep.subr.mxu0 0.0
    %1717 = vmatpush1.msra.mxu0 0.0
    %1718 = vmatprep.subr.mxu0 0.0
    %1719 = vmatpush1.msra.mxu0 0.0
    %1720 = vmatprep.subr.mxu0 0.0
    %1721 = vmatpush1.msra.mxu0 0.0
    %1722 = vmatprep.subr.mxu0 0.0
    %1723 = vmatpush1.msra.mxu0 0.0
    %1724 = vmatprep.subr.mxu0 0.0
    %1725 = vmatpush1.msra.mxu0 0.0
    %1726 = vmatprep.subr.mxu0 0.0
    %1727 = vmatpush1.msra.mxu0 0.0
    %1728 = vmatprep.subr.mxu0 0.0
    %1729 = vmatpush1.msra.mxu0 0.0
    %1730 = vmatprep.subr.mxu0 0.0
    %1731 = vmatpush1.msra.mxu0 0.0
    %1732 = vmatprep.subr.mxu0 0.0
    %1733 = vmatpush1.msra.mxu0 0.0
    %1734 = vmatprep.subr.mxu0 0.0
    %1735 = vmatpush1.msra.mxu0 0.0
    %1736 = vmatprep.subr.mxu0 0.0
    %1737 = vmatpush1.msra.mxu0 0.0
    %1738 = vmatprep.subr.mxu0 0.0
    %1739 = vmatpush1.msra.mxu0 0.0
    %1740 = vmatprep.subr.mxu0 0.0
    %1741 = vmatpush1.msra.mxu0 0.0
    %1742 = vmatprep.subr.mxu0 0.0
    %1743 = vmatpush1.msra.mxu0 0.0
    %1744 = vmatprep.subr.mxu0 0.0
    %1745 = vmatpush1.msra.mxu0 0.0
    %1746 = vmatprep.subr.mxu0 0.0
    %1747 = vmatpush1.msra.mxu0 0.0
    %1748 = vmatprep.subr.mxu0 0.0
    %1749 = vmatpush1.msra.mxu0 0.0
    %1750 = vmatprep.mubr.f32.mxu0 0.0
    %1751 = vmatmul.mubr.f32.gmra.mrb[0].mxu0 %v1684
    %v1752 = vpop.f32.mrb[0].mxu0
    %v1753 = vadd.f32 0.0, %v1752
    %v1754 = vpop.f32.mrb[0].mxu0
    %1755 = vdwg.mxu0
    %1757 = vrot.lane.b32.xlu0 %v1680, 80
    %v1758 = vpop.permute.xlu0 %1757
    %v1759 = vsel %vm479, %v1758, 0
    %1761 = vmatprep.subr.mxu0 0.0
    %1762 = vmatpush1.msra.mxu0 %v475
    %1763 = vmatprep.subr.mxu0 0.0
    %1764 = vmatpush1.msra.mxu0 %v476
    %1765 = vmatprep.subr.mxu0 0.0
    %1766 = vmatpush1.msra.mxu0 0.0
    %1767 = vmatprep.subr.mxu0 0.0
    %1768 = vmatpush1.msra.mxu0 0.0
    %1769 = vmatprep.subr.mxu0 0.0
    %1770 = vmatpush1.msra.mxu0 0.0
    %1771 = vmatprep.subr.mxu0 0.0
    %1772 = vmatpush1.msra.mxu0 0.0
    %1773 = vmatprep.subr.mxu0 0.0
    %1774 = vmatpush1.msra.mxu0 0.0
    %1775 = vmatprep.subr.mxu0 0.0
    %1776 = vmatpush1.msra.mxu0 0.0
    %1777 = vmatprep.subr.mxu0 0.0
    %1778 = vmatpush1.msra.mxu0 0.0
    %1779 = vmatprep.subr.mxu0 0.0
    %1780 = vmatpush1.msra.mxu0 0.0
    %1781 = vmatprep.subr.mxu0 0.0
    %1782 = vmatpush1.msra.mxu0 0.0
    %1783 = vmatprep.subr.mxu0 0.0
    %1784 = vmatpush1.msra.mxu0 0.0
    %1785 = vmatprep.subr.mxu0 0.0
    %1786 = vmatpush1.msra.mxu0 0.0
    %1787 = vmatprep.subr.mxu0 0.0
    %1788 = vmatpush1.msra.mxu0 0.0
    %1789 = vmatprep.subr.mxu0 0.0
    %1790 = vmatpush1.msra.mxu0 0.0
    %1791 = vmatprep.subr.mxu0 0.0
    %1792 = vmatpush1.msra.mxu0 0.0
    %1793 = vmatprep.subr.mxu0 0.0
    %1794 = vmatpush1.msra.mxu0 0.0
    %1795 = vmatprep.subr.mxu0 0.0
    %1796 = vmatpush1.msra.mxu0 0.0
    %1797 = vmatprep.subr.mxu0 0.0
    %1798 = vmatpush1.msra.mxu0 0.0
    %1799 = vmatprep.subr.mxu0 0.0
    %1800 = vmatpush1.msra.mxu0 0.0
    %1801 = vmatprep.subr.mxu0 0.0
    %1802 = vmatpush1.msra.mxu0 0.0
    %1803 = vmatprep.subr.mxu0 0.0
    %1804 = vmatpush1.msra.mxu0 0.0
    %1805 = vmatprep.subr.mxu0 0.0
    %1806 = vmatpush1.msra.mxu0 0.0
    %1807 = vmatprep.subr.mxu0 0.0
    %1808 = vmatpush1.msra.mxu0 0.0
    %1809 = vmatprep.subr.mxu0 0.0
    %1810 = vmatpush1.msra.mxu0 0.0
    %1811 = vmatprep.subr.mxu0 0.0
    %1812 = vmatpush1.msra.mxu0 0.0
    %1813 = vmatprep.subr.mxu0 0.0
    %1814 = vmatpush1.msra.mxu0 0.0
    %1815 = vmatprep.subr.mxu0 0.0
    %1816 = vmatpush1.msra.mxu0 0.0
    %1817 = vmatprep.subr.mxu0 0.0
    %1818 = vmatpush1.msra.mxu0 0.0
    %1819 = vmatprep.subr.mxu0 0.0
    %1820 = vmatpush1.msra.mxu0 0.0
    %1821 = vmatprep.subr.mxu0 0.0
    %1822 = vmatpush1.msra.mxu0 0.0
    %1823 = vmatprep.subr.mxu0 0.0
    %1824 = vmatpush1.msra.mxu0 0.0
    %1825 = vmatprep.mubr.f32.mxu0 0.0
    %1826 = vmatmul.mubr.f32.gmra.mrb[0].mxu0 %v1759
    %v1827 = vpop.f32.mrb[0].mxu0
    %v1828 = vadd.f32 %v1753, %v1827
    %v1829 = vpop.f32.mrb[0].mxu0
    %1830 = vdwg.mxu0
    %v1831 = vadd.f32 %v1828, %v726
    %v1832 = vxor.u32 %v1831, 2147483648
    %v1833 = vmul.f32 %v1832, 1.442695
    %v1834 = vpow.pop %v1833
    %v1835 = vadd.f32 %v1834, 1.0
    %v1836 = vrcp.pop %v1835
    %v1837 = vmul.f32 1.0, %v1836
    %v1838 = vtanh.pop %v1831
    %v1839 = vmul.f32 %v1837, %v1575
    %1841 = vrot.lane.b32.xlu0 %v1838, 96
    %v1842 = vpop.permute.xlu0 %1841
    %v1844 = vmul.f32 %v1837, %v1842
    %1846 = vrot.lane.b32.xlu0 %v1844, 16
    %v1847 = vpop.permute.xlu0 %1846
    %v1849 = vadd.f32 %v1839, %v1847
    %v1850 = vtanh.pop %v1849
    %1852 = vrot.lane.b32.xlu0 %v1850, 32
    %v1853 = vpop.permute.xlu0 %1852
    %v1855 = vmul.f32 %v1837, %v1853
    %1856 = vmatprep.subr.mxu0 0.0
    %1857 = vmatpush1.msra.mxu0 %v473
    %1858 = vmatprep.subr.mxu0 0.0
    %1859 = vmatpush1.msra.mxu0 %v474
    %1860 = vmatprep.subr.mxu0 0.0
    %1861 = vmatpush1.msra.mxu0 0.0
    %1862 = vmatprep.subr.mxu0 0.0
    %1863 = vmatpush1.msra.mxu0 0.0
    %1864 = vmatprep.subr.mxu0 0.0
    %1865 = vmatpush1.msra.mxu0 0.0
    %1866 = vmatprep.subr.mxu0 0.0
    %1867 = vmatpush1.msra.mxu0 0.0
    %1868 = vmatprep.subr.mxu0 0.0
    %1869 = vmatpush1.msra.mxu0 0.0
    %1870 = vmatprep.subr.mxu0 0.0
    %1871 = vmatpush1.msra.mxu0 0.0
    %1872 = vmatprep.subr.mxu0 0.0
    %1873 = vmatpush1.msra.mxu0 0.0
    %1874 = vmatprep.subr.mxu0 0.0
    %1875 = vmatpush1.msra.mxu0 0.0
    %1876 = vmatprep.subr.mxu0 0.0
    %1877 = vmatpush1.msra.mxu0 0.0
    %1878 = vmatprep.subr.mxu0 0.0
    %1879 = vmatpush1.msra.mxu0 0.0
    %1880 = vmatprep.subr.mxu0 0.0
    %1881 = vmatpush1.msra.mxu0 0.0
    %1882 = vmatprep.subr.mxu0 0.0
    %1883 = vmatpush1.msra.mxu0 0.0
    %1884 = vmatprep.subr.mxu0 0.0
    %1885 = vmatpush1.msra.mxu0 0.0
    %1886 = vmatprep.subr.mxu0 0.0
    %1887 = vmatpush1.msra.mxu0 0.0
    %1888 = vmatprep.subr.mxu0 0.0
    %1889 = vmatpush1.msra.mxu0 0.0
    %1890 = vmatprep.subr.mxu0 0.0
    %1891 = vmatpush1.msra.mxu0 0.0
    %1892 = vmatprep.subr.mxu0 0.0
    %1893 = vmatpush1.msra.mxu0 0.0
    %1894 = vmatprep.subr.mxu0 0.0
    %1895 = vmatpush1.msra.mxu0 0.0
    %1896 = vmatprep.subr.mxu0 0.0
    %1897 = vmatpush1.msra.mxu0 0.0
    %1898 = vmatprep.subr.mxu0 0.0
    %1899 = vmatpush1.msra.mxu0 0.0
    %1900 = vmatprep.subr.mxu0 0.0
    %1901 = vmatpush1.msra.mxu0 0.0
    %1902 = vmatprep.subr.mxu0 0.0
    %1903 = vmatpush1.msra.mxu0 0.0
    %1904 = vmatprep.subr.mxu0 0.0
    %1905 = vmatpush1.msra.mxu0 0.0
    %1906 = vmatprep.subr.mxu0 0.0
    %1907 = vmatpush1.msra.mxu0 0.0
    %1908 = vmatprep.subr.mxu0 0.0
    %1909 = vmatpush1.msra.mxu0 0.0
    %1910 = vmatprep.subr.mxu0 0.0
    %1911 = vmatpush1.msra.mxu0 0.0
    %1912 = vmatprep.subr.mxu0 0.0
    %1913 = vmatpush1.msra.mxu0 0.0
    %1914 = vmatprep.subr.mxu0 0.0
    %1915 = vmatpush1.msra.mxu0 0.0
    %1916 = vmatprep.subr.mxu0 0.0
    %1917 = vmatpush1.msra.mxu0 0.0
    %1918 = vmatprep.subr.mxu0 0.0
    %1919 = vmatpush1.msra.mxu0 0.0
    %1920 = vmatprep.mubr.f32.mxu0 0.0
    %1921 = vmatmul.mubr.f32.gmra.mrb[0].mxu0 %v1759
    %v1922 = vpop.f32.mrb[0].mxu0
    %v1923 = vadd.f32 0.0, %v1922
    %v1924 = vpop.f32.mrb[0].mxu0
    %1925 = vdwg.mxu0
    %1927 = vrot.lane.b32.xlu0 %v1923, 64
    %v1928 = vpop.permute.xlu0 %1927
    %v1930 = vadd.f32 %v469, %v1928
    %v1931 = vxor.u32 %v1930, 2147483648
    %v1932 = vmul.f32 %v1931, 1.442695
    %v1933 = vpow.pop %v1932
    %v1934 = vadd.f32 %v1933, 1.0
    %v1935 = vrcp.pop %v1934
    %v1936 = vmul.f32 1.0, %v1935
    %v1937 = vtanh.pop %v1930
    %1939 = vrot.lane.b32.xlu0 %v1674, 64
    %v1940 = vpop.permute.xlu0 %1939
    %v1942 = vmul.f32 %v1936, %v1940
    %1944 = vrot.lane.b32.xlu0 %v1937, 96
    %v1945 = vpop.permute.xlu0 %1944
    %v1947 = vmul.f32 %v1936, %v1945
    %1949 = vrot.lane.b32.xlu0 %v1947, 16
    %v1950 = vpop.permute.xlu0 %1949
    %v1952 = vadd.f32 %v1942, %v1950
    %v1953 = vtanh.pop %v1952
    %1955 = vrot.lane.b32.xlu0 %v1953, 32
    %v1956 = vpop.permute.xlu0 %1955
    %v1958 = vmul.f32 %v1936, %v1956
    %1960 = vrot.lane.b32.xlu0 %v1855, 80
    %v1961 = vpop.permute.xlu0 %1960
    %v1962 = vsel %vm479, %v1961, 0
    %1964 = vmatprep.subr.mxu0 0.0
    %1965 = vmatpush1.msra.mxu0 %v477
    %1966 = vmatprep.subr.mxu0 0.0
    %1967 = vmatpush1.msra.mxu0 %v478
    %1968 = vmatprep.subr.mxu0 0.0
    %1969 = vmatpush1.msra.mxu0 0.0
    %1970 = vmatprep.subr.mxu0 0.0
    %1971 = vmatpush1.msra.mxu0 0.0
    %1972 = vmatprep.subr.mxu0 0.0
    %1973 = vmatpush1.msra.mxu0 0.0
    %1974 = vmatprep.subr.mxu0 0.0
    %1975 = vmatpush1.msra.mxu0 0.0
    %1976 = vmatprep.subr.mxu0 0.0
    %1977 = vmatpush1.msra.mxu0 0.0
    %1978 = vmatprep.subr.mxu0 0.0
    %1979 = vmatpush1.msra.mxu0 0.0
    %1980 = vmatprep.subr.mxu0 0.0
    %1981 = vmatpush1.msra.mxu0 0.0
    %1982 = vmatprep.subr.mxu0 0.0
    %1983 = vmatpush1.msra.mxu0 0.0
    %1984 = vmatprep.subr.mxu0 0.0
    %1985 = vmatpush1.msra.mxu0 0.0
    %1986 = vmatprep.subr.mxu0 0.0
    %1987 = vmatpush1.msra.mxu0 0.0
    %1988 = vmatprep.subr.mxu0 0.0
    %1989 = vmatpush1.msra.mxu0 0.0
    %1990 = vmatprep.subr.mxu0 0.0
    %1991 = vmatpush1.msra.mxu0 0.0
    %1992 = vmatprep.subr.mxu0 0.0
    %1993 = vmatpush1.msra.mxu0 0.0
    %1994 = vmatprep.subr.mxu0 0.0
    %1995 = vmatpush1.msra.mxu0 0.0
    %1996 = vmatprep.subr.mxu0 0.0
    %1997 = vmatpush1.msra.mxu0 0.0
    %1998 = vmatprep.subr.mxu0 0.0
    %1999 = vmatpush1.msra.mxu0 0.0
    %2000 = vmatprep.subr.mxu0 0.0
    %2001 = vmatpush1.msra.mxu0 0.0
    %2002 = vmatprep.subr.mxu0 0.0
    %2003 = vmatpush1.msra.mxu0 0.0
    %2004 = vmatprep.subr.mxu0 0.0
    %2005 = vmatpush1.msra.mxu0 0.0
    %2006 = vmatprep.subr.mxu0 0.0
    %2007 = vmatpush1.msra.mxu0 0.0
    %2008 = vmatprep.subr.mxu0 0.0
    %2009 = vmatpush1.msra.mxu0 0.0
    %2010 = vmatprep.subr.mxu0 0.0
    %2011 = vmatpush1.msra.mxu0 0.0
    %2012 = vmatprep.subr.mxu0 0.0
    %2013 = vmatpush1.msra.mxu0 0.0
    %2014 = vmatprep.subr.mxu0 0.0
    %2015 = vmatpush1.msra.mxu0 0.0
    %2016 = vmatprep.subr.mxu0 0.0
    %2017 = vmatpush1.msra.mxu0 0.0
    %2018 = vmatprep.subr.mxu0 0.0
    %2019 = vmatpush1.msra.mxu0 0.0
    %2020 = vmatprep.subr.mxu0 0.0
    %2021 = vmatpush1.msra.mxu0 0.0
    %2022 = vmatprep.subr.mxu0 0.0
    %2023 = vmatpush1.msra.mxu0 0.0
    %2024 = vmatprep.subr.mxu0 0.0
    %2025 = vmatpush1.msra.mxu0 0.0
    %2026 = vmatprep.subr.mxu0 0.0
    %2027 = vmatpush1.msra.mxu0 0.0
    %2028 = vmatprep.mubr.f32.mxu0 0.0
    %2029 = vmatmul.mubr.f32.gmra.mrb[0].mxu0 %v1962
    %v2030 = vpop.f32.mrb[0].mxu0
    %v2031 = vadd.f32 0.0, %v2030
    %v2032 = vpop.f32.mrb[0].mxu0
    %2033 = vdwg.mxu0
    %2035 = vrot.lane.b32.xlu0 %v1958, 16
    %v2036 = vpop.permute.xlu0 %2035
    %v2037 = vsel %vm479, %v2036, 0
    %2039 = vmatprep.subr.mxu0 0.0
    %2040 = vmatpush1.msra.mxu0 %v475
    %2041 = vmatprep.subr.mxu0 0.0
    %2042 = vmatpush1.msra.mxu0 %v476
    %2043 = vmatprep.subr.mxu0 0.0
    %2044 = vmatpush1.msra.mxu0 0.0
    %2045 = vmatprep.subr.mxu0 0.0
    %2046 = vmatpush1.msra.mxu0 0.0
    %2047 = vmatprep.subr.mxu0 0.0
    %2048 = vmatpush1.msra.mxu0 0.0
    %2049 = vmatprep.subr.mxu0 0.0
    %2050 = vmatpush1.msra.mxu0 0.0
    %2051 = vmatprep.subr.mxu0 0.0
    %2052 = vmatpush1.msra.mxu0 0.0
    %2053 = vmatprep.subr.mxu0 0.0
    %2054 = vmatpush1.msra.mxu0 0.0
    %2055 = vmatprep.subr.mxu0 0.0
    %2056 = vmatpush1.msra.mxu0 0.0
    %2057 = vmatprep.subr.mxu0 0.0
    %2058 = vmatpush1.msra.mxu0 0.0
    %2059 = vmatprep.subr.mxu0 0.0
    %2060 = vmatpush1.msra.mxu0 0.0
    %2061 = vmatprep.subr.mxu0 0.0
    %2062 = vmatpush1.msra.mxu0 0.0
    %2063 = vmatprep.subr.mxu0 0.0
    %2064 = vmatpush1.msra.mxu0 0.0
    %2065 = vmatprep.subr.mxu0 0.0
    %2066 = vmatpush1.msra.mxu0 0.0
    %2067 = vmatprep.subr.mxu0 0.0
    %2068 = vmatpush1.msra.mxu0 0.0
    %2069 = vmatprep.subr.mxu0 0.0
    %2070 = vmatpush1.msra.mxu0 0.0
    %2071 = vmatprep.subr.mxu0 0.0
    %2072 = vmatpush1.msra.mxu0 0.0
    %2073 = vmatprep.subr.mxu0 0.0
    %2074 = vmatpush1.msra.mxu0 0.0
    %2075 = vmatprep.subr.mxu0 0.0
    %2076 = vmatpush1.msra.mxu0 0.0
    %2077 = vmatprep.subr.mxu0 0.0
    %2078 = vmatpush1.msra.mxu0 0.0
    %2079 = vmatprep.subr.mxu0 0.0
    %2080 = vmatpush1.msra.mxu0 0.0
    %2081 = vmatprep.subr.mxu0 0.0
    %2082 = vmatpush1.msra.mxu0 0.0
    %2083 = vmatprep.subr.mxu0 0.0
    %2084 = vmatpush1.msra.mxu0 0.0
    %2085 = vmatprep.subr.mxu0 0.0
    %2086 = vmatpush1.msra.mxu0 0.0
    %2087 = vmatprep.subr.mxu0 0.0
    %2088 = vmatpush1.msra.mxu0 0.0
    %2089 = vmatprep.subr.mxu0 0.0
    %2090 = vmatpush1.msra.mxu0 0.0
    %2091 = vmatprep.subr.mxu0 0.0
    %2092 = vmatpush1.msra.mxu0 0.0
    %2093 = vmatprep.subr.mxu0 0.0
    %2094 = vmatpush1.msra.mxu0 0.0
    %2095 = vmatprep.subr.mxu0 0.0
    %2096 = vmatpush1.msra.mxu0 0.0
    %2097 = vmatprep.subr.mxu0 0.0
    %2098 = vmatpush1.msra.mxu0 0.0
    %2099 = vmatprep.subr.mxu0 0.0
    %2100 = vmatpush1.msra.mxu0 0.0
    %2101 = vmatprep.subr.mxu0 0.0
    %2102 = vmatpush1.msra.mxu0 0.0
    %2103 = vmatprep.mubr.f32.mxu0 0.0
    %2104 = vmatmul.mubr.f32.gmra.mrb[0].mxu0 %v2037
    %v2105 = vpop.f32.mrb[0].mxu0
    %v2106 = vadd.f32 %v2031, %v2105
    %v2107 = vpop.f32.mrb[0].mxu0
    %2108 = vdwg.mxu0
    %v2109 = vadd.f32 %v2106, %v726
    %v2110 = vxor.u32 %v2109, 2147483648
    %v2111 = vmul.f32 %v2110, 1.442695
    %v2112 = vpow.pop %v2111
    %v2113 = vadd.f32 %v2112, 1.0
    %v2114 = vrcp.pop %v2113
    %v2115 = vmul.f32 1.0, %v2114
    %v2116 = vtanh.pop %v2109
    %v2117 = vmul.f32 %v2115, %v1849
    %2119 = vrot.lane.b32.xlu0 %v2116, 96
    %v2120 = vpop.permute.xlu0 %2119
    %v2122 = vmul.f32 %v2115, %v2120
    %2124 = vrot.lane.b32.xlu0 %v2122, 16
    %v2125 = vpop.permute.xlu0 %2124
    %v2127 = vadd.f32 %v2117, %v2125
    %v2128 = vtanh.pop %v2127
    %2130 = vrot.lane.b32.xlu0 %v2128, 32
    %v2131 = vpop.permute.xlu0 %2130
    %v2133 = vmul.f32 %v2115, %v2131
    %2134 = vmatprep.subr.mxu0 0.0
    %2135 = vmatpush1.msra.mxu0 %v473
    %2136 = vmatprep.subr.mxu0 0.0
    %2137 = vmatpush1.msra.mxu0 %v474
    %2138 = vmatprep.subr.mxu0 0.0
    %2139 = vmatpush1.msra.mxu0 0.0
    %2140 = vmatprep.subr.mxu0 0.0
    %2141 = vmatpush1.msra.mxu0 0.0
    %2142 = vmatprep.subr.mxu0 0.0
    %2143 = vmatpush1.msra.mxu0 0.0
    %2144 = vmatprep.subr.mxu0 0.0
    %2145 = vmatpush1.msra.mxu0 0.0
    %2146 = vmatprep.subr.mxu0 0.0
    %2147 = vmatpush1.msra.mxu0 0.0
    %2148 = vmatprep.subr.mxu0 0.0
    %2149 = vmatpush1.msra.mxu0 0.0
    %2150 = vmatprep.subr.mxu0 0.0
    %2151 = vmatpush1.msra.mxu0 0.0
    %2152 = vmatprep.subr.mxu0 0.0
    %2153 = vmatpush1.msra.mxu0 0.0
    %2154 = vmatprep.subr.mxu0 0.0
    %2155 = vmatpush1.msra.mxu0 0.0
    %2156 = vmatprep.subr.mxu0 0.0
    %2157 = vmatpush1.msra.mxu0 0.0
    %2158 = vmatprep.subr.mxu0 0.0
    %2159 = vmatpush1.msra.mxu0 0.0
    %2160 = vmatprep.subr.mxu0 0.0
    %2161 = vmatpush1.msra.mxu0 0.0
    %2162 = vmatprep.subr.mxu0 0.0
    %2163 = vmatpush1.msra.mxu0 0.0
    %2164 = vmatprep.subr.mxu0 0.0
    %2165 = vmatpush1.msra.mxu0 0.0
    %2166 = vmatprep.subr.mxu0 0.0
    %2167 = vmatpush1.msra.mxu0 0.0
    %2168 = vmatprep.subr.mxu0 0.0
    %2169 = vmatpush1.msra.mxu0 0.0
    %2170 = vmatprep.subr.mxu0 0.0
    %2171 = vmatpush1.msra.mxu0 0.0
    %2172 = vmatprep.subr.mxu0 0.0
    %2173 = vmatpush1.msra.mxu0 0.0
    %2174 = vmatprep.subr.mxu0 0.0
    %2175 = vmatpush1.msra.mxu0 0.0
    %2176 = vmatprep.subr.mxu0 0.0
    %2177 = vmatpush1.msra.mxu0 0.0
    %2178 = vmatprep.subr.mxu0 0.0
    %2179 = vmatpush1.msra.mxu0 0.0
    %2180 = vmatprep.subr.mxu0 0.0
    %2181 = vmatpush1.msra.mxu0 0.0
    %2182 = vmatprep.subr.mxu0 0.0
    %2183 = vmatpush1.msra.mxu0 0.0
    %2184 = vmatprep.subr.mxu0 0.0
    %2185 = vmatpush1.msra.mxu0 0.0
    %2186 = vmatprep.subr.mxu0 0.0
    %2187 = vmatpush1.msra.mxu0 0.0
    %2188 = vmatprep.subr.mxu0 0.0
    %2189 = vmatpush1.msra.mxu0 0.0
    %2190 = vmatprep.subr.mxu0 0.0
    %2191 = vmatpush1.msra.mxu0 0.0
    %2192 = vmatprep.subr.mxu0 0.0
    %2193 = vmatpush1.msra.mxu0 0.0
    %2194 = vmatprep.subr.mxu0 0.0
    %2195 = vmatpush1.msra.mxu0 0.0
    %2196 = vmatprep.subr.mxu0 0.0
    %2197 = vmatpush1.msra.mxu0 0.0
    %2198 = vmatprep.mubr.f32.mxu0 0.0
    %2199 = vmatmul.mubr.f32.gmra.mrb[0].mxu0 %v2037
    %v2200 = vpop.f32.mrb[0].mxu0
    %v2201 = vadd.f32 0.0, %v2200
    %v2202 = vpop.f32.mrb[0].mxu0
    %2203 = vdwg.mxu0
    %v2204 = vadd.f32 %v471, %v2201
    %v2205 = vxor.u32 %v2204, 2147483648
    %v2206 = vmul.f32 %v2205, 1.442695
    %v2207 = vpow.pop %v2206
    %v2208 = vadd.f32 %v2207, 1.0
    %v2209 = vrcp.pop %v2208
    %v2210 = vmul.f32 1.0, %v2209
    %v2211 = vtanh.pop %v2204
    %2213 = vrot.lane.b32.xlu0 %v1952, 64
    %v2214 = vpop.permute.xlu0 %2213
    %v2216 = vmul.f32 %v2210, %v2214
    %2218 = vrot.lane.b32.xlu0 %v2211, 96
    %v2219 = vpop.permute.xlu0 %2218
    %v2221 = vmul.f32 %v2210, %v2219
    %2223 = vrot.lane.b32.xlu0 %v2221, 16
    %v2224 = vpop.permute.xlu0 %2223
    %v2226 = vadd.f32 %v2216, %v2224
    %v2227 = vtanh.pop %v2226
    %2229 = vrot.lane.b32.xlu0 %v2227, 32
    %v2230 = vpop.permute.xlu0 %2229
    %v2232 = vmul.f32 %v2210, %v2230
    %2234 = vrot.lane.b32.xlu0 %v2133, 80
    %v2235 = vpop.permute.xlu0 %2234
    %v2236 = vsel %vm479, %v2235, 0
    %2238 = vmatprep.subr.mxu0 0.0
    %2239 = vmatpush1.msra.mxu0 %v477
    %2240 = vmatprep.subr.mxu0 0.0
    %2241 = vmatpush1.msra.mxu0 %v478
    %2242 = vmatprep.subr.mxu0 0.0
    %2243 = vmatpush1.msra.mxu0 0.0
    %2244 = vmatprep.subr.mxu0 0.0
    %2245 = vmatpush1.msra.mxu0 0.0
    %2246 = vmatprep.subr.mxu0 0.0
    %2247 = vmatpush1.msra.mxu0 0.0
    %2248 = vmatprep.subr.mxu0 0.0
    %2249 = vmatpush1.msra.mxu0 0.0
    %2250 = vmatprep.subr.mxu0 0.0
    %2251 = vmatpush1.msra.mxu0 0.0
    %2252 = vmatprep.subr.mxu0 0.0
    %2253 = vmatpush1.msra.mxu0 0.0
    %2254 = vmatprep.subr.mxu0 0.0
    %2255 = vmatpush1.msra.mxu0 0.0
    %2256 = vmatprep.subr.mxu0 0.0
    %2257 = vmatpush1.msra.mxu0 0.0
    %2258 = vmatprep.subr.mxu0 0.0
    %2259 = vmatpush1.msra.mxu0 0.0
    %2260 = vmatprep.subr.mxu0 0.0
    %2261 = vmatpush1.msra.mxu0 0.0
    %2262 = vmatprep.subr.mxu0 0.0
    %2263 = vmatpush1.msra.mxu0 0.0
    %2264 = vmatprep.subr.mxu0 0.0
    %2265 = vmatpush1.msra.mxu0 0.0
    %2266 = vmatprep.subr.mxu0 0.0
    %2267 = vmatpush1.msra.mxu0 0.0
    %2268 = vmatprep.subr.mxu0 0.0
    %2269 = vmatpush1.msra.mxu0 0.0
    %2270 = vmatprep.subr.mxu0 0.0
    %2271 = vmatpush1.msra.mxu0 0.0
    %2272 = vmatprep.subr.mxu0 0.0
    %2273 = vmatpush1.msra.mxu0 0.0
    %2274 = vmatprep.subr.mxu0 0.0
    %2275 = vmatpush1.msra.mxu0 0.0
    %2276 = vmatprep.subr.mxu0 0.0
    %2277 = vmatpush1.msra.mxu0 0.0
    %2278 = vmatprep.subr.mxu0 0.0
    %2279 = vmatpush1.msra.mxu0 0.0
    %2280 = vmatprep.subr.mxu0 0.0
    %2281 = vmatpush1.msra.mxu0 0.0
    %2282 = vmatprep.subr.mxu0 0.0
    %2283 = vmatpush1.msra.mxu0 0.0
    %2284 = vmatprep.subr.mxu0 0.0
    %2285 = vmatpush1.msra.mxu0 0.0
    %2286 = vmatprep.subr.mxu0 0.0
    %2287 = vmatpush1.msra.mxu0 0.0
    %2288 = vmatprep.subr.mxu0 0.0
    %2289 = vmatpush1.msra.mxu0 0.0
    %2290 = vmatprep.subr.mxu0 0.0
    %2291 = vmatpush1.msra.mxu0 0.0
    %2292 = vmatprep.subr.mxu0 0.0
    %2293 = vmatpush1.msra.mxu0 0.0
    %2294 = vmatprep.subr.mxu0 0.0
    %2295 = vmatpush1.msra.mxu0 0.0
    %2296 = vmatprep.subr.mxu0 0.0
    %2297 = vmatpush1.msra.mxu0 0.0
    %2298 = vmatprep.subr.mxu0 0.0
    %2299 = vmatpush1.msra.mxu0 0.0
    %2300 = vmatprep.subr.mxu0 0.0
    %2301 = vmatpush1.msra.mxu0 0.0
    %2302 = vmatprep.mubr.f32.mxu0 0.0
    %2303 = vmatmul.mubr.f32.gmra.mrb[0].mxu0 %v2236
    %v2304 = vpop.f32.mrb[0].mxu0
    %v2305 = vadd.f32 0.0, %v2304
    %v2306 = vpop.f32.mrb[0].mxu0
    %2307 = vdwg.mxu0
    %2309 = vrot.lane.b32.xlu0 %v2232, 80
    %v2310 = vpop.permute.xlu0 %2309
    %v2311 = vsel %vm479, %v2310, 0
    %2313 = vmatprep.subr.mxu0 0.0
    %2314 = vmatpush1.msra.mxu0 %v475
    %2315 = vmatprep.subr.mxu0 0.0
    %2316 = vmatpush1.msra.mxu0 %v476
    %2317 = vmatprep.subr.mxu0 0.0
    %2318 = vmatpush1.msra.mxu0 0.0
    %2319 = vmatprep.subr.mxu0 0.0
    %2320 = vmatpush1.msra.mxu0 0.0
    %2321 = vmatprep.subr.mxu0 0.0
    %2322 = vmatpush1.msra.mxu0 0.0
    %2323 = vmatprep.subr.mxu0 0.0
    %2324 = vmatpush1.msra.mxu0 0.0
    %2325 = vmatprep.subr.mxu0 0.0
    %2326 = vmatpush1.msra.mxu0 0.0
    %2327 = vmatprep.subr.mxu0 0.0
    %2328 = vmatpush1.msra.mxu0 0.0
    %2329 = vmatprep.subr.mxu0 0.0
    %2330 = vmatpush1.msra.mxu0 0.0
    %2331 = vmatprep.subr.mxu0 0.0
    %2332 = vmatpush1.msra.mxu0 0.0
    %2333 = vmatprep.subr.mxu0 0.0
    %2334 = vmatpush1.msra.mxu0 0.0
    %2335 = vmatprep.subr.mxu0 0.0
    %2336 = vmatpush1.msra.mxu0 0.0
    %2337 = vmatprep.subr.mxu0 0.0
    %2338 = vmatpush1.msra.mxu0 0.0
    %2339 = vmatprep.subr.mxu0 0.0
    %2340 = vmatpush1.msra.mxu0 0.0
    %2341 = vmatprep.subr.mxu0 0.0
    %2342 = vmatpush1.msra.mxu0 0.0
    %2343 = vmatprep.subr.mxu0 0.0
    %2344 = vmatpush1.msra.mxu0 0.0
    %2345 = vmatprep.subr.mxu0 0.0
    %2346 = vmatpush1.msra.mxu0 0.0
    %2347 = vmatprep.subr.mxu0 0.0
    %2348 = vmatpush1.msra.mxu0 0.0
    %2349 = vmatprep.subr.mxu0 0.0
    %2350 = vmatpush1.msra.mxu0 0.0
    %2351 = vmatprep.subr.mxu0 0.0
    %2352 = vmatpush1.msra.mxu0 0.0
    %2353 = vmatprep.subr.mxu0 0.0
    %2354 = vmatpush1.msra.mxu0 0.0
    %2355 = vmatprep.subr.mxu0 0.0
    %2356 = vmatpush1.msra.mxu0 0.0
    %2357 = vmatprep.subr.mxu0 0.0
    %2358 = vmatpush1.msra.mxu0 0.0
    %2359 = vmatprep.subr.mxu0 0.0
    %2360 = vmatpush1.msra.mxu0 0.0
    %2361 = vmatprep.subr.mxu0 0.0
    %2362 = vmatpush1.msra.mxu0 0.0
    %2363 = vmatprep.subr.mxu0 0.0
    %2364 = vmatpush1.msra.mxu0 0.0
    %2365 = vmatprep.subr.mxu0 0.0
    %2366 = vmatpush1.msra.mxu0 0.0
    %2367 = vmatprep.subr.mxu0 0.0
    %2368 = vmatpush1.msra.mxu0 0.0
    %2369 = vmatprep.subr.mxu0 0.0
    %2370 = vmatpush1.msra.mxu0 0.0
    %2371 = vmatprep.subr.mxu0 0.0
    %2372 = vmatpush1.msra.mxu0 0.0
    %2373 = vmatprep.subr.mxu0 0.0
    %2374 = vmatpush1.msra.mxu0 0.0
    %2375 = vmatprep.subr.mxu0 0.0
    %2376 = vmatpush1.msra.mxu0 0.0
    %2377 = vmatprep.mubr.f32.mxu0 0.0
    %2378 = vmatmul.mubr.f32.gmra.mrb[0].mxu0 %v2311
    %v2379 = vpop.f32.mrb[0].mxu0
    %v2380 = vadd.f32 %v2305, %v2379
    %v2381 = vpop.f32.mrb[0].mxu0
    %2382 = vdwg.mxu0
    %v2383 = vadd.f32 %v2380, %v726
    %v2384 = vxor.u32 %v2383, 2147483648
    %v2385 = vmul.f32 %v2384, 1.442695
    %v2386 = vpow.pop %v2385
    %v2387 = vadd.f32 %v2386, 1.0
    %v2388 = vrcp.pop %v2387
    %v2389 = vmul.f32 1.0, %v2388
    %v2390 = vtanh.pop %v2383
    %v2391 = vmul.f32 %v2389, %v2127
    %2393 = vrot.lane.b32.xlu0 %v2390, 96
    %v2394 = vpop.permute.xlu0 %2393
    %v2396 = vmul.f32 %v2389, %v2394
    %2398 = vrot.lane.b32.xlu0 %v2396, 16
    %v2399 = vpop.permute.xlu0 %2398
    %v2401 = vadd.f32 %v2391, %v2399
    %v2402 = vtanh.pop %v2401
    %2404 = vrot.lane.b32.xlu0 %v2402, 32
    %v2405 = vpop.permute.xlu0 %2404
    %v2407 = vmul.f32 %v2389, %v2405
    %2408 = vmatprep.subr.mxu0 0.0
    %2409 = vmatpush1.msra.mxu0 %v473
    %2410 = vmatprep.subr.mxu0 0.0
    %2411 = vmatpush1.msra.mxu0 %v474
    %2412 = vmatprep.subr.mxu0 0.0
    %2413 = vmatpush1.msra.mxu0 0.0
    %2414 = vmatprep.subr.mxu0 0.0
    %2415 = vmatpush1.msra.mxu0 0.0
    %2416 = vmatprep.subr.mxu0 0.0
    %2417 = vmatpush1.msra.mxu0 0.0
    %2418 = vmatprep.subr.mxu0 0.0
    %2419 = vmatpush1.msra.mxu0 0.0
    %2420 = vmatprep.subr.mxu0 0.0
    %2421 = vmatpush1.msra.mxu0 0.0
    %2422 = vmatprep.subr.mxu0 0.0
    %2423 = vmatpush1.msra.mxu0 0.0
    %2424 = vmatprep.subr.mxu0 0.0
    %2425 = vmatpush1.msra.mxu0 0.0
    %2426 = vmatprep.subr.mxu0 0.0
    %2427 = vmatpush1.msra.mxu0 0.0
    %2428 = vmatprep.subr.mxu0 0.0
    %2429 = vmatpush1.msra.mxu0 0.0
    %2430 = vmatprep.subr.mxu0 0.0
    %2431 = vmatpush1.msra.mxu0 0.0
    %2432 = vmatprep.subr.mxu0 0.0
    %2433 = vmatpush1.msra.mxu0 0.0
    %2434 = vmatprep.subr.mxu0 0.0
    %2435 = vmatpush1.msra.mxu0 0.0
    %2436 = vmatprep.subr.mxu0 0.0
    %2437 = vmatpush1.msra.mxu0 0.0
    %2438 = vmatprep.subr.mxu0 0.0
    %2439 = vmatpush1.msra.mxu0 0.0
    %2440 = vmatprep.subr.mxu0 0.0
    %2441 = vmatpush1.msra.mxu0 0.0
    %2442 = vmatprep.subr.mxu0 0.0
    %2443 = vmatpush1.msra.mxu0 0.0
    %2444 = vmatprep.subr.mxu0 0.0
    %2445 = vmatpush1.msra.mxu0 0.0
    %2446 = vmatprep.subr.mxu0 0.0
    %2447 = vmatpush1.msra.mxu0 0.0
    %2448 = vmatprep.subr.mxu0 0.0
    %2449 = vmatpush1.msra.mxu0 0.0
    %2450 = vmatprep.subr.mxu0 0.0
    %2451 = vmatpush1.msra.mxu0 0.0
    %2452 = vmatprep.subr.mxu0 0.0
    %2453 = vmatpush1.msra.mxu0 0.0
    %2454 = vmatprep.subr.mxu0 0.0
    %2455 = vmatpush1.msra.mxu0 0.0
    %2456 = vmatprep.subr.mxu0 0.0
    %2457 = vmatpush1.msra.mxu0 0.0
    %2458 = vmatprep.subr.mxu0 0.0
    %2459 = vmatpush1.msra.mxu0 0.0
    %2460 = vmatprep.subr.mxu0 0.0
    %2461 = vmatpush1.msra.mxu0 0.0
    %2462 = vmatprep.subr.mxu0 0.0
    %2463 = vmatpush1.msra.mxu0 0.0
    %2464 = vmatprep.subr.mxu0 0.0
    %2465 = vmatpush1.msra.mxu0 0.0
    %2466 = vmatprep.subr.mxu0 0.0
    %2467 = vmatpush1.msra.mxu0 0.0
    %2468 = vmatprep.subr.mxu0 0.0
    %2469 = vmatpush1.msra.mxu0 0.0
    %2470 = vmatprep.subr.mxu0 0.0
    %2471 = vmatpush1.msra.mxu0 0.0
    %2472 = vmatprep.mubr.f32.mxu0 0.0
    %2473 = vmatmul.mubr.f32.gmra.mrb[0].mxu0 %v2311
    %v2474 = vpop.f32.mrb[0].mxu0
    %v2475 = vadd.f32 0.0, %v2474
    %v2476 = vpop.f32.mrb[0].mxu0
    %2477 = vdwg.mxu0
    %2479 = vrot.lane.b32.xlu0 %v2475, 64
    %v2480 = vpop.permute.xlu0 %2479
    %v2482 = vadd.f32 %v471, %v2480
    %v2483 = vxor.u32 %v2482, 2147483648
    %v2484 = vmul.f32 %v2483, 1.442695
    %v2485 = vpow.pop %v2484
    %v2486 = vadd.f32 %v2485, 1.0
    %v2487 = vrcp.pop %v2486
    %v2488 = vmul.f32 1.0, %v2487
    %v2489 = vtanh.pop %v2482
    %2491 = vrot.lane.b32.xlu0 %v2226, 64
    %v2492 = vpop.permute.xlu0 %2491
    %v2494 = vmul.f32 %v2488, %v2492
    %2496 = vrot.lane.b32.xlu0 %v2489, 96
    %v2497 = vpop.permute.xlu0 %2496
    %v2499 = vmul.f32 %v2488, %v2497
    %2501 = vrot.lane.b32.xlu0 %v2499, 16
    %v2502 = vpop.permute.xlu0 %2501
    %v2504 = vadd.f32 %v2494, %v2502
    %v2505 = vtanh.pop %v2504
    %2507 = vrot.lane.b32.xlu0 %v2505, 32
    %v2508 = vpop.permute.xlu0 %2507
    %v2510 = vmul.f32 %v2488, %v2508
    %2512 = vrot.lane.b32.xlu0 %v2407, 80
    %v2513 = vpop.permute.xlu0 %2512
    %v2514 = vsel %vm479, %v2513, 0
    %2516 = vmatprep.subr.mxu0 0.0
    %2517 = vmatpush1.msra.mxu0 %v477
    %2518 = vmatprep.subr.mxu0 0.0
    %2519 = vmatpush1.msra.mxu0 %v478
    %2520 = vmatprep.subr.mxu0 0.0
    %2521 = vmatpush1.msra.mxu0 0.0
    %2522 = vmatprep.subr.mxu0 0.0
    %2523 = vmatpush1.msra.mxu0 0.0
    %2524 = vmatprep.subr.mxu0 0.0
    %2525 = vmatpush1.msra.mxu0 0.0
    %2526 = vmatprep.subr.mxu0 0.0
    %2527 = vmatpush1.msra.mxu0 0.0
    %2528 = vmatprep.subr.mxu0 0.0
    %2529 = vmatpush1.msra.mxu0 0.0
    %2530 = vmatprep.subr.mxu0 0.0
    %2531 = vmatpush1.msra.mxu0 0.0
    %2532 = vmatprep.subr.mxu0 0.0
    %2533 = vmatpush1.msra.mxu0 0.0
    %2534 = vmatprep.subr.mxu0 0.0
    %2535 = vmatpush1.msra.mxu0 0.0
    %2536 = vmatprep.subr.mxu0 0.0
    %2537 = vmatpush1.msra.mxu0 0.0
    %2538 = vmatprep.subr.mxu0 0.0
    %2539 = vmatpush1.msra.mxu0 0.0
    %2540 = vmatprep.subr.mxu0 0.0
    %2541 = vmatpush1.msra.mxu0 0.0
    %2542 = vmatprep.subr.mxu0 0.0
    %2543 = vmatpush1.msra.mxu0 0.0
    %2544 = vmatprep.subr.mxu0 0.0
    %2545 = vmatpush1.msra.mxu0 0.0
    %2546 = vmatprep.subr.mxu0 0.0
    %2547 = vmatpush1.msra.mxu0 0.0
    %2548 = vmatprep.subr.mxu0 0.0
    %2549 = vmatpush1.msra.mxu0 0.0
    %2550 = vmatprep.subr.mxu0 0.0
    %2551 = vmatpush1.msra.mxu0 0.0
    %2552 = vmatprep.subr.mxu0 0.0
    %2553 = vmatpush1.msra.mxu0 0.0
    %2554 = vmatprep.subr.mxu0 0.0
    %2555 = vmatpush1.msra.mxu0 0.0
    %2556 = vmatprep.subr.mxu0 0.0
    %2557 = vmatpush1.msra.mxu0 0.0
    %2558 = vmatprep.subr.mxu0 0.0
    %2559 = vmatpush1.msra.mxu0 0.0
    %2560 = vmatprep.subr.mxu0 0.0
    %2561 = vmatpush1.msra.mxu0 0.0
    %2562 = vmatprep.subr.mxu0 0.0
    %2563 = vmatpush1.msra.mxu0 0.0
    %2564 = vmatprep.subr.mxu0 0.0
    %2565 = vmatpush1.msra.mxu0 0.0
    %2566 = vmatprep.subr.mxu0 0.0
    %2567 = vmatpush1.msra.mxu0 0.0
    %2568 = vmatprep.subr.mxu0 0.0
    %2569 = vmatpush1.msra.mxu0 0.0
    %2570 = vmatprep.subr.mxu0 0.0
    %2571 = vmatpush1.msra.mxu0 0.0
    %2572 = vmatprep.subr.mxu0 0.0
    %2573 = vmatpush1.msra.mxu0 0.0
    %2574 = vmatprep.subr.mxu0 0.0
    %2575 = vmatpush1.msra.mxu0 0.0
    %2576 = vmatprep.subr.mxu0 0.0
    %2577 = vmatpush1.msra.mxu0 0.0
    %2578 = vmatprep.subr.mxu0 0.0
    %2579 = vmatpush1.msra.mxu0 0.0
    %2580 = vmatprep.mubr.f32.mxu0 0.0
    %2581 = vmatmul.mubr.f32.gmra.mrb[0].mxu0 %v2514
    %v2582 = vpop.f32.mrb[0].mxu0
    %v2583 = vadd.f32 0.0, %v2582
    %v2584 = vpop.f32.mrb[0].mxu0
    %2585 = vdwg.mxu0
    %2587 = vrot.lane.b32.xlu0 %v2510, 16
    %v2588 = vpop.permute.xlu0 %2587
    %v2589 = vsel %vm479, %v2588, 0
    %2591 = vmatprep.subr.mxu0 0.0
    %2592 = vmatpush1.msra.mxu0 %v475
    %2593 = vmatprep.subr.mxu0 0.0
    %2594 = vmatpush1.msra.mxu0 %v476
    %2595 = vmatprep.subr.mxu0 0.0
    %2596 = vmatpush1.msra.mxu0 0.0
    %2597 = vmatprep.subr.mxu0 0.0
    %2598 = vmatpush1.msra.mxu0 0.0
    %2599 = vmatprep.subr.mxu0 0.0
    %2600 = vmatpush1.msra.mxu0 0.0
    %2601 = vmatprep.subr.mxu0 0.0
    %2602 = vmatpush1.msra.mxu0 0.0
    %2603 = vmatprep.subr.mxu0 0.0
    %2604 = vmatpush1.msra.mxu0 0.0
    %2605 = vmatprep.subr.mxu0 0.0
    %2606 = vmatpush1.msra.mxu0 0.0
    %2607 = vmatprep.subr.mxu0 0.0
    %2608 = vmatpush1.msra.mxu0 0.0
    %2609 = vmatprep.subr.mxu0 0.0
    %2610 = vmatpush1.msra.mxu0 0.0
    %2611 = vmatprep.subr.mxu0 0.0
    %2612 = vmatpush1.msra.mxu0 0.0
    %2613 = vmatprep.subr.mxu0 0.0
    %2614 = vmatpush1.msra.mxu0 0.0
    %2615 = vmatprep.subr.mxu0 0.0
    %2616 = vmatpush1.msra.mxu0 0.0
    %2617 = vmatprep.subr.mxu0 0.0
    %2618 = vmatpush1.msra.mxu0 0.0
    %2619 = vmatprep.subr.mxu0 0.0
    %2620 = vmatpush1.msra.mxu0 0.0
    %2621 = vmatprep.subr.mxu0 0.0
    %2622 = vmatpush1.msra.mxu0 0.0
    %2623 = vmatprep.subr.mxu0 0.0
    %2624 = vmatpush1.msra.mxu0 0.0
    %2625 = vmatprep.subr.mxu0 0.0
    %2626 = vmatpush1.msra.mxu0 0.0
    %2627 = vmatprep.subr.mxu0 0.0
    %2628 = vmatpush1.msra.mxu0 0.0
    %2629 = vmatprep.subr.mxu0 0.0
    %2630 = vmatpush1.msra.mxu0 0.0
    %2631 = vmatprep.subr.mxu0 0.0
    %2632 = vmatpush1.msra.mxu0 0.0
    %2633 = vmatprep.subr.mxu0 0.0
    %2634 = vmatpush1.msra.mxu0 0.0
    %2635 = vmatprep.subr.mxu0 0.0
    %2636 = vmatpush1.msra.mxu0 0.0
    %2637 = vmatprep.subr.mxu0 0.0
    %2638 = vmatpush1.msra.mxu0 0.0
    %2639 = vmatprep.subr.mxu0 0.0
    %2640 = vmatpush1.msra.mxu0 0.0
    %2641 = vmatprep.subr.mxu0 0.0
    %2642 = vmatpush1.msra.mxu0 0.0
    %2643 = vmatprep.subr.mxu0 0.0
    %2644 = vmatpush1.msra.mxu0 0.0
    %2645 = vmatprep.subr.mxu0 0.0
    %2646 = vmatpush1.msra.mxu0 0.0
    %2647 = vmatprep.subr.mxu0 0.0
    %2648 = vmatpush1.msra.mxu0 0.0
    %2649 = vmatprep.subr.mxu0 0.0
    %2650 = vmatpush1.msra.mxu0 0.0
    %2651 = vmatprep.subr.mxu0 0.0
    %2652 = vmatpush1.msra.mxu0 0.0
    %2653 = vmatprep.subr.mxu0 0.0
    %2654 = vmatpush1.msra.mxu0 0.0
    %2655 = vmatprep.mubr.f32.mxu0 0.0
    %2656 = vmatmul.mubr.f32.gmra.mrb[0].mxu0 %v2589
    %v2657 = vpop.f32.mrb[0].mxu0
    %v2658 = vadd.f32 %v2583, %v2657
    %v2659 = vpop.f32.mrb[0].mxu0
    %2660 = vdwg.mxu0
    %v2661 = vadd.f32 %v2658, %v726
    %v2662 = vxor.u32 %v2661, 2147483648
    %v2663 = vmul.f32 %v2662, 1.442695
    %v2664 = vpow.pop %v2663
    %v2665 = vadd.f32 %v2664, 1.0
    %v2666 = vrcp.pop %v2665
    %v2667 = vmul.f32 1.0, %v2666
    %v2668 = vtanh.pop %v2661
    %v2669 = vmul.f32 %v2667, %v2401
    %2671 = vrot.lane.b32.xlu0 %v2668, 96
    %v2672 = vpop.permute.xlu0 %2671
    %v2674 = vmul.f32 %v2667, %v2672
    %2676 = vrot.lane.b32.xlu0 %v2674, 16
    %v2677 = vpop.permute.xlu0 %2676
    %v2679 = vadd.f32 %v2669, %v2677
    %v2680 = vtanh.pop %v2679
    %2682 = vrot.lane.b32.xlu0 %v2680, 32
    %v2683 = vpop.permute.xlu0 %2682
    %v2685 = vmul.f32 %v2667, %v2683
    %v2686 = vld [vmem:[%s6] sm:$0xff]
    %v2687 = vld [vmem:[%s6 + $0x8] sm:$0xff]
    %v2688 = vlaneseq
    %v2689 = vshrl.u32 %v2688, 7
    %v2690 = vsub.s32 3, %v2689
    %v2691 = vrot.slane %v67, %v2690
    %2693 = vrot.lane.b32.xlu0 %v2685, 80
    %v2694 = vpop.permute.xlu0 %2693
    %v2695 = vsel %vm479, %v2694, 0
    %2697 = vmatprep.subr.mxu0 0.0
    %2698 = vmatpush1.msra.mxu0 %v2686
    %2699 = vmatprep.subr.mxu0 0.0
    %2700 = vmatpush1.msra.mxu0 %v2687
    %2701 = vmatprep.subr.mxu0 0.0
    %2702 = vmatpush1.msra.mxu0 0.0
    %2703 = vmatprep.subr.mxu0 0.0
    %2704 = vmatpush1.msra.mxu0 0.0
    %2705 = vmatprep.subr.mxu0 0.0
    %2706 = vmatpush1.msra.mxu0 0.0
    %2707 = vmatprep.subr.mxu0 0.0
    %2708 = vmatpush1.msra.mxu0 0.0
    %2709 = vmatprep.subr.mxu0 0.0
    %2710 = vmatpush1.msra.mxu0 0.0
    %2711 = vmatprep.subr.mxu0 0.0
    %2712 = vmatpush1.msra.mxu0 0.0
    %2713 = vmatprep.subr.mxu0 0.0
    %2714 = vmatpush1.msra.mxu0 0.0
    %2715 = vmatprep.subr.mxu0 0.0
    %2716 = vmatpush1.msra.mxu0 0.0
    %2717 = vmatprep.subr.mxu0 0.0
    %2718 = vmatpush1.msra.mxu0 0.0
    %2719 = vmatprep.subr.mxu0 0.0
    %2720 = vmatpush1.msra.mxu0 0.0
    %2721 = vmatprep.subr.mxu0 0.0
    %2722 = vmatpush1.msra.mxu0 0.0
    %2723 = vmatprep.subr.mxu0 0.0
    %2724 = vmatpush1.msra.mxu0 0.0
    %2725 = vmatprep.subr.mxu0 0.0
    %2726 = vmatpush1.msra.mxu0 0.0
    %2727 = vmatprep.subr.mxu0 0.0
    %2728 = vmatpush1.msra.mxu0 0.0
    %2729 = vmatprep.subr.mxu0 0.0
    %2730 = vmatpush1.msra.mxu0 0.0
    %2731 = vmatprep.subr.mxu0 0.0
    %2732 = vmatpush1.msra.mxu0 0.0
    %2733 = vmatprep.subr.mxu0 0.0
    %2734 = vmatpush1.msra.mxu0 0.0
    %2735 = vmatprep.subr.mxu0 0.0
    %2736 = vmatpush1.msra.mxu0 0.0
    %2737 = vmatprep.subr.mxu0 0.0
    %2738 = vmatpush1.msra.mxu0 0.0
    %2739 = vmatprep.subr.mxu0 0.0
    %2740 = vmatpush1.msra.mxu0 0.0
    %2741 = vmatprep.subr.mxu0 0.0
    %2742 = vmatpush1.msra.mxu0 0.0
    %2743 = vmatprep.subr.mxu0 0.0
    %2744 = vmatpush1.msra.mxu0 0.0
    %2745 = vmatprep.subr.mxu0 0.0
    %2746 = vmatpush1.msra.mxu0 0.0
    %2747 = vmatprep.subr.mxu0 0.0
    %2748 = vmatpush1.msra.mxu0 0.0
    %2749 = vmatprep.subr.mxu0 0.0
    %2750 = vmatpush1.msra.mxu0 0.0
    %2751 = vmatprep.subr.mxu0 0.0
    %2752 = vmatpush1.msra.mxu0 0.0
    %2753 = vmatprep.subr.mxu0 0.0
    %2754 = vmatpush1.msra.mxu0 0.0
    %2755 = vmatprep.subr.mxu0 0.0
    %2756 = vmatpush1.msra.mxu0 0.0
    %2757 = vmatprep.subr.mxu0 0.0
    %2758 = vmatpush1.msra.mxu0 0.0
    %2759 = vmatprep.subr.mxu0 0.0
    %2760 = vmatpush1.msra.mxu0 0.0
    %2761 = vmatprep.mubr.f32.mxu0 0.0
    %2762 = vmatmul.mubr.f32.gmra.mrb[0].mxu0 %v2695
    %v2763 = vpop.f32.mrb[0].mxu0
    %v2764 = vadd.f32 %v2691, %v2763
    %v2765 = vpop.f32.mrb[0].mxu0
    %2766 = vdwg.mxu0
    %2767 = vst [vmem:[#allocation8] sm:$0x3] %v2764
    // Predicated region
    $region46: #{cnn_lstm_forward.1} parent=1 // pred_check
      _
    $region47: #{cnn_lstm_forward.1} parent=1 // pred_check_branch
      %2769 = sbr.rel (0) target = $region49
    $region48: #{cnn_lstm_forward.1} parent=1 // pred_region
      %s2771 = ssub.s32 32, 32
      %2772 = vsyncadd [#allocation4], %s2771
      %s2774 = sshll.u32 [#allocation8], 4
      %s2775 = int_to_ptr.vmem [resolvable:$true] %s2774
      %2777 = dma.vmem_to_hbm [thread:$0]  %s2775, 32, %s8, [#allocation4]
    $region49: #{cnn_lstm_forward.1} parent=1 // pred_fallthru
      _
    // Predicated region
    $region50: #{cnn_lstm_forward.1} parent=1 // pred_check
      _
    $region51: #{cnn_lstm_forward.1} parent=1 // pred_check_branch
      %2779 = sbr.rel (0) target = $region53
    $region52: #{cnn_lstm_forward.1} parent=1 // pred_region
      %2780 = dma.done [#allocation4], 32
    $region53: #{cnn_lstm_forward.1} parent=1 // pred_fallthru
      _
    %2781 = vsyncpa [#allocation3], 1
    %2782 = vsyncpa [#allocation6], 1
    %2783 = vsyncpa [#allocation4], 1

</llo_original>
